<compile_context>
chip_gen: v7x
topology: tpu7x:2x2x1
jax: 0.10.0
libtpu: 0.0.40
codegen_flags: <defaults>
</compile_context>

<pallas_src>
import jax
import jax.numpy as jnp
from jax.experimental import pallas as pl
from jax.experimental.pallas import tpu as pltpu

N_VERTS = 778
N_VERTS_PAD = 896           # 7 * 128 lanes
N_JOINTS = 16
POSE_FEAT = 15 * 9          # 135: (rotmat - I) of the 15 non-root joints
KDIM = 144                  # 135 pose feats + 2 constant-1 cols (template hi/lo) + pad
N_TROWS = 12                # top 3 rows of each 4x4 transform, row-major

# MANO kinematic tree (root = wrist).
MANO_PARENTS = (-1, 0, 1, 2, 0, 4, 5, 0, 7, 8, 0, 10, 11, 0, 13, 14)
# Conventional MANO fingertip vertex ids (synthetic mesh here, indices only fix the gather).
TIP_IDX = (745, 317, 444, 556, 673)


# ----------------------------- Pallas kernel --------------------------------
def _mano_lbs_kernel(pose_ref, a_ref, posedirs_ref, w_ref, out_ref):
    """One batch block (TB elements) per grid step.

    pose_ref     : (TB, 144) bf16   [pose feats | 1 | 1 | 0-pad]
    a_ref        : (12*TB, 16) f32  per-joint transform entries (hand_tsl already
                                    folded into the translation column), entry-major:
                                    a[k*TB + b, j] = A[b, j].rows3.flat[k]
    posedirs_ref : (144, 3*896) bf16 fused [posedirs ; vtpl_hi ; vtpl_lo ; 0], coord-major
    w_ref        : (16, 896) f32    LBS skinning weights, joint-major (lane padded)
    out_ref      : (3, TB, 896) f32 output vertices, coordinate-major
    """
    tb = out_ref.shape[1]
    npad = w_ref.shape[1]

    # Fused pose-blend + rest-template (MXU, bf16 operands, f32 accumulate):
    # v_posed[c] = vtpl[c] + posedirs[c] @ pose_feat comes out as 3 lane slabs.
    v = jnp.dot(pose_ref[...], posedirs_ref[...],
                preferred_element_type=jnp.float32)              # (TB, 3*896)
    vx = v[:, 0:npad]
    vy = v[:, npad:2 * npad]
    vz = v[:, 2 * npad:3 * npad]

    w = w_ref[...]                                               # (16, 896)

    # Skinning split per output coordinate: each (4*TB,16)x(16,896) MXU pass
    # feeds its own VPU epilogue + row store (T scratch 1/3 of fused version,
    # and coordinate c+1's matmul overlaps coordinate c's epilogue).
    for c in range(3):                                           # static unroll
        t = jnp.dot(a_ref[pl.ds(c * 4 * tb, 4 * tb), :], w,
                    preferred_element_type=jnp.float32)          # (4*TB, 896)
        out_ref[c, :, :] = (t[0 * tb:1 * tb, :] * vx
                            + t[1 * tb:2 * tb, :] * vy
                            + t[2 * tb:3 * tb, :] * vz
                            + t[3 * tb:4 * tb, :])               # translation (+tsl) row


def _mano_lbs_pallas(pose_aug, a2d, posedirs_fused, weights_pad, *, tb):
    bs_pad = pose_aug.shape[0]
    n_blocks = bs_pad // tb
    npad = weights_pad.shape[1]

    flops = n_blocks * (2 * tb * KDIM * 3 * npad                 # pose blend matmul
                        + 2 * (N_TROWS * tb) * N_JOINTS * npad   # skinning matmuls
                        + 6 * tb * 3 * npad)                     # epilogue FMAs
    bytes_accessed = (pose_aug.size * pose_aug.dtype.itemsize
                      + a2d.size * 4
                      + posedirs_fused.size * posedirs_fused.dtype.itemsize
                      + weights_pad.size * 4
                      + 3 * bs_pad * npad * 4)

    return pl.pallas_call(
        _mano_lbs_kernel,
        out_shape=jax.ShapeDtypeStruct((3, bs_pad, npad), jnp.float32),
        grid_spec=pltpu.PrefetchScalarGridSpec(
            num_scalar_prefetch=0,
            grid=(n_blocks,),
            in_specs=[
                pl.BlockSpec((tb, KDIM), lambda g: (g, 0)),
                pl.BlockSpec((N_TROWS * tb, N_JOINTS), lambda g: (g, 0)),
                # constant operands: fixed block index -> fetched once, not per step
                pl.BlockSpec((KDIM, 3 * npad), lambda g: (0, 0)),
                pl.BlockSpec((N_JOINTS, npad), lambda g: (0, 0)),
            ],
            out_specs=pl.BlockSpec((3, tb, npad), lambda g: (0, g, 0)),
        ),
        compiler_params=pltpu.CompilerParams(
            dimension_semantics=("parallel",),
            vmem_limit_bytes=32 * 1024 * 1024),
        cost_estimate=pl.CostEstimate(flops=int(flops), transcendentals=0,
                                      bytes_accessed=int(bytes_accessed)),
    )(pose_aug, a2d, posedirs_fused, weights_pad)


# ------------------------------- JAX glue ------------------------------------
def aa_to_rotmat(aa):
    """Rodrigues: (..., 3) axis-angle -> (..., 3, 3) rotation matrix."""
    theta = jnp.sqrt(jnp.sum(aa * aa, axis=-1, keepdims=True) + 1e-12)
    axis = aa / theta
    x, y, z = axis[..., 0], axis[..., 1], axis[..., 2]
    t = theta[..., 0]
    c, s = jnp.cos(t), jnp.sin(t)
    C = 1.0 - c
    r0 = jnp.stack([c + x * x * C, x * y * C - z * s, x * z * C + y * s], axis=-1)
    r1 = jnp.stack([y * x * C + z * s, c + y * y * C, y * z * C - x * s], axis=-1)
    r2 = jnp.stack([z * x * C - y * s, z * y * C + x * s, c + z * z * C], axis=-1)
    return jnp.stack([r0, r1, r2], axis=-2)


def batch_rigid_transform(rotmats, joints_rest):
    """Forward kinematics over the MANO tree, level-wise (depth 3).

    rotmats: (bs, 16, 3, 3); joints_rest: (16, 3)
    Returns posed_joints (bs, 16, 3) and relative transforms A (bs, 16, 4, 4).
    """
    bs = rotmats.shape[0]
    parents = jnp.array(MANO_PARENTS[1:])
    rel = jnp.concatenate(
        [joints_rest[:1], joints_rest[1:] - joints_rest[parents]], axis=0)   # (16, 3)

    top = jnp.concatenate(
        [rotmats, jnp.broadcast_to(rel[None, :, :, None], (bs, N_JOINTS, 3, 1))], axis=-1)
    bot = jnp.broadcast_to(
        jnp.array([0.0, 0.0, 0.0, 1.0], jnp.float32).reshape(1, 1, 1, 4),
        (bs, N_JOINTS, 1, 4))
    local = jnp.concatenate([top, bot], axis=-2)                             # (bs, 16, 4, 4)

    # Tree levels: root -> proximal -> middle -> distal (each finger in parallel).
    lvl1 = jnp.array([1, 4, 7, 10, 13])
    lvl2 = jnp.array([2, 5, 8, 11, 14])
    lvl3 = jnp.array([3, 6, 9, 12, 15])
    G0 = local[:, 0]                                                         # (bs, 4, 4)
    G1 = jnp.einsum('bij,bnjk->bnik', G0, local[:, lvl1])                    # (bs, 5, 4, 4)
    G2 = jnp.einsum('bnij,bnjk->bnik', G1, local[:, lvl2])
    G3 = jnp.einsum('bnij,bnjk->bnik', G2, local[:, lvl3])
    G_stacked = jnp.concatenate([G0[:, None], G1, G2, G3], axis=1)

    perm = (0, 1, 4, 7, 10, 13, 2, 5, 8, 11, 14, 3, 6, 9, 12, 15)
    inv_perm = [0] * N_JOINTS
    for pos, j in enumerate(perm):
        inv_perm[j] = pos
    G = G_stacked[:, jnp.array(inv_perm)]                                    # (bs, 16, 4, 4)

    posed_joints = G[:, :, :3, 3]
    corr = jnp.einsum('bjxy,jy->bjx', G[:, :, :3, :3], joints_rest)
    A = G.at[:, :, :3, 3].add(-corr)                                         # remove rest pose
    return posed_joints, A


def init_mano_params(key):
    """Deterministic synthetic MANO assets with the real shapes (plus kernel layouts)."""
    k1, k2, k3, k4 = jax.random.split(key, 4)
    v_template = jax.random.normal(k1, (N_VERTS, 3), jnp.float32) * 0.01
    joints_rest = jax.random.normal(k2, (N_JOINTS, 3), jnp.float32) * 0.02
    posedirs = jax.random.normal(k3, (3, POSE_FEAT, N_VERTS), jnp.float32) * 1e-3
    w_logits = jax.random.normal(k4, (N_VERTS, N_JOINTS), jnp.float32)
    weights = jax.nn.softmax(w_logits, axis=-1)
    # The hand_tsl fold in the kernel path requires sum_j W[v,j] == 1 per vertex
    # (true for softmax here and for the real MANO weights).
    assert bool(jnp.allclose(weights.sum(-1), 1.0, atol=1e-5))

    pad_v = N_VERTS_PAD - N_VERTS
    posedirs_pad = jnp.pad(posedirs, ((0, 0), (0, 0), (0, pad_v)))           # (3, 135, 896)
    v_template_pad = jnp.pad(v_template.T, ((0, 0), (0, pad_v)))             # (3, 896)

    # Fused bf16 pose-blend matrix: [posedirs ; vtpl_hi ; vtpl_lo ; zeros].
    # The template row is split into bf16 hi + residual so its quantization
    # error (~1e-7) stays far below the f32 template it replaces.
    pd_rows = jnp.transpose(posedirs_pad, (1, 0, 2)).reshape(
        POSE_FEAT, 3 * N_VERTS_PAD)                                          # (135, 2688)
    vtpl_row = v_template_pad.reshape(1, 3 * N_VERTS_PAD)                    # (1, 2688)
    vtpl_hi = vtpl_row.astype(jnp.bfloat16)
    vtpl_lo = (vtpl_row - vtpl_hi.astype(jnp.float32)).astype(jnp.bfloat16)
    zeros = jnp.zeros((KDIM - POSE_FEAT - 2, 3 * N_VERTS_PAD), jnp.bfloat16)
    posedirs_fused = jnp.concatenate(
        [pd_rows.astype(jnp.bfloat16), vtpl_hi, vtpl_lo, zeros], axis=0)     # (144, 2688)

    weights_pad = jnp.pad(weights.T, ((0, 0), (0, pad_v)))                   # (16, 896)

    return {
        # kernel operands (lane-padded, fused layouts)
        'posedirs_fused': posedirs_fused,           # (144, 2688) bf16
        'weights_pad': weights_pad,                 # (16, 896) f32
        # raw assets (FK + pure-JAX reference)
        'joints_rest': joints_rest,                 # (16, 3)
        'posedirs': posedirs,                       # (3, 135, 778)
        'v_template_t': jnp.asarray(v_template.T),  # (3, 778)
        'weights_t': jnp.asarray(weights.T),        # (16, 778)
    }


def _round_up(x, m):
    return -(-x // m) * m


def _pick_tb(bs):
    """Batch block: multiple of 16, capped at 256 (v6e/v7x MXU height), minimal padding."""
    cap = 256
    bsr = _round_up(bs, 16)
    n = max(1, -(-bsr // cap))
    try:
        # v7x has two TensorCores: keep >= 2 grid steps so the "parallel" axis shards.
        if bs >= 32 and "v7" in jax.devices()[0].device_kind.lower():
            n = max(n, 2)
    except Exception:
        pass
    return _round_up(-(-bsr // n), 16)


@jax.jit
def null_refine_forward(hand_pose, hand_tsl, params):
    """NullRefine.forward: {'hand_verts', 'joints', 'hand_pose', 'hand_tsl'}."""
    bs = hand_pose.shape[0]
    rotmats = aa_to_rotmat(hand_pose.reshape(bs, N_JOINTS, 3))      # (bs, 16, 3, 3)
    # (hand_rotmat is computed in the torch module but never returned/used.)

    eye = jnp.eye(3, dtype=jnp.float32)
    pose_feat = (rotmats[:, 1:] - eye).reshape(bs, POSE_FEAT)       # (bs, 135)

    posed_joints, A = batch_rigid_transform(rotmats, params['joints_rest'])

    # Fold the global translation into the per-joint transforms: LBS weights sum
    # to 1 per vertex, so this is exact and removes tsl from the kernel epilogue.
    A_tsl = A.at[:, :, :3, 3].add(hand_tsl.astype(jnp.float32)[:, None, :])

    # ---- batch blocking / kernel-layout plumbing ----
    tb = _pick_tb(bs)
    n_blocks = -(-bs // tb)
    bs_pad = n_blocks * tb
    pad_b = bs_pad - bs

    # Pose features augmented with two constant-1 columns (template hi/lo rows)
    # and zero padding to KDIM, cast to bf16 for the MXU.
    ones = jnp.ones((bs, 1), jnp.float32)
    kpad = jnp.zeros((bs, KDIM - POSE_FEAT - 2), jnp.float32)
    pose_aug = jnp.concatenate([pose_feat, ones, ones, kpad], axis=1)        # (bs, 144)
    pose_aug = jnp.pad(pose_aug, ((0, pad_b), (0, 0))).astype(jnp.bfloat16)

    # Keep only the top 3 rows (12 row-major entries) of each 4x4 and arrange
    # entry-major within each batch block:
    #   a2d[g*12*tb + k*tb + b, j] = A_tsl[g*tb + b, j].rows3.flat[k]
    a_rows = A_tsl[:, :, :3, :].reshape(bs, N_JOINTS, N_TROWS)
    a_rows = jnp.pad(a_rows, ((0, pad_b), (0, 0), (0, 0)))
    a2d = (a_rows.reshape(n_blocks, tb, N_JOINTS, N_TROWS)
           .transpose(0, 3, 1, 2)
           .reshape(n_blocks * N_TROWS * tb, N_JOINTS))

    verts_cm = _mano_lbs_pallas(pose_aug, a2d,
                                params['posedirs_fused'],
                                params['weights_pad'],
                                tb=tb)                               # (3, bs_pad, 896)

    # TODO(synk): this (bs, 778, 3) relayout is lane-hostile (minor dim 3); a
    # downstream consumer that accepts (3, bs, 778) should take
    # verts_cm[:, :bs, :N_VERTS] directly and skip the transpose.
    hand_verts = jnp.transpose(verts_cm[:, :bs, :N_VERTS], (1, 2, 0))        # (bs, 778, 3)

    joints16 = posed_joints + hand_tsl[:, None, :]
    tips = hand_verts[:, jnp.array(TIP_IDX), :]
    # TODO(synk): manotorch reorders its 21 joints into a canonical skeleton order;
    # here joints = [16 MANO joints, 5 fingertips] since the assets are synthetic.
    joints = jnp.concatenate([joints16, tips], axis=1)                       # (bs, 21, 3)

    return {
        'hand_verts': hand_verts,
        'joints': joints,
        'hand_pose': hand_pose,
        'hand_tsl': hand_tsl,
    }


def _lbs_reference(pose_feat, a_flat, tsl, params):
    """Pure-JAX f32 reference for the kernel math (verification only)."""
    bs = pose_feat.shape[0]
    off = jnp.einsum('bk,dkv->bdv', pose_feat, params['posedirs'])
    v_posed = params['v_template_t'][None] + off                             # (bs, 3, 778)
    W = params['weights_t'].T                                                # (778, 16)
    T = jnp.einsum('vj,bjk->bvk', W, a_flat).reshape(bs, N_VERTS, 4, 4)
    vh = jnp.concatenate(
        [jnp.transpose(v_posed, (0, 2, 1)),
         jnp.ones((bs, N_VERTS, 1), jnp.float32)], axis=-1)
    verts = jnp.einsum('bvij,bvj->bvi', T, vh)[..., :3] + tsl[:, None, :]
    return verts


if __name__ == "__main__":
    key = jax.random.PRNGKey(0)
    k_param, k_pose, k_tsl = jax.random.split(key, 3)

    params = init_mano_params(k_param)

    bs = 2
    hand_pose = jax.random.normal(k_pose, (bs, N_JOINTS * 3), jnp.float32) * 0.3
    hand_tsl = jax.random.normal(k_tsl, (bs, 3), jnp.float32) * 0.1

    out = null_refine_forward(hand_pose, hand_tsl, params)
    jax.block_until_ready(out)

    assert out['hand_verts'].shape == (bs, N_VERTS, 3)
    assert out['joints'].shape == (bs, 21, 3)
    assert out['hand_pose'].shape == (bs, N_JOINTS * 3)
    assert out['hand_tsl'].shape == (bs, 3)

    # Cross-check the Pallas kernel against a pure-JAX f32 LBS reference.
    rotmats = aa_to_rotmat(hand_pose.reshape(bs, N_JOINTS, 3))
    pose_feat = (rotmats[:, 1:] - jnp.eye(3, dtype=jnp.float32)).reshape(bs, POSE_FEAT)
    _, A = batch_rigid_transform(rotmats, params['joints_rest'])
    ref_verts = _lbs_reference(pose_feat, A.reshape(bs, N_JOINTS, 16),
                               hand_tsl, params)
    assert jnp.allclose(out['hand_verts'], ref_verts, atol=1e-4, rtol=1e-4)

    print("KERNEL_OK")
</pallas_src>

<mosaic_0001>
module attributes {stable_mosaic.version = 11 : i64} {
  func.func @_mano_lbs_kernel(%arg0: i32, %arg1: memref<16x144xbf16, #tpu.memory_space<vmem>>, %arg2: memref<192x16xf32, #tpu.memory_space<vmem>>, %arg3: memref<144x2688xbf16, #tpu.memory_space<vmem>>, %arg4: memref<16x896xf32, #tpu.memory_space<vmem>>, %arg5: memref<3x16x896xf32, #tpu.memory_space<vmem>>) attributes {dimension_semantics = [#tpu.dimension_semantics<parallel>], iteration_bounds = array<i64: 1>, scalar_prefetch = 0 : i64, scratch_operands = 0 : i64, tpu.core_type = #tpu.core_type<tc>, window_params = [{transform_indices = @transform_0, window_bounds = array<i64: 16, 144>}, {transform_indices = @transform_1, window_bounds = array<i64: 192, 16>}, {pipeline_mode = #tpu.pipeline_mode<synchronous>, transform_indices = @transform_2, window_bounds = array<i64: 144, 2688>}, {pipeline_mode = #tpu.pipeline_mode<synchronous>, transform_indices = @transform_3, window_bounds = array<i64: 16, 896>}, {transform_indices = @transform_4, window_bounds = array<i64: 3, 16, 896>}]} {
    %c0 = arith.constant 0 : index
    %c0_0 = arith.constant 0 : index
    %0 = vector.load %arg1[%c0, %c0_0] : memref<16x144xbf16, #tpu.memory_space<vmem>>, vector<16x144xbf16>
    %c0_1 = arith.constant 0 : index
    %c0_2 = arith.constant 0 : index
    %1 = vector.load %arg3[%c0_1, %c0_2] : memref<144x2688xbf16, #tpu.memory_space<vmem>>, vector<144x2688xbf16>
    %cst = arith.constant dense<0.000000e+00> : vector<16x2688xf32>
    %2 = tpu.matmul %0, %1, %cst {dimension_numbers = #tpu.dot_dimension_numbers<[1], [0], [0], [1], [0, 0, 1, 1], [], []>} : vector<16x144xbf16>, vector<144x2688xbf16>, vector<16x2688xf32> -> vector<16x2688xf32>
    %3 = vector.extract_strided_slice %2 {offsets = [0, 0], sizes = [16, 896], strides = [1, 1]} : vector<16x2688xf32> to vector<16x896xf32>
    %4 = vector.extract_strided_slice %2 {offsets = [0, 896], sizes = [16, 896], strides = [1, 1]} : vector<16x2688xf32> to vector<16x896xf32>
    %5 = vector.extract_strided_slice %2 {offsets = [0, 1792], sizes = [16, 896], strides = [1, 1]} : vector<16x2688xf32> to vector<16x896xf32>
    %c0_3 = arith.constant 0 : index
    %c0_4 = arith.constant 0 : index
    %6 = vector.load %arg4[%c0_3, %c0_4] : memref<16x896xf32, #tpu.memory_space<vmem>>, vector<16x896xf32>
    %c0_5 = arith.constant 0 : index
    %c0_6 = arith.constant 0 : index
    %7 = vector.load %arg2[%c0_5, %c0_6] : memref<192x16xf32, #tpu.memory_space<vmem>>, vector<64x16xf32>
    %cst_7 = arith.constant dense<0.000000e+00> : vector<64x896xf32>
    %8 = tpu.matmul %7, %6, %cst_7 {dimension_numbers = #tpu.dot_dimension_numbers<[1], [0], [0], [1], [0, 0, 1, 1], [], []>} : vector<64x16xf32>, vector<16x896xf32>, vector<64x896xf32> -> vector<64x896xf32>
    %9 = vector.extract_strided_slice %8 {offsets = [0, 0], sizes = [16, 896], strides = [1, 1]} : vector<64x896xf32> to vector<16x896xf32>
    %10 = arith.mulf %9, %3 : vector<16x896xf32>
    %11 = vector.extract_strided_slice %8 {offsets = [16, 0], sizes = [16, 896], strides = [1, 1]} : vector<64x896xf32> to vector<16x896xf32>
    %12 = arith.mulf %11, %4 : vector<16x896xf32>
    %13 = arith.addf %10, %12 : vector<16x896xf32>
    %14 = vector.extract_strided_slice %8 {offsets = [32, 0], sizes = [16, 896], strides = [1, 1]} : vector<64x896xf32> to vector<16x896xf32>
    %15 = arith.mulf %14, %5 : vector<16x896xf32>
    %16 = arith.addf %13, %15 : vector<16x896xf32>
    %17 = vector.extract_strided_slice %8 {offsets = [48, 0], sizes = [16, 896], strides = [1, 1]} : vector<64x896xf32> to vector<16x896xf32>
    %18 = arith.addf %16, %17 : vector<16x896xf32>
    %c0_8 = arith.constant 0 : index
    %c0_9 = arith.constant 0 : index
    %c0_10 = arith.constant 0 : index
    %19 = vector.load %arg5[%c0_8, %c0_9, %c0_10] : memref<3x16x896xf32, #tpu.memory_space<vmem>>, vector<1x16x896xf32>
    %20 = vector.shape_cast %19 : vector<1x16x896xf32> to vector<16x896xf32>
    %21 = vector.shape_cast %18 : vector<16x896xf32> to vector<1x16x896xf32>
    tpu.vector_store %arg5[%c0_8, %c0_9, %c0_10], %21 {strides = array<i32>} : memref<3x16x896xf32, #tpu.memory_space<vmem>>, vector<1x16x896xf32>,
    %c64 = arith.constant 64 : index
    %c0_11 = arith.constant 0 : index
    %22 = vector.load %arg2[%c64, %c0_11] : memref<192x16xf32, #tpu.memory_space<vmem>>, vector<64x16xf32>
    %cst_12 = arith.constant dense<0.000000e+00> : vector<64x896xf32>
    %23 = tpu.matmul %22, %6, %cst_12 {dimension_numbers = #tpu.dot_dimension_numbers<[1], [0], [0], [1], [0, 0, 1, 1], [], []>} : vector<64x16xf32>, vector<16x896xf32>, vector<64x896xf32> -> vector<64x896xf32>
    %24 = vector.extract_strided_slice %23 {offsets = [0, 0], sizes = [16, 896], strides = [1, 1]} : vector<64x896xf32> to vector<16x896xf32>
    %25 = arith.mulf %24, %3 : vector<16x896xf32>
    %26 = vector.extract_strided_slice %23 {offsets = [16, 0], sizes = [16, 896], strides = [1, 1]} : vector<64x896xf32> to vector<16x896xf32>
    %27 = arith.mulf %26, %4 : vector<16x896xf32>
    %28 = arith.addf %25, %27 : vector<16x896xf32>
    %29 = vector.extract_strided_slice %23 {offsets = [32, 0], sizes = [16, 896], strides = [1, 1]} : vector<64x896xf32> to vector<16x896xf32>
    %30 = arith.mulf %29, %5 : vector<16x896xf32>
    %31 = arith.addf %28, %30 : vector<16x896xf32>
    %32 = vector.extract_strided_slice %23 {offsets = [48, 0], sizes = [16, 896], strides = [1, 1]} : vector<64x896xf32> to vector<16x896xf32>
    %33 = arith.addf %31, %32 : vector<16x896xf32>
    %c1 = arith.constant 1 : index
    %c0_13 = arith.constant 0 : index
    %c0_14 = arith.constant 0 : index
    %34 = vector.load %arg5[%c1, %c0_13, %c0_14] : memref<3x16x896xf32, #tpu.memory_space<vmem>>, vector<1x16x896xf32>
    %35 = vector.shape_cast %34 : vector<1x16x896xf32> to vector<16x896xf32>
    %36 = vector.shape_cast %33 : vector<16x896xf32> to vector<1x16x896xf32>
    tpu.vector_store %arg5[%c1, %c0_13, %c0_14], %36 {strides = array<i32>} : memref<3x16x896xf32, #tpu.memory_space<vmem>>, vector<1x16x896xf32>,
    %c128 = arith.constant 128 : index
    %c0_15 = arith.constant 0 : index
    %37 = vector.load %arg2[%c128, %c0_15] : memref<192x16xf32, #tpu.memory_space<vmem>>, vector<64x16xf32>
    %cst_16 = arith.constant dense<0.000000e+00> : vector<64x896xf32>
    %38 = tpu.matmul %37, %6, %cst_16 {dimension_numbers = #tpu.dot_dimension_numbers<[1], [0], [0], [1], [0, 0, 1, 1], [], []>} : vector<64x16xf32>, vector<16x896xf32>, vector<64x896xf32> -> vector<64x896xf32>
    %39 = vector.extract_strided_slice %38 {offsets = [0, 0], sizes = [16, 896], strides = [1, 1]} : vector<64x896xf32> to vector<16x896xf32>
    %40 = arith.mulf %39, %3 : vector<16x896xf32>
    %41 = vector.extract_strided_slice %38 {offsets = [16, 0], sizes = [16, 896], strides = [1, 1]} : vector<64x896xf32> to vector<16x896xf32>
    %42 = arith.mulf %41, %4 : vector<16x896xf32>
    %43 = arith.addf %40, %42 : vector<16x896xf32>
    %44 = vector.extract_strided_slice %38 {offsets = [32, 0], sizes = [16, 896], strides = [1, 1]} : vector<64x896xf32> to vector<16x896xf32>
    %45 = arith.mulf %44, %5 : vector<16x896xf32>
    %46 = arith.addf %43, %45 : vector<16x896xf32>
    %47 = vector.extract_strided_slice %38 {offsets = [48, 0], sizes = [16, 896], strides = [1, 1]} : vector<64x896xf32> to vector<16x896xf32>
    %48 = arith.addf %46, %47 : vector<16x896xf32>
    %c2 = arith.constant 2 : index
    %c0_17 = arith.constant 0 : index
    %c0_18 = arith.constant 0 : index
    %49 = vector.load %arg5[%c2, %c0_17, %c0_18] : memref<3x16x896xf32, #tpu.memory_space<vmem>>, vector<1x16x896xf32>
    %50 = vector.shape_cast %49 : vector<1x16x896xf32> to vector<16x896xf32>
    %51 = vector.shape_cast %48 : vector<16x896xf32> to vector<1x16x896xf32>
    tpu.vector_store %arg5[%c2, %c0_17, %c0_18], %51 {strides = array<i32>} : memref<3x16x896xf32, #tpu.memory_space<vmem>>, vector<1x16x896xf32>,
    return
  }
  func.func @transform_0(%arg0: i32) -> (i32, i32) {
    %c0_i32 = arith.constant 0 : i32
    %c0_i32_0 = arith.constant 0 : i32
    return %arg0, %c0_i32 : i32, i32
  }
  func.func @transform_1(%arg0: i32) -> (i32, i32) {
    %c0_i32 = arith.constant 0 : i32
    %c0_i32_0 = arith.constant 0 : i32
    return %arg0, %c0_i32 : i32, i32
  }
  func.func @transform_2(%arg0: i32) -> (i32, i32) {
    %c0_i32 = arith.constant 0 : i32
    %c0_i32_0 = arith.constant 0 : i32
    %c0_i32_1 = arith.constant 0 : i32
    return %c0_i32, %c0_i32_0 : i32, i32
  }
  func.func @transform_3(%arg0: i32) -> (i32, i32) {
    %c0_i32 = arith.constant 0 : i32
    %c0_i32_0 = arith.constant 0 : i32
    %c0_i32_1 = arith.constant 0 : i32
    return %c0_i32, %c0_i32_0 : i32, i32
  }
  func.func @transform_4(%arg0: i32) -> (i32, i32, i32) {
    %c0_i32 = arith.constant 0 : i32
    %c0_i32_0 = arith.constant 0 : i32
    %c0_i32_1 = arith.constant 0 : i32
    return %c0_i32, %arg0, %c0_i32_0 : i32, i32, i32
  }
}

</mosaic_0001>

<llo_original>
// kernel: null_refine_forward.1
$region0: #{null_refine_forward.1}
  #allocation0 [shape = 'u32[]', space=smem, size = 0x4, offset = 0x4, fixed_abs, tag = 'smem constant byte address 0x4 - core index']
  #allocation1 [shape = 'u32[144,128]{1,0:T(1,128)}', space=vmem, size = 0x12000, scoped, tag = 'internal scratch']
  %s0 = inlined_call_operand.vmem [shape: bf16[16,144], index: 0, kind: input, shape index: {}]
  %s1 = inlined_call_operand.vmem [shape: f32[192,16], index: 1, kind: input, shape index: {}]
  %s2 = inlined_call_operand.vmem [shape: bf16[144,2688], index: 2, kind: input, shape index: {}]
  %s3 = inlined_call_operand.vmem [shape: f32[16,896], index: 3, kind: input, shape index: {}]
  %s4 = inlined_call_operand.vmem [shape: f32[3,16,896], index: 4, kind: output, shape index: {}]
  %s5 = sld [smem:[#allocation0]]
  $region26: #{null_refine_forward.1} parent=0
    _
  %s7 = ssub.s32 1, %s5
  %s8 = scalar_select 0, %s7, %s5
  // Predicated region
  $region2: #{null_refine_forward.1} parent=0 // pred_check
    _
  $region3: #{null_refine_forward.1} parent=0 // pred_check_branch
    %10 = sbr.rel (0) target = $region5
  $region4: #{null_refine_forward.1} parent=0 // pred_region
    _
  $region5: #{null_refine_forward.1} parent=0 // pred_fallthru
    _
  // Predicated region
  $region6: #{null_refine_forward.1} parent=0 // pred_check
    _
  $region7: #{null_refine_forward.1} parent=0 // pred_check_branch
    %12 = sbr.rel (0) target = $region9
  $region8: #{null_refine_forward.1} parent=0 // pred_region
    _
  $region9: #{null_refine_forward.1} parent=0 // pred_fallthru
    _
  // Predicated region
  $region10: #{null_refine_forward.1} parent=0 // pred_check
    _
  $region11: #{null_refine_forward.1} parent=0 // pred_check_branch
    %14 = sbr.rel (0) target = $region13
  $region12: #{null_refine_forward.1} parent=0 // pred_region
    _
  $region13: #{null_refine_forward.1} parent=0 // pred_fallthru
    _
  // Predicated region
  $region14: #{null_refine_forward.1} parent=0 // pred_check
    _
  $region15: #{null_refine_forward.1} parent=0 // pred_check_branch
    %16 = sbr.rel (0) target = $region17
  $region16: #{null_refine_forward.1} parent=0 // pred_region
    _
  $region17: #{null_refine_forward.1} parent=0 // pred_fallthru
    _
  %v18 = vld [vmem:[%s0] sm:$0xff]
  %v19 = vld [vmem:[%s0 + $0x8] sm:$0xff]
  %v20 = vld [vmem:[%s2] sm:$0xff]
  %v21 = vld [vmem:[%s2 + $0x8] sm:$0xff]
  %v22 = vld [vmem:[%s2 + $0x10] sm:$0xff]
  %v23 = vld [vmem:[%s2 + $0x18] sm:$0xff]
  %v24 = vld [vmem:[%s2 + $0x20] sm:$0xff]
  %v25 = vld [vmem:[%s2 + $0x28] sm:$0xff]
  %v26 = vld [vmem:[%s2 + $0x30] sm:$0xff]
  %v27 = vld [vmem:[%s2 + $0x38] sm:$0xff]
  %v28 = vld [vmem:[%s2 + $0x40] sm:$0xff]
  %v29 = vld [vmem:[%s2 + $0x48] sm:$0xff]
  %v30 = vld [vmem:[%s2 + $0x50] sm:$0xf]
  %v31 = vld [vmem:[%s2 + $0x54] sm:$0xff]
  %v32 = vld [vmem:[%s2 + $0x5c] sm:$0xff]
  %v33 = vld [vmem:[%s2 + $0x64] sm:$0xff]
  %v34 = vld [vmem:[%s2 + $0x6c] sm:$0xff]
  %v35 = vld [vmem:[%s2 + $0x74] sm:$0xff]
  %v36 = vld [vmem:[%s2 + $0x7c] sm:$0xff]
  %v37 = vld [vmem:[%s2 + $0x84] sm:$0xff]
  %v38 = vld [vmem:[%s2 + $0x8c] sm:$0xff]
  %v39 = vld [vmem:[%s2 + $0x94] sm:$0xff]
  %v40 = vld [vmem:[%s2 + $0x9c] sm:$0xff]
  %v41 = vld [vmem:[%s2 + $0xa4] sm:$0xf]
  %v42 = vld [vmem:[%s2 + $0xa8] sm:$0xff]
  %v43 = vld [vmem:[%s2 + $0xb0] sm:$0xff]
  %v44 = vld [vmem:[%s2 + $0xb8] sm:$0xff]
  %v45 = vld [vmem:[%s2 + $0xc0] sm:$0xff]
  %v46 = vld [vmem:[%s2 + $0xc8] sm:$0xff]
  %v47 = vld [vmem:[%s2 + $0xd0] sm:$0xff]
  %v48 = vld [vmem:[%s2 + $0xd8] sm:$0xff]
  %v49 = vld [vmem:[%s2 + $0xe0] sm:$0xff]
  %v50 = vld [vmem:[%s2 + $0xe8] sm:$0xff]
  %v51 = vld [vmem:[%s2 + $0xf0] sm:$0xff]
  %v52 = vld [vmem:[%s2 + $0xf8] sm:$0xf]
  %v53 = vld [vmem:[%s2 + $0xfc] sm:$0xff]
  %v54 = vld [vmem:[%s2 + $0x104] sm:$0xff]
  %v55 = vld [vmem:[%s2 + $0x10c] sm:$0xff]
  %v56 = vld [vmem:[%s2 + $0x114] sm:$0xff]
  %v57 = vld [vmem:[%s2 + $0x11c] sm:$0xff]
  %v58 = vld [vmem:[%s2 + $0x124] sm:$0xff]
  %v59 = vld [vmem:[%s2 + $0x12c] sm:$0xff]
  %v60 = vld [vmem:[%s2 + $0x134] sm:$0xff]
  %v61 = vld [vmem:[%s2 + $0x13c] sm:$0xff]
  %v62 = vld [vmem:[%s2 + $0x144] sm:$0xff]
  %v63 = vld [vmem:[%s2 + $0x14c] sm:$0xf]
  %v64 = vld [vmem:[%s2 + $0x150] sm:$0xff]
  %v65 = vld [vmem:[%s2 + $0x158] sm:$0xff]
  %v66 = vld [vmem:[%s2 + $0x160] sm:$0xff]
  %v67 = vld [vmem:[%s2 + $0x168] sm:$0xff]
  %v68 = vld [vmem:[%s2 + $0x170] sm:$0xff]
  %v69 = vld [vmem:[%s2 + $0x178] sm:$0xff]
  %v70 = vld [vmem:[%s2 + $0x180] sm:$0xff]
  %v71 = vld [vmem:[%s2 + $0x188] sm:$0xff]
  %v72 = vld [vmem:[%s2 + $0x190] sm:$0xff]
  %v73 = vld [vmem:[%s2 + $0x198] sm:$0xff]
  %v74 = vld [vmem:[%s2 + $0x1a0] sm:$0xf]
  %v75 = vld [vmem:[%s2 + $0x1a4] sm:$0xff]
  %v76 = vld [vmem:[%s2 + $0x1ac] sm:$0xff]
  %v77 = vld [vmem:[%s2 + $0x1b4] sm:$0xff]
  %v78 = vld [vmem:[%s2 + $0x1bc] sm:$0xff]
  %v79 = vld [vmem:[%s2 + $0x1c4] sm:$0xff]
  %v80 = vld [vmem:[%s2 + $0x1cc] sm:$0xff]
  %v81 = vld [vmem:[%s2 + $0x1d4] sm:$0xff]
  %v82 = vld [vmem:[%s2 + $0x1dc] sm:$0xff]
  %v83 = vld [vmem:[%s2 + $0x1e4] sm:$0xff]
  %v84 = vld [vmem:[%s2 + $0x1ec] sm:$0xff]
  %v85 = vld [vmem:[%s2 + $0x1f4] sm:$0xf]
  %v86 = vld [vmem:[%s2 + $0x1f8] sm:$0xff]
  %v87 = vld [vmem:[%s2 + $0x200] sm:$0xff]
  %v88 = vld [vmem:[%s2 + $0x208] sm:$0xff]
  %v89 = vld [vmem:[%s2 + $0x210] sm:$0xff]
  %v90 = vld [vmem:[%s2 + $0x218] sm:$0xff]
  %v91 = vld [vmem:[%s2 + $0x220] sm:$0xff]
  %v92 = vld [vmem:[%s2 + $0x228] sm:$0xff]
  %v93 = vld [vmem:[%s2 + $0x230] sm:$0xff]
  %v94 = vld [vmem:[%s2 + $0x238] sm:$0xff]
  %v95 = vld [vmem:[%s2 + $0x240] sm:$0xff]
  %v96 = vld [vmem:[%s2 + $0x248] sm:$0xf]
  %v97 = vld [vmem:[%s2 + $0x24c] sm:$0xff]
  %v98 = vld [vmem:[%s2 + $0x254] sm:$0xff]
  %v99 = vld [vmem:[%s2 + $0x25c] sm:$0xff]
  %v100 = vld [vmem:[%s2 + $0x264] sm:$0xff]
  %v101 = vld [vmem:[%s2 + $0x26c] sm:$0xff]
  %v102 = vld [vmem:[%s2 + $0x274] sm:$0xff]
  %v103 = vld [vmem:[%s2 + $0x27c] sm:$0xff]
  %v104 = vld [vmem:[%s2 + $0x284] sm:$0xff]
  %v105 = vld [vmem:[%s2 + $0x28c] sm:$0xff]
  %v106 = vld [vmem:[%s2 + $0x294] sm:$0xff]
  %v107 = vld [vmem:[%s2 + $0x29c] sm:$0xf]
  %v108 = vld [vmem:[%s2 + $0x2a0] sm:$0xff]
  %v109 = vld [vmem:[%s2 + $0x2a8] sm:$0xff]
  %v110 = vld [vmem:[%s2 + $0x2b0] sm:$0xff]
  %v111 = vld [vmem:[%s2 + $0x2b8] sm:$0xff]
  %v112 = vld [vmem:[%s2 + $0x2c0] sm:$0xff]
  %v113 = vld [vmem:[%s2 + $0x2c8] sm:$0xff]
  %v114 = vld [vmem:[%s2 + $0x2d0] sm:$0xff]
  %v115 = vld [vmem:[%s2 + $0x2d8] sm:$0xff]
  %v116 = vld [vmem:[%s2 + $0x2e0] sm:$0xff]
  %v117 = vld [vmem:[%s2 + $0x2e8] sm:$0xff]
  %v118 = vld [vmem:[%s2 + $0x2f0] sm:$0xf]
  %v119 = vld [vmem:[%s2 + $0x2f4] sm:$0xff]
  %v120 = vld [vmem:[%s2 + $0x2fc] sm:$0xff]
  %v121 = vld [vmem:[%s2 + $0x304] sm:$0xff]
  %v122 = vld [vmem:[%s2 + $0x30c] sm:$0xff]
  %v123 = vld [vmem:[%s2 + $0x314] sm:$0xff]
  %v124 = vld [vmem:[%s2 + $0x31c] sm:$0xff]
  %v125 = vld [vmem:[%s2 + $0x324] sm:$0xff]
  %v126 = vld [vmem:[%s2 + $0x32c] sm:$0xff]
  %v127 = vld [vmem:[%s2 + $0x334] sm:$0xff]
  %v128 = vld [vmem:[%s2 + $0x33c] sm:$0xff]
  %v129 = vld [vmem:[%s2 + $0x344] sm:$0xf]
  %v130 = vld [vmem:[%s2 + $0x348] sm:$0xff]
  %v131 = vld [vmem:[%s2 + $0x350] sm:$0xff]
  %v132 = vld [vmem:[%s2 + $0x358] sm:$0xff]
  %v133 = vld [vmem:[%s2 + $0x360] sm:$0xff]
  %v134 = vld [vmem:[%s2 + $0x368] sm:$0xff]
  %v135 = vld [vmem:[%s2 + $0x370] sm:$0xff]
  %v136 = vld [vmem:[%s2 + $0x378] sm:$0xff]
  %v137 = vld [vmem:[%s2 + $0x380] sm:$0xff]
  %v138 = vld [vmem:[%s2 + $0x388] sm:$0xff]
  %v139 = vld [vmem:[%s2 + $0x390] sm:$0xff]
  %v140 = vld [vmem:[%s2 + $0x398] sm:$0xf]
  %v141 = vld [vmem:[%s2 + $0x39c] sm:$0xff]
  %v142 = vld [vmem:[%s2 + $0x3a4] sm:$0xff]
  %v143 = vld [vmem:[%s2 + $0x3ac] sm:$0xff]
  %v144 = vld [vmem:[%s2 + $0x3b4] sm:$0xff]
  %v145 = vld [vmem:[%s2 + $0x3bc] sm:$0xff]
  %v146 = vld [vmem:[%s2 + $0x3c4] sm:$0xff]
  %v147 = vld [vmem:[%s2 + $0x3cc] sm:$0xff]
  %v148 = vld [vmem:[%s2 + $0x3d4] sm:$0xff]
  %v149 = vld [vmem:[%s2 + $0x3dc] sm:$0xff]
  %v150 = vld [vmem:[%s2 + $0x3e4] sm:$0xff]
  %v151 = vld [vmem:[%s2 + $0x3ec] sm:$0xf]
  %v152 = vld [vmem:[%s2 + $0x3f0] sm:$0xff]
  %v153 = vld [vmem:[%s2 + $0x3f8] sm:$0xff]
  %v154 = vld [vmem:[%s2 + $0x400] sm:$0xff]
  %v155 = vld [vmem:[%s2 + $0x408] sm:$0xff]
  %v156 = vld [vmem:[%s2 + $0x410] sm:$0xff]
  %v157 = vld [vmem:[%s2 + $0x418] sm:$0xff]
  %v158 = vld [vmem:[%s2 + $0x420] sm:$0xff]
  %v159 = vld [vmem:[%s2 + $0x428] sm:$0xff]
  %v160 = vld [vmem:[%s2 + $0x430] sm:$0xff]
  %v161 = vld [vmem:[%s2 + $0x438] sm:$0xff]
  %v162 = vld [vmem:[%s2 + $0x440] sm:$0xf]
  %v163 = vld [vmem:[%s2 + $0x444] sm:$0xff]
  %v164 = vld [vmem:[%s2 + $0x44c] sm:$0xff]
  %v165 = vld [vmem:[%s2 + $0x454] sm:$0xff]
  %v166 = vld [vmem:[%s2 + $0x45c] sm:$0xff]
  %v167 = vld [vmem:[%s2 + $0x464] sm:$0xff]
  %v168 = vld [vmem:[%s2 + $0x46c] sm:$0xff]
  %v169 = vld [vmem:[%s2 + $0x474] sm:$0xff]
  %v170 = vld [vmem:[%s2 + $0x47c] sm:$0xff]
  %v171 = vld [vmem:[%s2 + $0x484] sm:$0xff]
  %v172 = vld [vmem:[%s2 + $0x48c] sm:$0xff]
  %v173 = vld [vmem:[%s2 + $0x494] sm:$0xf]
  %v174 = vld [vmem:[%s2 + $0x498] sm:$0xff]
  %v175 = vld [vmem:[%s2 + $0x4a0] sm:$0xff]
  %v176 = vld [vmem:[%s2 + $0x4a8] sm:$0xff]
  %v177 = vld [vmem:[%s2 + $0x4b0] sm:$0xff]
  %v178 = vld [vmem:[%s2 + $0x4b8] sm:$0xff]
  %v179 = vld [vmem:[%s2 + $0x4c0] sm:$0xff]
  %v180 = vld [vmem:[%s2 + $0x4c8] sm:$0xff]
  %v181 = vld [vmem:[%s2 + $0x4d0] sm:$0xff]
  %v182 = vld [vmem:[%s2 + $0x4d8] sm:$0xff]
  %v183 = vld [vmem:[%s2 + $0x4e0] sm:$0xff]
  %v184 = vld [vmem:[%s2 + $0x4e8] sm:$0xf]
  %v185 = vld [vmem:[%s2 + $0x4ec] sm:$0xff]
  %v186 = vld [vmem:[%s2 + $0x4f4] sm:$0xff]
  %v187 = vld [vmem:[%s2 + $0x4fc] sm:$0xff]
  %v188 = vld [vmem:[%s2 + $0x504] sm:$0xff]
  %v189 = vld [vmem:[%s2 + $0x50c] sm:$0xff]
  %v190 = vld [vmem:[%s2 + $0x514] sm:$0xff]
  %v191 = vld [vmem:[%s2 + $0x51c] sm:$0xff]
  %v192 = vld [vmem:[%s2 + $0x524] sm:$0xff]
  %v193 = vld [vmem:[%s2 + $0x52c] sm:$0xff]
  %v194 = vld [vmem:[%s2 + $0x534] sm:$0xff]
  %v195 = vld [vmem:[%s2 + $0x53c] sm:$0xf]
  %v196 = vld [vmem:[%s2 + $0x540] sm:$0xff]
  %v197 = vld [vmem:[%s2 + $0x548] sm:$0xff]
  %v198 = vld [vmem:[%s2 + $0x550] sm:$0xff]
  %v199 = vld [vmem:[%s2 + $0x558] sm:$0xff]
  %v200 = vld [vmem:[%s2 + $0x560] sm:$0xff]
  %v201 = vld [vmem:[%s2 + $0x568] sm:$0xff]
  %v202 = vld [vmem:[%s2 + $0x570] sm:$0xff]
  %v203 = vld [vmem:[%s2 + $0x578] sm:$0xff]
  %v204 = vld [vmem:[%s2 + $0x580] sm:$0xff]
  %v205 = vld [vmem:[%s2 + $0x588] sm:$0xff]
  %v206 = vld [vmem:[%s2 + $0x590] sm:$0xf]
  %v207 = vld [vmem:[%s2 + $0x594] sm:$0xff]
  %v208 = vld [vmem:[%s2 + $0x59c] sm:$0xff]
  %v209 = vld [vmem:[%s2 + $0x5a4] sm:$0xff]
  %v210 = vld [vmem:[%s2 + $0x5ac] sm:$0xff]
  %v211 = vld [vmem:[%s2 + $0x5b4] sm:$0xff]
  %v212 = vld [vmem:[%s2 + $0x5bc] sm:$0xff]
  %v213 = vld [vmem:[%s2 + $0x5c4] sm:$0xff]
  %v214 = vld [vmem:[%s2 + $0x5cc] sm:$0xff]
  %v215 = vld [vmem:[%s2 + $0x5d4] sm:$0xff]
  %v216 = vld [vmem:[%s2 + $0x5dc] sm:$0xff]
  %v217 = vld [vmem:[%s2 + $0x5e4] sm:$0xf]
  %v220 = vunpack.c.l.b16 %v18
  %v221 = vunpack.c.h.b16 %v18
  %v222 = vunpack.c.l.b16 %v19
  %v223 = vunpack.c.h.b16 %v19
  %v224 = vpack.c.b16 %v222, %v220
  %v225 = vpack.c.b16 %v223, %v221
  %v425 = vunpack.c.l.b16 %v20
  %v426 = vunpack.c.h.b16 %v20
  %v427 = vunpack.c.l.b16 %v21
  %v428 = vunpack.c.h.b16 %v21
  %v429 = vunpack.c.l.b16 %v22
  %v430 = vunpack.c.h.b16 %v22
  %v431 = vunpack.c.l.b16 %v23
  %v432 = vunpack.c.h.b16 %v23
  %v433 = vunpack.c.l.b16 %v24
  %v434 = vunpack.c.h.b16 %v24
  %v435 = vunpack.c.l.b16 %v25
  %v436 = vunpack.c.h.b16 %v25
  %v437 = vunpack.c.l.b16 %v26
  %v438 = vunpack.c.h.b16 %v26
  %v439 = vunpack.c.l.b16 %v27
  %v440 = vunpack.c.h.b16 %v27
  %v441 = vunpack.c.l.b16 %v28
  %v442 = vunpack.c.h.b16 %v28
  %v443 = vunpack.c.l.b16 %v29
  %v444 = vunpack.c.h.b16 %v29
  %v445 = vunpack.c.l.b16 %v30
  %v446 = vunpack.c.l.b16 %v31
  %v447 = vunpack.c.h.b16 %v31
  %v448 = vunpack.c.l.b16 %v32
  %v449 = vunpack.c.h.b16 %v32
  %v450 = vunpack.c.l.b16 %v33
  %v451 = vunpack.c.h.b16 %v33
  %v452 = vunpack.c.l.b16 %v34
  %v453 = vunpack.c.h.b16 %v34
  %v454 = vunpack.c.l.b16 %v35
  %v455 = vunpack.c.h.b16 %v35
  %v456 = vunpack.c.l.b16 %v36
  %v457 = vunpack.c.h.b16 %v36
  %v458 = vunpack.c.l.b16 %v37
  %v459 = vunpack.c.h.b16 %v37
  %v460 = vunpack.c.l.b16 %v38
  %v461 = vunpack.c.h.b16 %v38
  %v462 = vunpack.c.l.b16 %v39
  %v463 = vunpack.c.h.b16 %v39
  %v464 = vunpack.c.l.b16 %v40
  %v465 = vunpack.c.h.b16 %v40
  %v466 = vunpack.c.l.b16 %v41
  %v467 = vunpack.c.l.b16 %v42
  %v468 = vunpack.c.h.b16 %v42
  %v469 = vunpack.c.l.b16 %v43
  %v470 = vunpack.c.h.b16 %v43
  %v471 = vunpack.c.l.b16 %v44
  %v472 = vunpack.c.h.b16 %v44
  %v473 = vunpack.c.l.b16 %v45
  %v474 = vunpack.c.h.b16 %v45
  %v475 = vunpack.c.l.b16 %v46
  %v476 = vunpack.c.h.b16 %v46
  %v477 = vunpack.c.l.b16 %v47
  %v478 = vunpack.c.h.b16 %v47
  %v479 = vunpack.c.l.b16 %v48
  %v480 = vunpack.c.h.b16 %v48
  %v481 = vunpack.c.l.b16 %v49
  %v482 = vunpack.c.h.b16 %v49
  %v483 = vunpack.c.l.b16 %v50
  %v484 = vunpack.c.h.b16 %v50
  %v485 = vunpack.c.l.b16 %v51
  %v486 = vunpack.c.h.b16 %v51
  %v487 = vunpack.c.l.b16 %v52
  %v488 = vunpack.c.l.b16 %v53
  %v489 = vunpack.c.h.b16 %v53
  %v490 = vunpack.c.l.b16 %v54
  %v491 = vunpack.c.h.b16 %v54
  %v492 = vunpack.c.l.b16 %v55
  %v493 = vunpack.c.h.b16 %v55
  %v494 = vunpack.c.l.b16 %v56
  %v495 = vunpack.c.h.b16 %v56
  %v496 = vunpack.c.l.b16 %v57
  %v497 = vunpack.c.h.b16 %v57
  %v498 = vunpack.c.l.b16 %v58
  %v499 = vunpack.c.h.b16 %v58
  %v500 = vunpack.c.l.b16 %v59
  %v501 = vunpack.c.h.b16 %v59
  %v502 = vunpack.c.l.b16 %v60
  %v503 = vunpack.c.h.b16 %v60
  %v504 = vunpack.c.l.b16 %v61
  %v505 = vunpack.c.h.b16 %v61
  %v506 = vunpack.c.l.b16 %v62
  %v507 = vunpack.c.h.b16 %v62
  %v508 = vunpack.c.l.b16 %v63
  %v509 = vunpack.c.l.b16 %v64
  %v510 = vunpack.c.h.b16 %v64
  %v511 = vunpack.c.l.b16 %v65
  %v512 = vunpack.c.h.b16 %v65
  %v513 = vunpack.c.l.b16 %v66
  %v514 = vunpack.c.h.b16 %v66
  %v515 = vunpack.c.l.b16 %v67
  %v516 = vunpack.c.h.b16 %v67
  %v517 = vunpack.c.l.b16 %v68
  %v518 = vunpack.c.h.b16 %v68
  %v519 = vunpack.c.l.b16 %v69
  %v520 = vunpack.c.h.b16 %v69
  %v521 = vunpack.c.l.b16 %v70
  %v522 = vunpack.c.h.b16 %v70
  %v523 = vunpack.c.l.b16 %v71
  %v524 = vunpack.c.h.b16 %v71
  %v525 = vunpack.c.l.b16 %v72
  %v526 = vunpack.c.h.b16 %v72
  %v527 = vunpack.c.l.b16 %v73
  %v528 = vunpack.c.h.b16 %v73
  %v529 = vunpack.c.l.b16 %v74
  %v530 = vunpack.c.l.b16 %v75
  %v531 = vunpack.c.h.b16 %v75
  %v532 = vunpack.c.l.b16 %v76
  %v533 = vunpack.c.h.b16 %v76
  %v534 = vunpack.c.l.b16 %v77
  %v535 = vunpack.c.h.b16 %v77
  %v536 = vunpack.c.l.b16 %v78
  %v537 = vunpack.c.h.b16 %v78
  %v538 = vunpack.c.l.b16 %v79
  %v539 = vunpack.c.h.b16 %v79
  %v540 = vunpack.c.l.b16 %v80
  %v541 = vunpack.c.h.b16 %v80
  %v542 = vunpack.c.l.b16 %v81
  %v543 = vunpack.c.h.b16 %v81
  %v544 = vunpack.c.l.b16 %v82
  %v545 = vunpack.c.h.b16 %v82
  %v546 = vunpack.c.l.b16 %v83
  %v547 = vunpack.c.h.b16 %v83
  %v548 = vunpack.c.l.b16 %v84
  %v549 = vunpack.c.h.b16 %v84
  %v550 = vunpack.c.l.b16 %v85
  %v551 = vunpack.c.l.b16 %v86
  %v552 = vunpack.c.h.b16 %v86
  %v553 = vunpack.c.l.b16 %v87
  %v554 = vunpack.c.h.b16 %v87
  %v555 = vunpack.c.l.b16 %v88
  %v556 = vunpack.c.h.b16 %v88
  %v557 = vunpack.c.l.b16 %v89
  %v558 = vunpack.c.h.b16 %v89
  %v559 = vunpack.c.l.b16 %v90
  %v560 = vunpack.c.h.b16 %v90
  %v561 = vunpack.c.l.b16 %v91
  %v562 = vunpack.c.h.b16 %v91
  %v563 = vunpack.c.l.b16 %v92
  %v564 = vunpack.c.h.b16 %v92
  %v565 = vunpack.c.l.b16 %v93
  %v566 = vunpack.c.h.b16 %v93
  %v567 = vunpack.c.l.b16 %v94
  %v568 = vunpack.c.h.b16 %v94
  %v569 = vunpack.c.l.b16 %v95
  %v570 = vunpack.c.h.b16 %v95
  %v571 = vunpack.c.l.b16 %v96
  %v572 = vunpack.c.l.b16 %v97
  %v573 = vunpack.c.h.b16 %v97
  %v574 = vunpack.c.l.b16 %v98
  %v575 = vunpack.c.h.b16 %v98
  %v576 = vunpack.c.l.b16 %v99
  %v577 = vunpack.c.h.b16 %v99
  %v578 = vunpack.c.l.b16 %v100
  %v579 = vunpack.c.h.b16 %v100
  %v580 = vunpack.c.l.b16 %v101
  %v581 = vunpack.c.h.b16 %v101
  %v582 = vunpack.c.l.b16 %v102
  %v583 = vunpack.c.h.b16 %v102
  %v584 = vunpack.c.l.b16 %v103
  %v585 = vunpack.c.h.b16 %v103
  %v586 = vunpack.c.l.b16 %v104
  %v587 = vunpack.c.h.b16 %v104
  %v588 = vunpack.c.l.b16 %v105
  %v589 = vunpack.c.h.b16 %v105
  %v590 = vunpack.c.l.b16 %v106
  %v591 = vunpack.c.h.b16 %v106
  %v592 = vunpack.c.l.b16 %v107
  %v593 = vunpack.c.l.b16 %v108
  %v594 = vunpack.c.h.b16 %v108
  %v595 = vunpack.c.l.b16 %v109
  %v596 = vunpack.c.h.b16 %v109
  %v597 = vunpack.c.l.b16 %v110
  %v598 = vunpack.c.h.b16 %v110
  %v599 = vunpack.c.l.b16 %v111
  %v600 = vunpack.c.h.b16 %v111
  %v601 = vunpack.c.l.b16 %v112
  %v602 = vunpack.c.h.b16 %v112
  %v603 = vunpack.c.l.b16 %v113
  %v604 = vunpack.c.h.b16 %v113
  %v605 = vunpack.c.l.b16 %v114
  %v606 = vunpack.c.h.b16 %v114
  %v607 = vunpack.c.l.b16 %v115
  %v608 = vunpack.c.h.b16 %v115
  %v609 = vunpack.c.l.b16 %v116
  %v610 = vunpack.c.h.b16 %v116
  %v611 = vunpack.c.l.b16 %v117
  %v612 = vunpack.c.h.b16 %v117
  %v613 = vunpack.c.l.b16 %v118
  %v614 = vunpack.c.l.b16 %v119
  %v615 = vunpack.c.h.b16 %v119
  %v616 = vunpack.c.l.b16 %v120
  %v617 = vunpack.c.h.b16 %v120
  %v618 = vunpack.c.l.b16 %v121
  %v619 = vunpack.c.h.b16 %v121
  %v620 = vunpack.c.l.b16 %v122
  %v621 = vunpack.c.h.b16 %v122
  %v622 = vunpack.c.l.b16 %v123
  %v623 = vunpack.c.h.b16 %v123
  %v624 = vunpack.c.l.b16 %v124
  %v625 = vunpack.c.h.b16 %v124
  %v626 = vunpack.c.l.b16 %v125
  %v627 = vunpack.c.h.b16 %v125
  %v628 = vunpack.c.l.b16 %v126
  %v629 = vunpack.c.h.b16 %v126
  %v630 = vunpack.c.l.b16 %v127
  %v631 = vunpack.c.h.b16 %v127
  %v632 = vunpack.c.l.b16 %v128
  %v633 = vunpack.c.h.b16 %v128
  %v634 = vunpack.c.l.b16 %v129
  %v635 = vunpack.c.l.b16 %v130
  %v636 = vunpack.c.h.b16 %v130
  %v637 = vunpack.c.l.b16 %v131
  %v638 = vunpack.c.h.b16 %v131
  %v639 = vunpack.c.l.b16 %v132
  %v640 = vunpack.c.h.b16 %v132
  %v641 = vunpack.c.l.b16 %v133
  %v642 = vunpack.c.h.b16 %v133
  %v643 = vunpack.c.l.b16 %v134
  %v644 = vunpack.c.h.b16 %v134
  %v645 = vunpack.c.l.b16 %v135
  %v646 = vunpack.c.h.b16 %v135
  %v647 = vunpack.c.l.b16 %v136
  %v648 = vunpack.c.h.b16 %v136
  %v649 = vunpack.c.l.b16 %v137
  %v650 = vunpack.c.h.b16 %v137
  %v651 = vunpack.c.l.b16 %v138
  %v652 = vunpack.c.h.b16 %v138
  %v653 = vunpack.c.l.b16 %v139
  %v654 = vunpack.c.h.b16 %v139
  %v655 = vunpack.c.l.b16 %v140
  %v656 = vunpack.c.l.b16 %v141
  %v657 = vunpack.c.h.b16 %v141
  %v658 = vunpack.c.l.b16 %v142
  %v659 = vunpack.c.h.b16 %v142
  %v660 = vunpack.c.l.b16 %v143
  %v661 = vunpack.c.h.b16 %v143
  %v662 = vunpack.c.l.b16 %v144
  %v663 = vunpack.c.h.b16 %v144
  %v664 = vunpack.c.l.b16 %v145
  %v665 = vunpack.c.h.b16 %v145
  %v666 = vunpack.c.l.b16 %v146
  %v667 = vunpack.c.h.b16 %v146
  %v668 = vunpack.c.l.b16 %v147
  %v669 = vunpack.c.h.b16 %v147
  %v670 = vunpack.c.l.b16 %v148
  %v671 = vunpack.c.h.b16 %v148
  %v672 = vunpack.c.l.b16 %v149
  %v673 = vunpack.c.h.b16 %v149
  %v674 = vunpack.c.l.b16 %v150
  %v675 = vunpack.c.h.b16 %v150
  %v676 = vunpack.c.l.b16 %v151
  %v677 = vunpack.c.l.b16 %v152
  %v678 = vunpack.c.h.b16 %v152
  %v679 = vunpack.c.l.b16 %v153
  %v680 = vunpack.c.h.b16 %v153
  %v681 = vunpack.c.l.b16 %v154
  %v682 = vunpack.c.h.b16 %v154
  %v683 = vunpack.c.l.b16 %v155
  %v684 = vunpack.c.h.b16 %v155
  %v685 = vunpack.c.l.b16 %v156
  %v686 = vunpack.c.h.b16 %v156
  %v687 = vunpack.c.l.b16 %v157
  %v688 = vunpack.c.h.b16 %v157
  %v689 = vunpack.c.l.b16 %v158
  %v690 = vunpack.c.h.b16 %v158
  %v691 = vunpack.c.l.b16 %v159
  %v692 = vunpack.c.h.b16 %v159
  %v693 = vunpack.c.l.b16 %v160
  %v694 = vunpack.c.h.b16 %v160
  %v695 = vunpack.c.l.b16 %v161
  %v696 = vunpack.c.h.b16 %v161
  %v697 = vunpack.c.l.b16 %v162
  %v698 = vunpack.c.l.b16 %v163
  %v699 = vunpack.c.h.b16 %v163
  %v700 = vunpack.c.l.b16 %v164
  %v701 = vunpack.c.h.b16 %v164
  %v702 = vunpack.c.l.b16 %v165
  %v703 = vunpack.c.h.b16 %v165
  %v704 = vunpack.c.l.b16 %v166
  %v705 = vunpack.c.h.b16 %v166
  %v706 = vunpack.c.l.b16 %v167
  %v707 = vunpack.c.h.b16 %v167
  %v708 = vunpack.c.l.b16 %v168
  %v709 = vunpack.c.h.b16 %v168
  %v710 = vunpack.c.l.b16 %v169
  %v711 = vunpack.c.h.b16 %v169
  %v712 = vunpack.c.l.b16 %v170
  %v713 = vunpack.c.h.b16 %v170
  %v714 = vunpack.c.l.b16 %v171
  %v715 = vunpack.c.h.b16 %v171
  %v716 = vunpack.c.l.b16 %v172
  %v717 = vunpack.c.h.b16 %v172
  %v718 = vunpack.c.l.b16 %v173
  %v719 = vunpack.c.l.b16 %v174
  %v720 = vunpack.c.h.b16 %v174
  %v721 = vunpack.c.l.b16 %v175
  %v722 = vunpack.c.h.b16 %v175
  %v723 = vunpack.c.l.b16 %v176
  %v724 = vunpack.c.h.b16 %v176
  %v725 = vunpack.c.l.b16 %v177
  %v726 = vunpack.c.h.b16 %v177
  %v727 = vunpack.c.l.b16 %v178
  %v728 = vunpack.c.h.b16 %v178
  %v729 = vunpack.c.l.b16 %v179
  %v730 = vunpack.c.h.b16 %v179
  %v731 = vunpack.c.l.b16 %v180
  %v732 = vunpack.c.h.b16 %v180
  %v733 = vunpack.c.l.b16 %v181
  %v734 = vunpack.c.h.b16 %v181
  %v735 = vunpack.c.l.b16 %v182
  %v736 = vunpack.c.h.b16 %v182
  %v737 = vunpack.c.l.b16 %v183
  %v738 = vunpack.c.h.b16 %v183
  %v739 = vunpack.c.l.b16 %v184
  %v740 = vunpack.c.l.b16 %v185
  %v741 = vunpack.c.h.b16 %v185
  %v742 = vunpack.c.l.b16 %v186
  %v743 = vunpack.c.h.b16 %v186
  %v744 = vunpack.c.l.b16 %v187
  %v745 = vunpack.c.h.b16 %v187
  %v746 = vunpack.c.l.b16 %v188
  %v747 = vunpack.c.h.b16 %v188
  %v748 = vunpack.c.l.b16 %v189
  %v749 = vunpack.c.h.b16 %v189
  %v750 = vunpack.c.l.b16 %v190
  %v751 = vunpack.c.h.b16 %v190
  %v752 = vunpack.c.l.b16 %v191
  %v753 = vunpack.c.h.b16 %v191
  %v754 = vunpack.c.l.b16 %v192
  %v755 = vunpack.c.h.b16 %v192
  %v756 = vunpack.c.l.b16 %v193
  %v757 = vunpack.c.h.b16 %v193
  %v758 = vunpack.c.l.b16 %v194
  %v759 = vunpack.c.h.b16 %v194
  %v760 = vunpack.c.l.b16 %v195
  %v761 = vunpack.c.l.b16 %v196
  %v762 = vunpack.c.h.b16 %v196
  %v763 = vunpack.c.l.b16 %v197
  %v764 = vunpack.c.h.b16 %v197
  %v765 = vunpack.c.l.b16 %v198
  %v766 = vunpack.c.h.b16 %v198
  %v767 = vunpack.c.l.b16 %v199
  %v768 = vunpack.c.h.b16 %v199
  %v769 = vunpack.c.l.b16 %v200
  %v770 = vunpack.c.h.b16 %v200
  %v771 = vunpack.c.l.b16 %v201
  %v772 = vunpack.c.h.b16 %v201
  %v773 = vunpack.c.l.b16 %v202
  %v774 = vunpack.c.h.b16 %v202
  %v775 = vunpack.c.l.b16 %v203
  %v776 = vunpack.c.h.b16 %v203
  %v777 = vunpack.c.l.b16 %v204
  %v778 = vunpack.c.h.b16 %v204
  %v779 = vunpack.c.l.b16 %v205
  %v780 = vunpack.c.h.b16 %v205
  %v781 = vunpack.c.l.b16 %v206
  %v782 = vunpack.c.l.b16 %v207
  %v783 = vunpack.c.h.b16 %v207
  %v784 = vunpack.c.l.b16 %v208
  %v785 = vunpack.c.h.b16 %v208
  %v786 = vunpack.c.l.b16 %v209
  %v787 = vunpack.c.h.b16 %v209
  %v788 = vunpack.c.l.b16 %v210
  %v789 = vunpack.c.h.b16 %v210
  %v790 = vunpack.c.l.b16 %v211
  %v791 = vunpack.c.h.b16 %v211
  %v792 = vunpack.c.l.b16 %v212
  %v793 = vunpack.c.h.b16 %v212
  %v794 = vunpack.c.l.b16 %v213
  %v795 = vunpack.c.h.b16 %v213
  %v796 = vunpack.c.l.b16 %v214
  %v797 = vunpack.c.h.b16 %v214
  %v798 = vunpack.c.l.b16 %v215
  %v799 = vunpack.c.h.b16 %v215
  %v800 = vunpack.c.l.b16 %v216
  %v801 = vunpack.c.h.b16 %v216
  %v802 = vunpack.c.l.b16 %v217
  %v803 = vpack.c.b16 %v446, %v425
  %v804 = vpack.c.b16 %v447, %v426
  %v805 = vpack.c.b16 %v448, %v427
  %v806 = vpack.c.b16 %v449, %v428
  %v807 = vpack.c.b16 %v450, %v429
  %v808 = vpack.c.b16 %v451, %v430
  %v809 = vpack.c.b16 %v452, %v431
  %v810 = vpack.c.b16 %v453, %v432
  %v811 = vpack.c.b16 %v454, %v433
  %v812 = vpack.c.b16 %v455, %v434
  %v813 = vpack.c.b16 %v456, %v435
  %v814 = vpack.c.b16 %v457, %v436
  %v815 = vpack.c.b16 %v458, %v437
  %v816 = vpack.c.b16 %v459, %v438
  %v817 = vpack.c.b16 %v460, %v439
  %v818 = vpack.c.b16 %v461, %v440
  %v819 = vpack.c.b16 %v462, %v441
  %v820 = vpack.c.b16 %v463, %v442
  %v821 = vpack.c.b16 %v464, %v443
  %v822 = vpack.c.b16 %v465, %v444
  %v823 = vpack.c.b16 %v466, %v445
  %v824 = vpack.c.b16 %v488, %v467
  %v825 = vpack.c.b16 %v489, %v468
  %v826 = vpack.c.b16 %v490, %v469
  %v827 = vpack.c.b16 %v491, %v470
  %v828 = vpack.c.b16 %v492, %v471
  %v829 = vpack.c.b16 %v493, %v472
  %v830 = vpack.c.b16 %v494, %v473
  %v831 = vpack.c.b16 %v495, %v474
  %v832 = vpack.c.b16 %v496, %v475
  %v833 = vpack.c.b16 %v497, %v476
  %v834 = vpack.c.b16 %v498, %v477
  %v835 = vpack.c.b16 %v499, %v478
  %v836 = vpack.c.b16 %v500, %v479
  %v837 = vpack.c.b16 %v501, %v480
  %v838 = vpack.c.b16 %v502, %v481
  %v839 = vpack.c.b16 %v503, %v482
  %v840 = vpack.c.b16 %v504, %v483
  %v841 = vpack.c.b16 %v505, %v484
  %v842 = vpack.c.b16 %v506, %v485
  %v843 = vpack.c.b16 %v507, %v486
  %v844 = vpack.c.b16 %v508, %v487
  %v845 = vpack.c.b16 %v530, %v509
  %v846 = vpack.c.b16 %v531, %v510
  %v847 = vpack.c.b16 %v532, %v511
  %v848 = vpack.c.b16 %v533, %v512
  %v849 = vpack.c.b16 %v534, %v513
  %v850 = vpack.c.b16 %v535, %v514
  %v851 = vpack.c.b16 %v536, %v515
  %v852 = vpack.c.b16 %v537, %v516
  %v853 = vpack.c.b16 %v538, %v517
  %v854 = vpack.c.b16 %v539, %v518
  %v855 = vpack.c.b16 %v540, %v519
  %v856 = vpack.c.b16 %v541, %v520
  %v857 = vpack.c.b16 %v542, %v521
  %v858 = vpack.c.b16 %v543, %v522
  %v859 = vpack.c.b16 %v544, %v523
  %v860 = vpack.c.b16 %v545, %v524
  %v861 = vpack.c.b16 %v546, %v525
  %v862 = vpack.c.b16 %v547, %v526
  %v863 = vpack.c.b16 %v548, %v527
  %v864 = vpack.c.b16 %v549, %v528
  %v865 = vpack.c.b16 %v550, %v529
  %v866 = vpack.c.b16 %v572, %v551
  %v867 = vpack.c.b16 %v573, %v552
  %v868 = vpack.c.b16 %v574, %v553
  %v869 = vpack.c.b16 %v575, %v554
  %v870 = vpack.c.b16 %v576, %v555
  %v871 = vpack.c.b16 %v577, %v556
  %v872 = vpack.c.b16 %v578, %v557
  %v873 = vpack.c.b16 %v579, %v558
  %v874 = vpack.c.b16 %v580, %v559
  %v875 = vpack.c.b16 %v581, %v560
  %v876 = vpack.c.b16 %v582, %v561
  %v877 = vpack.c.b16 %v583, %v562
  %v878 = vpack.c.b16 %v584, %v563
  %v879 = vpack.c.b16 %v585, %v564
  %v880 = vpack.c.b16 %v586, %v565
  %v881 = vpack.c.b16 %v587, %v566
  %v882 = vpack.c.b16 %v588, %v567
  %v883 = vpack.c.b16 %v589, %v568
  %v884 = vpack.c.b16 %v590, %v569
  %v885 = vpack.c.b16 %v591, %v570
  %v886 = vpack.c.b16 %v592, %v571
  %v887 = vpack.c.b16 %v614, %v593
  %v888 = vpack.c.b16 %v615, %v594
  %v889 = vpack.c.b16 %v616, %v595
  %v890 = vpack.c.b16 %v617, %v596
  %v891 = vpack.c.b16 %v618, %v597
  %v892 = vpack.c.b16 %v619, %v598
  %v893 = vpack.c.b16 %v620, %v599
  %v894 = vpack.c.b16 %v621, %v600
  %v895 = vpack.c.b16 %v622, %v601
  %v896 = vpack.c.b16 %v623, %v602
  %v897 = vpack.c.b16 %v624, %v603
  %v898 = vpack.c.b16 %v625, %v604
  %v899 = vpack.c.b16 %v626, %v605
  %v900 = vpack.c.b16 %v627, %v606
  %v901 = vpack.c.b16 %v628, %v607
  %v902 = vpack.c.b16 %v629, %v608
  %v903 = vpack.c.b16 %v630, %v609
  %v904 = vpack.c.b16 %v631, %v610
  %v905 = vpack.c.b16 %v632, %v611
  %v906 = vpack.c.b16 %v633, %v612
  %v907 = vpack.c.b16 %v634, %v613
  %v908 = vpack.c.b16 %v656, %v635
  %v909 = vpack.c.b16 %v657, %v636
  %v910 = vpack.c.b16 %v658, %v637
  %v911 = vpack.c.b16 %v659, %v638
  %v912 = vpack.c.b16 %v660, %v639
  %v913 = vpack.c.b16 %v661, %v640
  %v914 = vpack.c.b16 %v662, %v641
  %v915 = vpack.c.b16 %v663, %v642
  %v916 = vpack.c.b16 %v664, %v643
  %v917 = vpack.c.b16 %v665, %v644
  %v918 = vpack.c.b16 %v666, %v645
  %v919 = vpack.c.b16 %v667, %v646
  %v920 = vpack.c.b16 %v668, %v647
  %v921 = vpack.c.b16 %v669, %v648
  %v922 = vpack.c.b16 %v670, %v649
  %v923 = vpack.c.b16 %v671, %v650
  %v924 = vpack.c.b16 %v672, %v651
  %v925 = vpack.c.b16 %v673, %v652
  %v926 = vpack.c.b16 %v674, %v653
  %v927 = vpack.c.b16 %v675, %v654
  %v928 = vpack.c.b16 %v676, %v655
  %v929 = vpack.c.b16 %v698, %v677
  %v930 = vpack.c.b16 %v699, %v678
  %v931 = vpack.c.b16 %v700, %v679
  %v932 = vpack.c.b16 %v701, %v680
  %v933 = vpack.c.b16 %v702, %v681
  %v934 = vpack.c.b16 %v703, %v682
  %v935 = vpack.c.b16 %v704, %v683
  %v936 = vpack.c.b16 %v705, %v684
  %v937 = vpack.c.b16 %v706, %v685
  %v938 = vpack.c.b16 %v707, %v686
  %v939 = vpack.c.b16 %v708, %v687
  %v940 = vpack.c.b16 %v709, %v688
  %v941 = vpack.c.b16 %v710, %v689
  %v942 = vpack.c.b16 %v711, %v690
  %v943 = vpack.c.b16 %v712, %v691
  %v944 = vpack.c.b16 %v713, %v692
  %v945 = vpack.c.b16 %v714, %v693
  %v946 = vpack.c.b16 %v715, %v694
  %v947 = vpack.c.b16 %v716, %v695
  %v948 = vpack.c.b16 %v717, %v696
  %v949 = vpack.c.b16 %v718, %v697
  %v950 = vpack.c.b16 %v740, %v719
  %v951 = vpack.c.b16 %v741, %v720
  %v952 = vpack.c.b16 %v742, %v721
  %v953 = vpack.c.b16 %v743, %v722
  %v954 = vpack.c.b16 %v744, %v723
  %v955 = vpack.c.b16 %v745, %v724
  %v956 = vpack.c.b16 %v746, %v725
  %v957 = vpack.c.b16 %v747, %v726
  %v958 = vpack.c.b16 %v748, %v727
  %v959 = vpack.c.b16 %v749, %v728
  %v960 = vpack.c.b16 %v750, %v729
  %v961 = vpack.c.b16 %v751, %v730
  %v962 = vpack.c.b16 %v752, %v731
  %v963 = vpack.c.b16 %v753, %v732
  %v964 = vpack.c.b16 %v754, %v733
  %v965 = vpack.c.b16 %v755, %v734
  %v966 = vpack.c.b16 %v756, %v735
  %v967 = vpack.c.b16 %v757, %v736
  %v968 = vpack.c.b16 %v758, %v737
  %v969 = vpack.c.b16 %v759, %v738
  %v970 = vpack.c.b16 %v760, %v739
  %v971 = vpack.c.b16 %v782, %v761
  %v972 = vpack.c.b16 %v783, %v762
  %v973 = vpack.c.b16 %v784, %v763
  %v974 = vpack.c.b16 %v785, %v764
  %v975 = vpack.c.b16 %v786, %v765
  %v976 = vpack.c.b16 %v787, %v766
  %v977 = vpack.c.b16 %v788, %v767
  %v978 = vpack.c.b16 %v789, %v768
  %v979 = vpack.c.b16 %v790, %v769
  %v980 = vpack.c.b16 %v791, %v770
  %v981 = vpack.c.b16 %v792, %v771
  %v982 = vpack.c.b16 %v793, %v772
  %v983 = vpack.c.b16 %v794, %v773
  %v984 = vpack.c.b16 %v795, %v774
  %v985 = vpack.c.b16 %v796, %v775
  %v986 = vpack.c.b16 %v797, %v776
  %v987 = vpack.c.b16 %v798, %v777
  %v988 = vpack.c.b16 %v799, %v778
  %v989 = vpack.c.b16 %v800, %v779
  %v990 = vpack.c.b16 %v801, %v780
  %v991 = vpack.c.b16 %v802, %v781
  %vm1181 = vcmask 130048
  %v1183 = vsel %vm1181, %v225, 0
  %1185 = vmatprep.subr.bf16.mxu0 %v804
  %1186 = vmatpush1.bf16.msra.mxu0 %v803
  %1187 = vmatprep.subr.bf16.mxu0 %v825
  %1188 = vmatpush1.bf16.msra.mxu0 %v824
  %1189 = vmatprep.subr.bf16.mxu0 %v846
  %1190 = vmatpush1.bf16.msra.mxu0 %v845
  %1191 = vmatprep.subr.bf16.mxu0 %v867
  %1192 = vmatpush1.bf16.msra.mxu0 %v866
  %1193 = vmatprep.subr.bf16.mxu0 %v888
  %1194 = vmatpush1.bf16.msra.mxu0 %v887
  %1195 = vmatprep.subr.bf16.mxu0 %v909
  %1196 = vmatpush1.bf16.msra.mxu0 %v908
  %1197 = vmatprep.subr.bf16.mxu0 %v930
  %1198 = vmatpush1.bf16.msra.mxu0 %v929
  %1199 = vmatprep.subr.bf16.mxu0 %v951
  %1200 = vmatpush1.bf16.msra.mxu0 %v950
  %1201 = vmatprep.subr.bf16.mxu0 %v972
  %1202 = vmatpush1.bf16.msra.mxu0 %v971
  %1203 = vmatprep.subr.bf16.mxu0 0
  %1204 = vmatpush1.bf16.msra.mxu0 0
  %1205 = vmatprep.subr.bf16.mxu0 0
  %1206 = vmatpush1.bf16.msra.mxu0 0
  %1207 = vmatprep.subr.bf16.mxu0 0
  %1208 = vmatpush1.bf16.msra.mxu0 0
  %1209 = vmatprep.subr.bf16.mxu0 0
  %1210 = vmatpush1.bf16.msra.mxu0 0
  %1211 = vmatprep.subr.bf16.mxu0 0
  %1212 = vmatpush1.bf16.msra.mxu0 0
  %1213 = vmatprep.subr.bf16.mxu0 0
  %1214 = vmatpush1.bf16.msra.mxu0 0
  %1215 = vmatprep.subr.bf16.mxu0 0
  %1216 = vmatpush1.bf16.msra.mxu0 0
  %1217 = vmatprep.mubr.bf16.mxu0 %v1183
  %1218 = vmatmul.mubr.bf16.gmra.mrb[0].mxu0 %v224
  %v1219 = vpop.f32.mrb[0].mxu0
  %v1220 = vadd.f32 0.0, %v1219
  %v1221 = vpop.f32.mrb[0].mxu0
  %v1222 = vadd.f32 0.0, %v1221
  %v1223 = vpop.f32.mrb[0].mxu0
  %v1224 = vadd.f32 0.0, %v1223
  %v1225 = vpop.f32.mrb[0].mxu0
  %v1226 = vadd.f32 0.0, %v1225
  %1227 = vdwg.mxu0
  %1228 = vmatprep.subr.bf16.mxu0 %v806
  %1229 = vmatpush1.bf16.msra.mxu0 %v805
  %1230 = vmatprep.subr.bf16.mxu0 %v827
  %1231 = vmatpush1.bf16.msra.mxu0 %v826
  %1232 = vmatprep.subr.bf16.mxu0 %v848
  %1233 = vmatpush1.bf16.msra.mxu0 %v847
  %1234 = vmatprep.subr.bf16.mxu0 %v869
  %1235 = vmatpush1.bf16.msra.mxu0 %v868
  %1236 = vmatprep.subr.bf16.mxu0 %v890
  %1237 = vmatpush1.bf16.msra.mxu0 %v889
  %1238 = vmatprep.subr.bf16.mxu0 %v911
  %1239 = vmatpush1.bf16.msra.mxu0 %v910
  %1240 = vmatprep.subr.bf16.mxu0 %v932
  %1241 = vmatpush1.bf16.msra.mxu0 %v931
  %1242 = vmatprep.subr.bf16.mxu0 %v953
  %1243 = vmatpush1.bf16.msra.mxu0 %v952
  %1244 = vmatprep.subr.bf16.mxu0 %v974
  %1245 = vmatpush1.bf16.msra.mxu0 %v973
  %1246 = vmatprep.subr.bf16.mxu0 0
  %1247 = vmatpush1.bf16.msra.mxu0 0
  %1248 = vmatprep.subr.bf16.mxu0 0
  %1249 = vmatpush1.bf16.msra.mxu0 0
  %1250 = vmatprep.subr.bf16.mxu0 0
  %1251 = vmatpush1.bf16.msra.mxu0 0
  %1252 = vmatprep.subr.bf16.mxu0 0
  %1253 = vmatpush1.bf16.msra.mxu0 0
  %1254 = vmatprep.subr.bf16.mxu0 0
  %1255 = vmatpush1.bf16.msra.mxu0 0
  %1256 = vmatprep.subr.bf16.mxu0 0
  %1257 = vmatpush1.bf16.msra.mxu0 0
  %1258 = vmatprep.subr.bf16.mxu0 0
  %1259 = vmatpush1.bf16.msra.mxu0 0
  %1260 = vmatprep.mubr.bf16.mxu0 %v1183
  %1261 = vmatmul.mubr.bf16.gmra.mrb[0].mxu0 %v224
  %v1262 = vpop.f32.mrb[0].mxu0
  %v1263 = vadd.f32 0.0, %v1262
  %v1264 = vpop.f32.mrb[0].mxu0
  %v1265 = vadd.f32 0.0, %v1264
  %v1266 = vpop.f32.mrb[0].mxu0
  %v1267 = vadd.f32 0.0, %v1266
  %v1268 = vpop.f32.mrb[0].mxu0
  %v1269 = vadd.f32 0.0, %v1268
  %1270 = vdwg.mxu0
  %1271 = vmatprep.subr.bf16.mxu0 %v808
  %1272 = vmatpush1.bf16.msra.mxu0 %v807
  %1273 = vmatprep.subr.bf16.mxu0 %v829
  %1274 = vmatpush1.bf16.msra.mxu0 %v828
  %1275 = vmatprep.subr.bf16.mxu0 %v850
  %1276 = vmatpush1.bf16.msra.mxu0 %v849
  %1277 = vmatprep.subr.bf16.mxu0 %v871
  %1278 = vmatpush1.bf16.msra.mxu0 %v870
  %1279 = vmatprep.subr.bf16.mxu0 %v892
  %1280 = vmatpush1.bf16.msra.mxu0 %v891
  %1281 = vmatprep.subr.bf16.mxu0 %v913
  %1282 = vmatpush1.bf16.msra.mxu0 %v912
  %1283 = vmatprep.subr.bf16.mxu0 %v934
  %1284 = vmatpush1.bf16.msra.mxu0 %v933
  %1285 = vmatprep.subr.bf16.mxu0 %v955
  %1286 = vmatpush1.bf16.msra.mxu0 %v954
  %1287 = vmatprep.subr.bf16.mxu0 %v976
  %1288 = vmatpush1.bf16.msra.mxu0 %v975
  %1289 = vmatprep.subr.bf16.mxu0 0
  %1290 = vmatpush1.bf16.msra.mxu0 0
  %1291 = vmatprep.subr.bf16.mxu0 0
  %1292 = vmatpush1.bf16.msra.mxu0 0
  %1293 = vmatprep.subr.bf16.mxu0 0
  %1294 = vmatpush1.bf16.msra.mxu0 0
  %1295 = vmatprep.subr.bf16.mxu0 0
  %1296 = vmatpush1.bf16.msra.mxu0 0
  %1297 = vmatprep.subr.bf16.mxu0 0
  %1298 = vmatpush1.bf16.msra.mxu0 0
  %1299 = vmatprep.subr.bf16.mxu0 0
  %1300 = vmatpush1.bf16.msra.mxu0 0
  %1301 = vmatprep.subr.bf16.mxu0 0
  %1302 = vmatpush1.bf16.msra.mxu0 0
  %1303 = vmatprep.mubr.bf16.mxu0 %v1183
  %1304 = vmatmul.mubr.bf16.gmra.mrb[0].mxu0 %v224
  %v1305 = vpop.f32.mrb[0].mxu0
  %v1306 = vadd.f32 0.0, %v1305
  %v1307 = vpop.f32.mrb[0].mxu0
  %v1308 = vadd.f32 0.0, %v1307
  %v1309 = vpop.f32.mrb[0].mxu0
  %v1310 = vadd.f32 0.0, %v1309
  %v1311 = vpop.f32.mrb[0].mxu0
  %v1312 = vadd.f32 0.0, %v1311
  %1313 = vdwg.mxu0
  %1314 = vmatprep.subr.bf16.mxu0 %v810
  %1315 = vmatpush1.bf16.msra.mxu0 %v809
  %1316 = vmatprep.subr.bf16.mxu0 %v831
  %1317 = vmatpush1.bf16.msra.mxu0 %v830
  %1318 = vmatprep.subr.bf16.mxu0 %v852
  %1319 = vmatpush1.bf16.msra.mxu0 %v851
  %1320 = vmatprep.subr.bf16.mxu0 %v873
  %1321 = vmatpush1.bf16.msra.mxu0 %v872
  %1322 = vmatprep.subr.bf16.mxu0 %v894
  %1323 = vmatpush1.bf16.msra.mxu0 %v893
  %1324 = vmatprep.subr.bf16.mxu0 %v915
  %1325 = vmatpush1.bf16.msra.mxu0 %v914
  %1326 = vmatprep.subr.bf16.mxu0 %v936
  %1327 = vmatpush1.bf16.msra.mxu0 %v935
  %1328 = vmatprep.subr.bf16.mxu0 %v957
  %1329 = vmatpush1.bf16.msra.mxu0 %v956
  %1330 = vmatprep.subr.bf16.mxu0 %v978
  %1331 = vmatpush1.bf16.msra.mxu0 %v977
  %1332 = vmatprep.subr.bf16.mxu0 0
  %1333 = vmatpush1.bf16.msra.mxu0 0
  %1334 = vmatprep.subr.bf16.mxu0 0
  %1335 = vmatpush1.bf16.msra.mxu0 0
  %1336 = vmatprep.subr.bf16.mxu0 0
  %1337 = vmatpush1.bf16.msra.mxu0 0
  %1338 = vmatprep.subr.bf16.mxu0 0
  %1339 = vmatpush1.bf16.msra.mxu0 0
  %1340 = vmatprep.subr.bf16.mxu0 0
  %1341 = vmatpush1.bf16.msra.mxu0 0
  %1342 = vmatprep.subr.bf16.mxu0 0
  %1343 = vmatpush1.bf16.msra.mxu0 0
  %1344 = vmatprep.subr.bf16.mxu0 0
  %1345 = vmatpush1.bf16.msra.mxu0 0
  %1346 = vmatprep.mubr.bf16.mxu0 %v1183
  %1347 = vmatmul.mubr.bf16.gmra.mrb[0].mxu0 %v224
  %v1348 = vpop.f32.mrb[0].mxu0
  %v1349 = vadd.f32 0.0, %v1348
  %v1350 = vpop.f32.mrb[0].mxu0
  %v1351 = vadd.f32 0.0, %v1350
  %v1352 = vpop.f32.mrb[0].mxu0
  %v1353 = vadd.f32 0.0, %v1352
  %v1354 = vpop.f32.mrb[0].mxu0
  %v1355 = vadd.f32 0.0, %v1354
  %1356 = vdwg.mxu0
  %1357 = vmatprep.subr.bf16.mxu0 %v812
  %1358 = vmatpush1.bf16.msra.mxu0 %v811
  %1359 = vmatprep.subr.bf16.mxu0 %v833
  %1360 = vmatpush1.bf16.msra.mxu0 %v832
  %1361 = vmatprep.subr.bf16.mxu0 %v854
  %1362 = vmatpush1.bf16.msra.mxu0 %v853
  %1363 = vmatprep.subr.bf16.mxu0 %v875
  %1364 = vmatpush1.bf16.msra.mxu0 %v874
  %1365 = vmatprep.subr.bf16.mxu0 %v896
  %1366 = vmatpush1.bf16.msra.mxu0 %v895
  %1367 = vmatprep.subr.bf16.mxu0 %v917
  %1368 = vmatpush1.bf16.msra.mxu0 %v916
  %1369 = vmatprep.subr.bf16.mxu0 %v938
  %1370 = vmatpush1.bf16.msra.mxu0 %v937
  %1371 = vmatprep.subr.bf16.mxu0 %v959
  %1372 = vmatpush1.bf16.msra.mxu0 %v958
  %1373 = vmatprep.subr.bf16.mxu0 %v980
  %1374 = vmatpush1.bf16.msra.mxu0 %v979
  %1375 = vmatprep.subr.bf16.mxu0 0
  %1376 = vmatpush1.bf16.msra.mxu0 0
  %1377 = vmatprep.subr.bf16.mxu0 0
  %1378 = vmatpush1.bf16.msra.mxu0 0
  %1379 = vmatprep.subr.bf16.mxu0 0
  %1380 = vmatpush1.bf16.msra.mxu0 0
  %1381 = vmatprep.subr.bf16.mxu0 0
  %1382 = vmatpush1.bf16.msra.mxu0 0
  %1383 = vmatprep.subr.bf16.mxu0 0
  %1384 = vmatpush1.bf16.msra.mxu0 0
  %1385 = vmatprep.subr.bf16.mxu0 0
  %1386 = vmatpush1.bf16.msra.mxu0 0
  %1387 = vmatprep.subr.bf16.mxu0 0
  %1388 = vmatpush1.bf16.msra.mxu0 0
  %1389 = vmatprep.mubr.bf16.mxu0 %v1183
  %1390 = vmatmul.mubr.bf16.gmra.mrb[0].mxu0 %v224
  %v1391 = vpop.f32.mrb[0].mxu0
  %v1392 = vadd.f32 0.0, %v1391
  %v1393 = vpop.f32.mrb[0].mxu0
  %v1394 = vadd.f32 0.0, %v1393
  %v1395 = vpop.f32.mrb[0].mxu0
  %v1396 = vadd.f32 0.0, %v1395
  %v1397 = vpop.f32.mrb[0].mxu0
  %v1398 = vadd.f32 0.0, %v1397
  %1399 = vdwg.mxu0
  %1400 = vmatprep.subr.bf16.mxu0 %v814
  %1401 = vmatpush1.bf16.msra.mxu0 %v813
  %1402 = vmatprep.subr.bf16.mxu0 %v835
  %1403 = vmatpush1.bf16.msra.mxu0 %v834
  %1404 = vmatprep.subr.bf16.mxu0 %v856
  %1405 = vmatpush1.bf16.msra.mxu0 %v855
  %1406 = vmatprep.subr.bf16.mxu0 %v877
  %1407 = vmatpush1.bf16.msra.mxu0 %v876
  %1408 = vmatprep.subr.bf16.mxu0 %v898
  %1409 = vmatpush1.bf16.msra.mxu0 %v897
  %1410 = vmatprep.subr.bf16.mxu0 %v919
  %1411 = vmatpush1.bf16.msra.mxu0 %v918
  %1412 = vmatprep.subr.bf16.mxu0 %v940
  %1413 = vmatpush1.bf16.msra.mxu0 %v939
  %1414 = vmatprep.subr.bf16.mxu0 %v961
  %1415 = vmatpush1.bf16.msra.mxu0 %v960
  %1416 = vmatprep.subr.bf16.mxu0 %v982
  %1417 = vmatpush1.bf16.msra.mxu0 %v981
  %1418 = vmatprep.subr.bf16.mxu0 0
  %1419 = vmatpush1.bf16.msra.mxu0 0
  %1420 = vmatprep.subr.bf16.mxu0 0
  %1421 = vmatpush1.bf16.msra.mxu0 0
  %1422 = vmatprep.subr.bf16.mxu0 0
  %1423 = vmatpush1.bf16.msra.mxu0 0
  %1424 = vmatprep.subr.bf16.mxu0 0
  %1425 = vmatpush1.bf16.msra.mxu0 0
  %1426 = vmatprep.subr.bf16.mxu0 0
  %1427 = vmatpush1.bf16.msra.mxu0 0
  %1428 = vmatprep.subr.bf16.mxu0 0
  %1429 = vmatpush1.bf16.msra.mxu0 0
  %1430 = vmatprep.subr.bf16.mxu0 0
  %1431 = vmatpush1.bf16.msra.mxu0 0
  %1432 = vmatprep.mubr.bf16.mxu0 %v1183
  %1433 = vmatmul.mubr.bf16.gmra.mrb[0].mxu0 %v224
  %v1434 = vpop.f32.mrb[0].mxu0
  %v1435 = vadd.f32 0.0, %v1434
  %v1436 = vpop.f32.mrb[0].mxu0
  %v1437 = vadd.f32 0.0, %v1436
  %v1438 = vpop.f32.mrb[0].mxu0
  %v1439 = vadd.f32 0.0, %v1438
  %v1440 = vpop.f32.mrb[0].mxu0
  %v1441 = vadd.f32 0.0, %v1440
  %1442 = vdwg.mxu0
  %1443 = vmatprep.subr.bf16.mxu0 %v816
  %1444 = vmatpush1.bf16.msra.mxu0 %v815
  %1445 = vmatprep.subr.bf16.mxu0 %v837
  %1446 = vmatpush1.bf16.msra.mxu0 %v836
  %1447 = vmatprep.subr.bf16.mxu0 %v858
  %1448 = vmatpush1.bf16.msra.mxu0 %v857
  %1449 = vmatprep.subr.bf16.mxu0 %v879
  %1450 = vmatpush1.bf16.msra.mxu0 %v878
  %1451 = vmatprep.subr.bf16.mxu0 %v900
  %1452 = vmatpush1.bf16.msra.mxu0 %v899
  %1453 = vmatprep.subr.bf16.mxu0 %v921
  %1454 = vmatpush1.bf16.msra.mxu0 %v920
  %1455 = vmatprep.subr.bf16.mxu0 %v942
  %1456 = vmatpush1.bf16.msra.mxu0 %v941
  %1457 = vmatprep.subr.bf16.mxu0 %v963
  %1458 = vmatpush1.bf16.msra.mxu0 %v962
  %1459 = vmatprep.subr.bf16.mxu0 %v984
  %1460 = vmatpush1.bf16.msra.mxu0 %v983
  %1461 = vmatprep.subr.bf16.mxu0 0
  %1462 = vmatpush1.bf16.msra.mxu0 0
  %1463 = vmatprep.subr.bf16.mxu0 0
  %1464 = vmatpush1.bf16.msra.mxu0 0
  %1465 = vmatprep.subr.bf16.mxu0 0
  %1466 = vmatpush1.bf16.msra.mxu0 0
  %1467 = vmatprep.subr.bf16.mxu0 0
  %1468 = vmatpush1.bf16.msra.mxu0 0
  %1469 = vmatprep.subr.bf16.mxu0 0
  %1470 = vmatpush1.bf16.msra.mxu0 0
  %1471 = vmatprep.subr.bf16.mxu0 0
  %1472 = vmatpush1.bf16.msra.mxu0 0
  %1473 = vmatprep.subr.bf16.mxu0 0
  %1474 = vmatpush1.bf16.msra.mxu0 0
  %1475 = vmatprep.mubr.bf16.mxu0 %v1183
  %1476 = vmatmul.mubr.bf16.gmra.mrb[0].mxu0 %v224
  %v1477 = vpop.f32.mrb[0].mxu0
  %v1478 = vadd.f32 0.0, %v1477
  %v1479 = vpop.f32.mrb[0].mxu0
  %v1480 = vadd.f32 0.0, %v1479
  %v1481 = vpop.f32.mrb[0].mxu0
  %v1482 = vadd.f32 0.0, %v1481
  %v1483 = vpop.f32.mrb[0].mxu0
  %v1484 = vadd.f32 0.0, %v1483
  %1485 = vdwg.mxu0
  %1486 = vmatprep.subr.bf16.mxu0 %v818
  %1487 = vmatpush1.bf16.msra.mxu0 %v817
  %1488 = vmatprep.subr.bf16.mxu0 %v839
  %1489 = vmatpush1.bf16.msra.mxu0 %v838
  %1490 = vmatprep.subr.bf16.mxu0 %v860
  %1491 = vmatpush1.bf16.msra.mxu0 %v859
  %1492 = vmatprep.subr.bf16.mxu0 %v881
  %1493 = vmatpush1.bf16.msra.mxu0 %v880
  %1494 = vmatprep.subr.bf16.mxu0 %v902
  %1495 = vmatpush1.bf16.msra.mxu0 %v901
  %1496 = vmatprep.subr.bf16.mxu0 %v923
  %1497 = vmatpush1.bf16.msra.mxu0 %v922
  %1498 = vmatprep.subr.bf16.mxu0 %v944
  %1499 = vmatpush1.bf16.msra.mxu0 %v943
  %1500 = vmatprep.subr.bf16.mxu0 %v965
  %1501 = vmatpush1.bf16.msra.mxu0 %v964
  %1502 = vmatprep.subr.bf16.mxu0 %v986
  %1503 = vmatpush1.bf16.msra.mxu0 %v985
  %1504 = vmatprep.subr.bf16.mxu0 0
  %1505 = vmatpush1.bf16.msra.mxu0 0
  %1506 = vmatprep.subr.bf16.mxu0 0
  %1507 = vmatpush1.bf16.msra.mxu0 0
  %1508 = vmatprep.subr.bf16.mxu0 0
  %1509 = vmatpush1.bf16.msra.mxu0 0
  %1510 = vmatprep.subr.bf16.mxu0 0
  %1511 = vmatpush1.bf16.msra.mxu0 0
  %1512 = vmatprep.subr.bf16.mxu0 0
  %1513 = vmatpush1.bf16.msra.mxu0 0
  %1514 = vmatprep.subr.bf16.mxu0 0
  %1515 = vmatpush1.bf16.msra.mxu0 0
  %1516 = vmatprep.subr.bf16.mxu0 0
  %1517 = vmatpush1.bf16.msra.mxu0 0
  %1518 = vmatprep.mubr.bf16.mxu0 %v1183
  %1519 = vmatmul.mubr.bf16.gmra.mrb[0].mxu0 %v224
  %v1520 = vpop.f32.mrb[0].mxu0
  %v1521 = vadd.f32 0.0, %v1520
  %v1522 = vpop.f32.mrb[0].mxu0
  %v1523 = vadd.f32 0.0, %v1522
  %v1524 = vpop.f32.mrb[0].mxu0
  %v1525 = vadd.f32 0.0, %v1524
  %v1526 = vpop.f32.mrb[0].mxu0
  %v1527 = vadd.f32 0.0, %v1526
  %1528 = vdwg.mxu0
  %1529 = vmatprep.subr.bf16.mxu0 %v820
  %1530 = vmatpush1.bf16.msra.mxu0 %v819
  %1531 = vmatprep.subr.bf16.mxu0 %v841
  %1532 = vmatpush1.bf16.msra.mxu0 %v840
  %1533 = vmatprep.subr.bf16.mxu0 %v862
  %1534 = vmatpush1.bf16.msra.mxu0 %v861
  %1535 = vmatprep.subr.bf16.mxu0 %v883
  %1536 = vmatpush1.bf16.msra.mxu0 %v882
  %1537 = vmatprep.subr.bf16.mxu0 %v904
  %1538 = vmatpush1.bf16.msra.mxu0 %v903
  %1539 = vmatprep.subr.bf16.mxu0 %v925
  %1540 = vmatpush1.bf16.msra.mxu0 %v924
  %1541 = vmatprep.subr.bf16.mxu0 %v946
  %1542 = vmatpush1.bf16.msra.mxu0 %v945
  %1543 = vmatprep.subr.bf16.mxu0 %v967
  %1544 = vmatpush1.bf16.msra.mxu0 %v966
  %1545 = vmatprep.subr.bf16.mxu0 %v988
  %1546 = vmatpush1.bf16.msra.mxu0 %v987
  %1547 = vmatprep.subr.bf16.mxu0 0
  %1548 = vmatpush1.bf16.msra.mxu0 0
  %1549 = vmatprep.subr.bf16.mxu0 0
  %1550 = vmatpush1.bf16.msra.mxu0 0
  %1551 = vmatprep.subr.bf16.mxu0 0
  %1552 = vmatpush1.bf16.msra.mxu0 0
  %1553 = vmatprep.subr.bf16.mxu0 0
  %1554 = vmatpush1.bf16.msra.mxu0 0
  %1555 = vmatprep.subr.bf16.mxu0 0
  %1556 = vmatpush1.bf16.msra.mxu0 0
  %1557 = vmatprep.subr.bf16.mxu0 0
  %1558 = vmatpush1.bf16.msra.mxu0 0
  %1559 = vmatprep.subr.bf16.mxu0 0
  %1560 = vmatpush1.bf16.msra.mxu0 0
  %1561 = vmatprep.mubr.bf16.mxu0 %v1183
  %1562 = vmatmul.mubr.bf16.gmra.mrb[0].mxu0 %v224
  %v1563 = vpop.f32.mrb[0].mxu0
  %v1564 = vadd.f32 0.0, %v1563
  %v1565 = vpop.f32.mrb[0].mxu0
  %v1566 = vadd.f32 0.0, %v1565
  %v1567 = vpop.f32.mrb[0].mxu0
  %v1568 = vadd.f32 0.0, %v1567
  %v1569 = vpop.f32.mrb[0].mxu0
  %v1570 = vadd.f32 0.0, %v1569
  %1571 = vdwg.mxu0
  %1572 = vmatprep.subr.bf16.mxu0 %v822
  %1573 = vmatpush1.bf16.msra.mxu0 %v821
  %1574 = vmatprep.subr.bf16.mxu0 %v843
  %1575 = vmatpush1.bf16.msra.mxu0 %v842
  %1576 = vmatprep.subr.bf16.mxu0 %v864
  %1577 = vmatpush1.bf16.msra.mxu0 %v863
  %1578 = vmatprep.subr.bf16.mxu0 %v885
  %1579 = vmatpush1.bf16.msra.mxu0 %v884
  %1580 = vmatprep.subr.bf16.mxu0 %v906
  %1581 = vmatpush1.bf16.msra.mxu0 %v905
  %1582 = vmatprep.subr.bf16.mxu0 %v927
  %1583 = vmatpush1.bf16.msra.mxu0 %v926
  %1584 = vmatprep.subr.bf16.mxu0 %v948
  %1585 = vmatpush1.bf16.msra.mxu0 %v947
  %1586 = vmatprep.subr.bf16.mxu0 %v969
  %1587 = vmatpush1.bf16.msra.mxu0 %v968
  %1588 = vmatprep.subr.bf16.mxu0 %v990
  %1589 = vmatpush1.bf16.msra.mxu0 %v989
  %1590 = vmatprep.subr.bf16.mxu0 0
  %1591 = vmatpush1.bf16.msra.mxu0 0
  %1592 = vmatprep.subr.bf16.mxu0 0
  %1593 = vmatpush1.bf16.msra.mxu0 0
  %1594 = vmatprep.subr.bf16.mxu0 0
  %1595 = vmatpush1.bf16.msra.mxu0 0
  %1596 = vmatprep.subr.bf16.mxu0 0
  %1597 = vmatpush1.bf16.msra.mxu0 0
  %1598 = vmatprep.subr.bf16.mxu0 0
  %1599 = vmatpush1.bf16.msra.mxu0 0
  %1600 = vmatprep.subr.bf16.mxu0 0
  %1601 = vmatpush1.bf16.msra.mxu0 0
  %1602 = vmatprep.subr.bf16.mxu0 0
  %1603 = vmatpush1.bf16.msra.mxu0 0
  %1604 = vmatprep.mubr.bf16.mxu0 %v1183
  %1605 = vmatmul.mubr.bf16.gmra.mrb[0].mxu0 %v224
  %v1606 = vpop.f32.mrb[0].mxu0
  %v1607 = vadd.f32 0.0, %v1606
  %v1608 = vpop.f32.mrb[0].mxu0
  %v1609 = vadd.f32 0.0, %v1608
  %v1610 = vpop.f32.mrb[0].mxu0
  %v1611 = vadd.f32 0.0, %v1610
  %v1612 = vpop.f32.mrb[0].mxu0
  %v1613 = vadd.f32 0.0, %v1612
  %1614 = vdwg.mxu0
  %1615 = vmatprep.subr.bf16.mxu0 0
  %1616 = vmatpush1.bf16.msra.mxu0 %v823
  %1617 = vmatprep.subr.bf16.mxu0 0
  %1618 = vmatpush1.bf16.msra.mxu0 %v844
  %1619 = vmatprep.subr.bf16.mxu0 0
  %1620 = vmatpush1.bf16.msra.mxu0 %v865
  %1621 = vmatprep.subr.bf16.mxu0 0
  %1622 = vmatpush1.bf16.msra.mxu0 %v886
  %1623 = vmatprep.subr.bf16.mxu0 0
  %1624 = vmatpush1.bf16.msra.mxu0 %v907
  %1625 = vmatprep.subr.bf16.mxu0 0
  %1626 = vmatpush1.bf16.msra.mxu0 %v928
  %1627 = vmatprep.subr.bf16.mxu0 0
  %1628 = vmatpush1.bf16.msra.mxu0 %v949
  %1629 = vmatprep.subr.bf16.mxu0 0
  %1630 = vmatpush1.bf16.msra.mxu0 %v970
  %1631 = vmatprep.subr.bf16.mxu0 0
  %1632 = vmatpush1.bf16.msra.mxu0 %v991
  %1633 = vmatprep.subr.bf16.mxu0 0
  %1634 = vmatpush1.bf16.msra.mxu0 0
  %1635 = vmatprep.subr.bf16.mxu0 0
  %1636 = vmatpush1.bf16.msra.mxu0 0
  %1637 = vmatprep.subr.bf16.mxu0 0
  %1638 = vmatpush1.bf16.msra.mxu0 0
  %1639 = vmatprep.subr.bf16.mxu0 0
  %1640 = vmatpush1.bf16.msra.mxu0 0
  %1641 = vmatprep.subr.bf16.mxu0 0
  %1642 = vmatpush1.bf16.msra.mxu0 0
  %1643 = vmatprep.subr.bf16.mxu0 0
  %1644 = vmatpush1.bf16.msra.mxu0 0
  %1645 = vmatprep.subr.bf16.mxu0 0
  %1646 = vmatpush1.bf16.msra.mxu0 0
  %1647 = vmatprep.mubr.bf16.mxu0 %v1183
  %1648 = vmatmul.mubr.bf16.gmra.mrb[0].mxu0 %v224
  %v1649 = vpop.f32.mrb[0].mxu0
  %v1650 = vadd.f32 0.0, %v1649
  %v1651 = vpop.f32.mrb[0].mxu0
  %v1652 = vpop.f32.mrb[0].mxu0
  %v1653 = vadd.f32 0.0, %v1652
  %v1654 = vpop.f32.mrb[0].mxu0
  %1655 = vdwg.mxu0
  %v1656 = vld [vmem:[%s3] sm:$0xff]
  %v1657 = vld [vmem:[%s3 + $0x8] sm:$0xff]
  %v1658 = vld [vmem:[%s3 + $0x10] sm:$0xff]
  %v1659 = vld [vmem:[%s3 + $0x18] sm:$0xff]
  %v1660 = vld [vmem:[%s3 + $0x20] sm:$0xff]
  %v1661 = vld [vmem:[%s3 + $0x28] sm:$0xff]
  %v1662 = vld [vmem:[%s3 + $0x30] sm:$0xff]
  %v1663 = vld [vmem:[%s3 + $0x38] sm:$0xff]
  %v1664 = vld [vmem:[%s3 + $0x40] sm:$0xff]
  %v1665 = vld [vmem:[%s3 + $0x48] sm:$0xff]
  %v1666 = vld [vmem:[%s3 + $0x50] sm:$0xff]
  %v1667 = vld [vmem:[%s3 + $0x58] sm:$0xff]
  %v1668 = vld [vmem:[%s3 + $0x60] sm:$0xff]
  %v1669 = vld [vmem:[%s3 + $0x68] sm:$0xff]
  %v1670 = vld [vmem:[%s1] sm:$0xff]
  %v1671 = vld [vmem:[%s1 + $0x8] sm:$0xff]
  %v1672 = vld [vmem:[%s1 + $0x10] sm:$0xff]
  %v1673 = vld [vmem:[%s1 + $0x18] sm:$0xff]
  %v1674 = vld [vmem:[%s1 + $0x20] sm:$0xff]
  %v1675 = vld [vmem:[%s1 + $0x28] sm:$0xff]
  %v1676 = vld [vmem:[%s1 + $0x30] sm:$0xff]
  %v1677 = vld [vmem:[%s1 + $0x38] sm:$0xff]
  %v1679 = vsel %vm1181, %v1670, 0
  %v1682 = vsel %vm1181, %v1671, 0
  %v1685 = vsel %vm1181, %v1672, 0
  %v1688 = vsel %vm1181, %v1673, 0
  %v1691 = vsel %vm1181, %v1674, 0
  %v1694 = vsel %vm1181, %v1675, 0
  %v1697 = vsel %vm1181, %v1676, 0
  %v1700 = vsel %vm1181, %v1677, 0
  %1702 = vmatprep.subr.mxu0 %v1657
  %1703 = vmatpush1.msra.mxu0 %v1656
  %1704 = vmatprep.subr.mxu0 %v1664
  %1705 = vmatpush1.msra.mxu0 %v1663
  %1706 = vmatprep.subr.mxu0 0.0
  %1707 = vmatpush1.msra.mxu0 0.0
  %1708 = vmatprep.subr.mxu0 0.0
  %1709 = vmatpush1.msra.mxu0 0.0
  %1710 = vmatprep.subr.mxu0 0.0
  %1711 = vmatpush1.msra.mxu0 0.0
  %1712 = vmatprep.subr.mxu0 0.0
  %1713 = vmatpush1.msra.mxu0 0.0
  %1714 = vmatprep.subr.mxu0 0.0
  %1715 = vmatpush1.msra.mxu0 0.0
  %1716 = vmatprep.subr.mxu0 0.0
  %1717 = vmatpush1.msra.mxu0 0.0
  %1718 = vmatprep.subr.mxu0 0.0
  %1719 = vmatpush1.msra.mxu0 0.0
  %1720 = vmatprep.subr.mxu0 0.0
  %1721 = vmatpush1.msra.mxu0 0.0
  %1722 = vmatprep.subr.mxu0 0.0
  %1723 = vmatpush1.msra.mxu0 0.0
  %1724 = vmatprep.subr.mxu0 0.0
  %1725 = vmatpush1.msra.mxu0 0.0
  %1726 = vmatprep.subr.mxu0 0.0
  %1727 = vmatpush1.msra.mxu0 0.0
  %1728 = vmatprep.subr.mxu0 0.0
  %1729 = vmatpush1.msra.mxu0 0.0
  %1730 = vmatprep.subr.mxu0 0.0
  %1731 = vmatpush1.msra.mxu0 0.0
  %1732 = vmatprep.subr.mxu0 0.0
  %1733 = vmatpush1.msra.mxu0 0.0
  %1734 = vmatprep.subr.mxu0 0.0
  %1735 = vmatpush1.msra.mxu0 0.0
  %1736 = vmatprep.subr.mxu0 0.0
  %1737 = vmatpush1.msra.mxu0 0.0
  %1738 = vmatprep.subr.mxu0 0.0
  %1739 = vmatpush1.msra.mxu0 0.0
  %1740 = vmatprep.subr.mxu0 0.0
  %1741 = vmatpush1.msra.mxu0 0.0
  %1742 = vmatprep.subr.mxu0 0.0
  %1743 = vmatpush1.msra.mxu0 0.0
  %1744 = vmatprep.subr.mxu0 0.0
  %1745 = vmatpush1.msra.mxu0 0.0
  %1746 = vmatprep.subr.mxu0 0.0
  %1747 = vmatpush1.msra.mxu0 0.0
  %1748 = vmatprep.subr.mxu0 0.0
  %1749 = vmatpush1.msra.mxu0 0.0
  %1750 = vmatprep.subr.mxu0 0.0
  %1751 = vmatpush1.msra.mxu0 0.0
  %1752 = vmatprep.subr.mxu0 0.0
  %1753 = vmatpush1.msra.mxu0 0.0
  %1754 = vmatprep.subr.mxu0 0.0
  %1755 = vmatpush1.msra.mxu0 0.0
  %1756 = vmatprep.subr.mxu0 0.0
  %1757 = vmatpush1.msra.mxu0 0.0
  %1758 = vmatprep.subr.mxu0 0.0
  %1759 = vmatpush1.msra.mxu0 0.0
  %1760 = vmatprep.subr.mxu0 0.0
  %1761 = vmatpush1.msra.mxu0 0.0
  %1762 = vmatprep.subr.mxu0 0.0
  %1763 = vmatpush1.msra.mxu0 0.0
  %1764 = vmatprep.subr.mxu0 0.0
  %1765 = vmatpush1.msra.mxu0 0.0
  %1766 = vmatprep.mubr.f32.mxu0 0.0
  %1767 = vmatmul.mubr.f32.gmra.mrb[0].mxu0 %v1679
  %v1768 = vpop.f32.mrb[0].mxu0
  %v1769 = vadd.f32 0.0, %v1768
  %v1770 = vpop.f32.mrb[0].mxu0
  %v1771 = vadd.f32 0.0, %v1770
  %1772 = vmatprep.mubr.f32.mxu0 0.0
  %1773 = vmatmul.mubr.f32.gmra.mrb[0].mxu0 %v1682
  %v1774 = vpop.f32.mrb[0].mxu0
  %v1775 = vadd.f32 0.0, %v1774
  %v1776 = vpop.f32.mrb[0].mxu0
  %v1777 = vadd.f32 0.0, %v1776
  %1778 = vmatprep.mubr.f32.mxu0 0.0
  %1779 = vmatmul.mubr.f32.gmra.mrb[0].mxu0 %v1685
  %v1780 = vpop.f32.mrb[0].mxu0
  %v1781 = vadd.f32 0.0, %v1780
  %v1782 = vpop.f32.mrb[0].mxu0
  %v1783 = vadd.f32 0.0, %v1782
  %1784 = vmatprep.mubr.f32.mxu0 0.0
  %1785 = vmatmul.mubr.f32.gmra.mrb[0].mxu0 %v1688
  %v1786 = vpop.f32.mrb[0].mxu0
  %v1787 = vadd.f32 0.0, %v1786
  %v1788 = vpop.f32.mrb[0].mxu0
  %v1789 = vadd.f32 0.0, %v1788
  %1790 = vmatprep.mubr.f32.mxu0 0.0
  %1791 = vmatmul.mubr.f32.gmra.mrb[0].mxu0 %v1691
  %v1792 = vpop.f32.mrb[0].mxu0
  %v1793 = vadd.f32 0.0, %v1792
  %v1794 = vpop.f32.mrb[0].mxu0
  %v1795 = vadd.f32 0.0, %v1794
  %1796 = vmatprep.mubr.f32.mxu0 0.0
  %1797 = vmatmul.mubr.f32.gmra.mrb[0].mxu0 %v1694
  %v1798 = vpop.f32.mrb[0].mxu0
  %v1799 = vadd.f32 0.0, %v1798
  %v1800 = vpop.f32.mrb[0].mxu0
  %v1801 = vadd.f32 0.0, %v1800
  %1802 = vmatprep.mubr.f32.mxu0 0.0
  %1803 = vmatmul.mubr.f32.gmra.mrb[0].mxu0 %v1697
  %v1804 = vpop.f32.mrb[0].mxu0
  %v1805 = vadd.f32 0.0, %v1804
  %v1806 = vpop.f32.mrb[0].mxu0
  %v1807 = vadd.f32 0.0, %v1806
  %1808 = vmatprep.mubr.f32.mxu0 0.0
  %1809 = vmatmul.mubr.f32.gmra.mrb[0].mxu0 %v1700
  %v1810 = vpop.f32.mrb[0].mxu0
  %v1811 = vadd.f32 0.0, %v1810
  %v1812 = vpop.f32.mrb[0].mxu0
  %v1813 = vadd.f32 0.0, %v1812
  %1814 = vdwg.mxu0
  %1815 = vmatprep.subr.mxu0 %v1659
  %1816 = vmatpush1.msra.mxu0 %v1658
  %1817 = vmatprep.subr.mxu0 %v1666
  %1818 = vmatpush1.msra.mxu0 %v1665
  %1819 = vmatprep.subr.mxu0 0.0
  %1820 = vmatpush1.msra.mxu0 0.0
  %1821 = vmatprep.subr.mxu0 0.0
  %1822 = vmatpush1.msra.mxu0 0.0
  %1823 = vmatprep.subr.mxu0 0.0
  %1824 = vmatpush1.msra.mxu0 0.0
  %1825 = vmatprep.subr.mxu0 0.0
  %1826 = vmatpush1.msra.mxu0 0.0
  %1827 = vmatprep.subr.mxu0 0.0
  %1828 = vmatpush1.msra.mxu0 0.0
  %1829 = vmatprep.subr.mxu0 0.0
  %1830 = vmatpush1.msra.mxu0 0.0
  %1831 = vmatprep.subr.mxu0 0.0
  %1832 = vmatpush1.msra.mxu0 0.0
  %1833 = vmatprep.subr.mxu0 0.0
  %1834 = vmatpush1.msra.mxu0 0.0
  %1835 = vmatprep.subr.mxu0 0.0
  %1836 = vmatpush1.msra.mxu0 0.0
  %1837 = vmatprep.subr.mxu0 0.0
  %1838 = vmatpush1.msra.mxu0 0.0
  %1839 = vmatprep.subr.mxu0 0.0
  %1840 = vmatpush1.msra.mxu0 0.0
  %1841 = vmatprep.subr.mxu0 0.0
  %1842 = vmatpush1.msra.mxu0 0.0
  %1843 = vmatprep.subr.mxu0 0.0
  %1844 = vmatpush1.msra.mxu0 0.0
  %1845 = vmatprep.subr.mxu0 0.0
  %1846 = vmatpush1.msra.mxu0 0.0
  %1847 = vmatprep.subr.mxu0 0.0
  %1848 = vmatpush1.msra.mxu0 0.0
  %1849 = vmatprep.subr.mxu0 0.0
  %1850 = vmatpush1.msra.mxu0 0.0
  %1851 = vmatprep.subr.mxu0 0.0
  %1852 = vmatpush1.msra.mxu0 0.0
  %1853 = vmatprep.subr.mxu0 0.0
  %1854 = vmatpush1.msra.mxu0 0.0
  %1855 = vmatprep.subr.mxu0 0.0
  %1856 = vmatpush1.msra.mxu0 0.0
  %1857 = vmatprep.subr.mxu0 0.0
  %1858 = vmatpush1.msra.mxu0 0.0
  %1859 = vmatprep.subr.mxu0 0.0
  %1860 = vmatpush1.msra.mxu0 0.0
  %1861 = vmatprep.subr.mxu0 0.0
  %1862 = vmatpush1.msra.mxu0 0.0
  %1863 = vmatprep.subr.mxu0 0.0
  %1864 = vmatpush1.msra.mxu0 0.0
  %1865 = vmatprep.subr.mxu0 0.0
  %1866 = vmatpush1.msra.mxu0 0.0
  %1867 = vmatprep.subr.mxu0 0.0
  %1868 = vmatpush1.msra.mxu0 0.0
  %1869 = vmatprep.subr.mxu0 0.0
  %1870 = vmatpush1.msra.mxu0 0.0
  %1871 = vmatprep.subr.mxu0 0.0
  %1872 = vmatpush1.msra.mxu0 0.0
  %1873 = vmatprep.subr.mxu0 0.0
  %1874 = vmatpush1.msra.mxu0 0.0
  %1875 = vmatprep.subr.mxu0 0.0
  %1876 = vmatpush1.msra.mxu0 0.0
  %1877 = vmatprep.subr.mxu0 0.0
  %1878 = vmatpush1.msra.mxu0 0.0
  %1879 = vmatprep.mubr.f32.mxu0 0.0
  %1880 = vmatmul.mubr.f32.gmra.mrb[0].mxu0 %v1679
  %v1881 = vpop.f32.mrb[0].mxu0
  %v1882 = vadd.f32 0.0, %v1881
  %v1883 = vpop.f32.mrb[0].mxu0
  %v1884 = vadd.f32 0.0, %v1883
  %1885 = vmatprep.mubr.f32.mxu0 0.0
  %1886 = vmatmul.mubr.f32.gmra.mrb[0].mxu0 %v1682
  %v1887 = vpop.f32.mrb[0].mxu0
  %v1888 = vadd.f32 0.0, %v1887
  %v1889 = vpop.f32.mrb[0].mxu0
  %v1890 = vadd.f32 0.0, %v1889
  %1891 = vmatprep.mubr.f32.mxu0 0.0
  %1892 = vmatmul.mubr.f32.gmra.mrb[0].mxu0 %v1685
  %v1893 = vpop.f32.mrb[0].mxu0
  %v1894 = vadd.f32 0.0, %v1893
  %v1895 = vpop.f32.mrb[0].mxu0
  %v1896 = vadd.f32 0.0, %v1895
  %1897 = vmatprep.mubr.f32.mxu0 0.0
  %1898 = vmatmul.mubr.f32.gmra.mrb[0].mxu0 %v1688
  %v1899 = vpop.f32.mrb[0].mxu0
  %v1900 = vadd.f32 0.0, %v1899
  %v1901 = vpop.f32.mrb[0].mxu0
  %v1902 = vadd.f32 0.0, %v1901
  %1903 = vmatprep.mubr.f32.mxu0 0.0
  %1904 = vmatmul.mubr.f32.gmra.mrb[0].mxu0 %v1691
  %v1905 = vpop.f32.mrb[0].mxu0
  %v1906 = vadd.f32 0.0, %v1905
  %v1907 = vpop.f32.mrb[0].mxu0
  %v1908 = vadd.f32 0.0, %v1907
  %1909 = vmatprep.mubr.f32.mxu0 0.0
  %1910 = vmatmul.mubr.f32.gmra.mrb[0].mxu0 %v1694
  %v1911 = vpop.f32.mrb[0].mxu0
  %v1912 = vadd.f32 0.0, %v1911
  %v1913 = vpop.f32.mrb[0].mxu0
  %v1914 = vadd.f32 0.0, %v1913
  %1915 = vmatprep.mubr.f32.mxu0 0.0
  %1916 = vmatmul.mubr.f32.gmra.mrb[0].mxu0 %v1697
  %v1917 = vpop.f32.mrb[0].mxu0
  %v1918 = vadd.f32 0.0, %v1917
  %v1919 = vpop.f32.mrb[0].mxu0
  %v1920 = vadd.f32 0.0, %v1919
  %1921 = vmatprep.mubr.f32.mxu0 0.0
  %1922 = vmatmul.mubr.f32.gmra.mrb[0].mxu0 %v1700
  %v1923 = vpop.f32.mrb[0].mxu0
  %v1924 = vadd.f32 0.0, %v1923
  %v1925 = vpop.f32.mrb[0].mxu0
  %v1926 = vadd.f32 0.0, %v1925
  %1927 = vdwg.mxu0
  %1928 = vmatprep.subr.mxu0 %v1661
  %1929 = vmatpush1.msra.mxu0 %v1660
  %1930 = vmatprep.subr.mxu0 %v1668
  %1931 = vmatpush1.msra.mxu0 %v1667
  %1932 = vmatprep.subr.mxu0 0.0
  %1933 = vmatpush1.msra.mxu0 0.0
  %1934 = vmatprep.subr.mxu0 0.0
  %1935 = vmatpush1.msra.mxu0 0.0
  %1936 = vmatprep.subr.mxu0 0.0
  %1937 = vmatpush1.msra.mxu0 0.0
  %1938 = vmatprep.subr.mxu0 0.0
  %1939 = vmatpush1.msra.mxu0 0.0
  %1940 = vmatprep.subr.mxu0 0.0
  %1941 = vmatpush1.msra.mxu0 0.0
  %1942 = vmatprep.subr.mxu0 0.0
  %1943 = vmatpush1.msra.mxu0 0.0
  %1944 = vmatprep.subr.mxu0 0.0
  %1945 = vmatpush1.msra.mxu0 0.0
  %1946 = vmatprep.subr.mxu0 0.0
  %1947 = vmatpush1.msra.mxu0 0.0
  %1948 = vmatprep.subr.mxu0 0.0
  %1949 = vmatpush1.msra.mxu0 0.0
  %1950 = vmatprep.subr.mxu0 0.0
  %1951 = vmatpush1.msra.mxu0 0.0
  %1952 = vmatprep.subr.mxu0 0.0
  %1953 = vmatpush1.msra.mxu0 0.0
  %1954 = vmatprep.subr.mxu0 0.0
  %1955 = vmatpush1.msra.mxu0 0.0
  %1956 = vmatprep.subr.mxu0 0.0
  %1957 = vmatpush1.msra.mxu0 0.0
  %1958 = vmatprep.subr.mxu0 0.0
  %1959 = vmatpush1.msra.mxu0 0.0
  %1960 = vmatprep.subr.mxu0 0.0
  %1961 = vmatpush1.msra.mxu0 0.0
  %1962 = vmatprep.subr.mxu0 0.0
  %1963 = vmatpush1.msra.mxu0 0.0
  %1964 = vmatprep.subr.mxu0 0.0
  %1965 = vmatpush1.msra.mxu0 0.0
  %1966 = vmatprep.subr.mxu0 0.0
  %1967 = vmatpush1.msra.mxu0 0.0
  %1968 = vmatprep.subr.mxu0 0.0
  %1969 = vmatpush1.msra.mxu0 0.0
  %1970 = vmatprep.subr.mxu0 0.0
  %1971 = vmatpush1.msra.mxu0 0.0
  %1972 = vmatprep.subr.mxu0 0.0
  %1973 = vmatpush1.msra.mxu0 0.0
  %1974 = vmatprep.subr.mxu0 0.0
  %1975 = vmatpush1.msra.mxu0 0.0
  %1976 = vmatprep.subr.mxu0 0.0
  %1977 = vmatpush1.msra.mxu0 0.0
  %1978 = vmatprep.subr.mxu0 0.0
  %1979 = vmatpush1.msra.mxu0 0.0
  %1980 = vmatprep.subr.mxu0 0.0
  %1981 = vmatpush1.msra.mxu0 0.0
  %1982 = vmatprep.subr.mxu0 0.0
  %1983 = vmatpush1.msra.mxu0 0.0
  %1984 = vmatprep.subr.mxu0 0.0
  %1985 = vmatpush1.msra.mxu0 0.0
  %1986 = vmatprep.subr.mxu0 0.0
  %1987 = vmatpush1.msra.mxu0 0.0
  %1988 = vmatprep.subr.mxu0 0.0
  %1989 = vmatpush1.msra.mxu0 0.0
  %1990 = vmatprep.subr.mxu0 0.0
  %1991 = vmatpush1.msra.mxu0 0.0
  %1992 = vmatprep.mubr.f32.mxu0 0.0
  %1993 = vmatmul.mubr.f32.gmra.mrb[0].mxu0 %v1679
  %v1994 = vpop.f32.mrb[0].mxu0
  %v1995 = vadd.f32 0.0, %v1994
  %v1996 = vpop.f32.mrb[0].mxu0
  %v1997 = vadd.f32 0.0, %v1996
  %1998 = vmatprep.mubr.f32.mxu0 0.0
  %1999 = vmatmul.mubr.f32.gmra.mrb[0].mxu0 %v1682
  %v2000 = vpop.f32.mrb[0].mxu0
  %v2001 = vadd.f32 0.0, %v2000
  %v2002 = vpop.f32.mrb[0].mxu0
  %v2003 = vadd.f32 0.0, %v2002
  %2004 = vmatprep.mubr.f32.mxu0 0.0
  %2005 = vmatmul.mubr.f32.gmra.mrb[0].mxu0 %v1685
  %v2006 = vpop.f32.mrb[0].mxu0
  %v2007 = vadd.f32 0.0, %v2006
  %v2008 = vpop.f32.mrb[0].mxu0
  %v2009 = vadd.f32 0.0, %v2008
  %2010 = vmatprep.mubr.f32.mxu0 0.0
  %2011 = vmatmul.mubr.f32.gmra.mrb[0].mxu0 %v1688
  %v2012 = vpop.f32.mrb[0].mxu0
  %v2013 = vadd.f32 0.0, %v2012
  %v2014 = vpop.f32.mrb[0].mxu0
  %v2015 = vadd.f32 0.0, %v2014
  %2016 = vmatprep.mubr.f32.mxu0 0.0
  %2017 = vmatmul.mubr.f32.gmra.mrb[0].mxu0 %v1691
  %v2018 = vpop.f32.mrb[0].mxu0
  %v2019 = vadd.f32 0.0, %v2018
  %v2020 = vpop.f32.mrb[0].mxu0
  %v2021 = vadd.f32 0.0, %v2020
  %2022 = vmatprep.mubr.f32.mxu0 0.0
  %2023 = vmatmul.mubr.f32.gmra.mrb[0].mxu0 %v1694
  %v2024 = vpop.f32.mrb[0].mxu0
  %v2025 = vadd.f32 0.0, %v2024
  %v2026 = vpop.f32.mrb[0].mxu0
  %v2027 = vadd.f32 0.0, %v2026
  %2028 = vmatprep.mubr.f32.mxu0 0.0
  %2029 = vmatmul.mubr.f32.gmra.mrb[0].mxu0 %v1697
  %v2030 = vpop.f32.mrb[0].mxu0
  %v2031 = vadd.f32 0.0, %v2030
  %v2032 = vpop.f32.mrb[0].mxu0
  %v2033 = vadd.f32 0.0, %v2032
  %2034 = vmatprep.mubr.f32.mxu0 0.0
  %2035 = vmatmul.mubr.f32.gmra.mrb[0].mxu0 %v1700
  %v2036 = vpop.f32.mrb[0].mxu0
  %v2037 = vadd.f32 0.0, %v2036
  %v2038 = vpop.f32.mrb[0].mxu0
  %v2039 = vadd.f32 0.0, %v2038
  %2040 = vdwg.mxu0
  %2041 = vmatprep.subr.mxu0 0.0
  %2042 = vmatpush1.msra.mxu0 %v1662
  %2043 = vmatprep.subr.mxu0 0.0
  %2044 = vmatpush1.msra.mxu0 %v1669
  %2045 = vmatprep.subr.mxu0 0.0
  %2046 = vmatpush1.msra.mxu0 0.0
  %2047 = vmatprep.subr.mxu0 0.0
  %2048 = vmatpush1.msra.mxu0 0.0
  %2049 = vmatprep.subr.mxu0 0.0
  %2050 = vmatpush1.msra.mxu0 0.0
  %2051 = vmatprep.subr.mxu0 0.0
  %2052 = vmatpush1.msra.mxu0 0.0
  %2053 = vmatprep.subr.mxu0 0.0
  %2054 = vmatpush1.msra.mxu0 0.0
  %2055 = vmatprep.subr.mxu0 0.0
  %2056 = vmatpush1.msra.mxu0 0.0
  %2057 = vmatprep.subr.mxu0 0.0
  %2058 = vmatpush1.msra.mxu0 0.0
  %2059 = vmatprep.subr.mxu0 0.0
  %2060 = vmatpush1.msra.mxu0 0.0
  %2061 = vmatprep.subr.mxu0 0.0
  %2062 = vmatpush1.msra.mxu0 0.0
  %2063 = vmatprep.subr.mxu0 0.0
  %2064 = vmatpush1.msra.mxu0 0.0
  %2065 = vmatprep.subr.mxu0 0.0
  %2066 = vmatpush1.msra.mxu0 0.0
  %2067 = vmatprep.subr.mxu0 0.0
  %2068 = vmatpush1.msra.mxu0 0.0
  %2069 = vmatprep.subr.mxu0 0.0
  %2070 = vmatpush1.msra.mxu0 0.0
  %2071 = vmatprep.subr.mxu0 0.0
  %2072 = vmatpush1.msra.mxu0 0.0
  %2073 = vmatprep.subr.mxu0 0.0
  %2074 = vmatpush1.msra.mxu0 0.0
  %2075 = vmatprep.subr.mxu0 0.0
  %2076 = vmatpush1.msra.mxu0 0.0
  %2077 = vmatprep.subr.mxu0 0.0
  %2078 = vmatpush1.msra.mxu0 0.0
  %2079 = vmatprep.subr.mxu0 0.0
  %2080 = vmatpush1.msra.mxu0 0.0
  %2081 = vmatprep.subr.mxu0 0.0
  %2082 = vmatpush1.msra.mxu0 0.0
  %2083 = vmatprep.subr.mxu0 0.0
  %2084 = vmatpush1.msra.mxu0 0.0
  %2085 = vmatprep.subr.mxu0 0.0
  %2086 = vmatpush1.msra.mxu0 0.0
  %2087 = vmatprep.subr.mxu0 0.0
  %2088 = vmatpush1.msra.mxu0 0.0
  %2089 = vmatprep.subr.mxu0 0.0
  %2090 = vmatpush1.msra.mxu0 0.0
  %2091 = vmatprep.subr.mxu0 0.0
  %2092 = vmatpush1.msra.mxu0 0.0
  %2093 = vmatprep.subr.mxu0 0.0
  %2094 = vmatpush1.msra.mxu0 0.0
  %2095 = vmatprep.subr.mxu0 0.0
  %2096 = vmatpush1.msra.mxu0 0.0
  %2097 = vmatprep.subr.mxu0 0.0
  %2098 = vmatpush1.msra.mxu0 0.0
  %2099 = vmatprep.subr.mxu0 0.0
  %2100 = vmatpush1.msra.mxu0 0.0
  %2101 = vmatprep.subr.mxu0 0.0
  %2102 = vmatpush1.msra.mxu0 0.0
  %2103 = vmatprep.subr.mxu0 0.0
  %2104 = vmatpush1.msra.mxu0 0.0
  %2105 = vmatprep.mubr.f32.mxu0 0.0
  %2106 = vmatmul.mubr.f32.gmra.mrb[0].mxu0 %v1679
  %v2107 = vpop.f32.mrb[0].mxu0
  %v2108 = vadd.f32 0.0, %v2107
  %v2109 = vpop.f32.mrb[0].mxu0
  %2110 = vmatprep.mubr.f32.mxu0 0.0
  %2111 = vmatmul.mubr.f32.gmra.mrb[0].mxu0 %v1682
  %v2112 = vpop.f32.mrb[0].mxu0
  %v2113 = vadd.f32 0.0, %v2112
  %v2114 = vpop.f32.mrb[0].mxu0
  %2115 = vmatprep.mubr.f32.mxu0 0.0
  %2116 = vmatmul.mubr.f32.gmra.mrb[0].mxu0 %v1685
  %v2117 = vpop.f32.mrb[0].mxu0
  %v2118 = vadd.f32 0.0, %v2117
  %v2119 = vpop.f32.mrb[0].mxu0
  %2120 = vmatprep.mubr.f32.mxu0 0.0
  %2121 = vmatmul.mubr.f32.gmra.mrb[0].mxu0 %v1688
  %v2122 = vpop.f32.mrb[0].mxu0
  %v2123 = vadd.f32 0.0, %v2122
  %v2124 = vpop.f32.mrb[0].mxu0
  %2125 = vmatprep.mubr.f32.mxu0 0.0
  %2126 = vmatmul.mubr.f32.gmra.mrb[0].mxu0 %v1691
  %v2127 = vpop.f32.mrb[0].mxu0
  %v2128 = vadd.f32 0.0, %v2127
  %v2129 = vpop.f32.mrb[0].mxu0
  %2130 = vmatprep.mubr.f32.mxu0 0.0
  %2131 = vmatmul.mubr.f32.gmra.mrb[0].mxu0 %v1694
  %v2132 = vpop.f32.mrb[0].mxu0
  %v2133 = vadd.f32 0.0, %v2132
  %v2134 = vpop.f32.mrb[0].mxu0
  %2135 = vmatprep.mubr.f32.mxu0 0.0
  %2136 = vmatmul.mubr.f32.gmra.mrb[0].mxu0 %v1697
  %v2137 = vpop.f32.mrb[0].mxu0
  %v2138 = vadd.f32 0.0, %v2137
  %v2139 = vpop.f32.mrb[0].mxu0
  %2140 = vmatprep.mubr.f32.mxu0 0.0
  %2141 = vmatmul.mubr.f32.gmra.mrb[0].mxu0 %v1700
  %v2142 = vpop.f32.mrb[0].mxu0
  %v2143 = vadd.f32 0.0, %v2142
  %v2144 = vpop.f32.mrb[0].mxu0
  %2145 = vdwg.mxu0
  %v2146 = vmul.f32 %v1769, %v1220
  %v2147 = vmul.f32 %v1771, %v1222
  %v2148 = vmul.f32 %v1882, %v1263
  %v2149 = vmul.f32 %v1884, %v1265
  %v2150 = vmul.f32 %v1995, %v1306
  %v2151 = vmul.f32 %v1997, %v1308
  %v2152 = vmul.f32 %v2108, %v1349
  %v2153 = vmul.f32 %v1775, %v1224
  %v2154 = vmul.f32 %v1777, %v1226
  %v2155 = vmul.f32 %v1888, %v1267
  %v2156 = vmul.f32 %v1890, %v1269
  %v2157 = vmul.f32 %v2001, %v1310
  %v2158 = vmul.f32 %v2003, %v1312
  %v2159 = vmul.f32 %v2113, %v1353
  %v2160 = vmul.f32 %v1781, %v1351
  %v2161 = vmul.f32 %v1783, %v1392
  %v2162 = vmul.f32 %v1894, %v1394
  %v2163 = vmul.f32 %v1896, %v1435
  %v2164 = vmul.f32 %v2007, %v1437
  %v2165 = vmul.f32 %v2009, %v1478
  %v2166 = vmul.f32 %v2118, %v1480
  %v2167 = vmul.f32 %v1787, %v1355
  %v2168 = vmul.f32 %v1789, %v1396
  %v2169 = vmul.f32 %v1900, %v1398
  %v2170 = vmul.f32 %v1902, %v1439
  %v2171 = vmul.f32 %v2013, %v1441
  %v2172 = vmul.f32 %v2015, %v1482
  %v2173 = vmul.f32 %v2123, %v1484
  %v2174 = vadd.f32 %v2146, %v2160
  %v2175 = vadd.f32 %v2147, %v2161
  %v2176 = vadd.f32 %v2148, %v2162
  %v2177 = vadd.f32 %v2149, %v2163
  %v2178 = vadd.f32 %v2150, %v2164
  %v2179 = vadd.f32 %v2151, %v2165
  %v2180 = vadd.f32 %v2152, %v2166
  %v2181 = vadd.f32 %v2153, %v2167
  %v2182 = vadd.f32 %v2154, %v2168
  %v2183 = vadd.f32 %v2155, %v2169
  %v2184 = vadd.f32 %v2156, %v2170
  %v2185 = vadd.f32 %v2157, %v2171
  %v2186 = vadd.f32 %v2158, %v2172
  %v2187 = vadd.f32 %v2159, %v2173
  %v2188 = vmul.f32 %v1793, %v1521
  %v2189 = vmul.f32 %v1795, %v1523
  %v2190 = vmul.f32 %v1906, %v1564
  %v2191 = vmul.f32 %v1908, %v1566
  %v2192 = vmul.f32 %v2019, %v1607
  %v2193 = vmul.f32 %v2021, %v1609
  %v2194 = vmul.f32 %v2128, %v1650
  %v2195 = vmul.f32 %v1799, %v1525
  %v2196 = vmul.f32 %v1801, %v1527
  %v2197 = vmul.f32 %v1912, %v1568
  %v2198 = vmul.f32 %v1914, %v1570
  %v2199 = vmul.f32 %v2025, %v1611
  %v2200 = vmul.f32 %v2027, %v1613
  %v2201 = vmul.f32 %v2133, %v1653
  %v2202 = vadd.f32 %v2174, %v2188
  %v2203 = vadd.f32 %v2175, %v2189
  %v2204 = vadd.f32 %v2176, %v2190
  %v2205 = vadd.f32 %v2177, %v2191
  %v2206 = vadd.f32 %v2178, %v2192
  %v2207 = vadd.f32 %v2179, %v2193
  %v2208 = vadd.f32 %v2180, %v2194
  %v2209 = vadd.f32 %v2181, %v2195
  %v2210 = vadd.f32 %v2182, %v2196
  %v2211 = vadd.f32 %v2183, %v2197
  %v2212 = vadd.f32 %v2184, %v2198
  %v2213 = vadd.f32 %v2185, %v2199
  %v2214 = vadd.f32 %v2186, %v2200
  %v2215 = vadd.f32 %v2187, %v2201
  %v2216 = vadd.f32 %v2202, %v1805
  %v2217 = vadd.f32 %v2203, %v1807
  %v2218 = vadd.f32 %v2204, %v1918
  %v2219 = vadd.f32 %v2205, %v1920
  %v2220 = vadd.f32 %v2206, %v2031
  %v2221 = vadd.f32 %v2207, %v2033
  %v2222 = vadd.f32 %v2208, %v2138
  %v2223 = vadd.f32 %v2209, %v1811
  %v2224 = vadd.f32 %v2210, %v1813
  %v2225 = vadd.f32 %v2211, %v1924
  %v2226 = vadd.f32 %v2212, %v1926
  %v2227 = vadd.f32 %v2213, %v2037
  %v2228 = vadd.f32 %v2214, %v2039
  %v2229 = vadd.f32 %v2215, %v2143
  %2230 = vst [vmem:[%s4] sm:$0xff] %v2216
  %2231 = vst [vmem:[%s4 + $0x8] sm:$0xff] %v2217
  %2232 = vst [vmem:[%s4 + $0x10] sm:$0xff] %v2218
  %2233 = vst [vmem:[%s4 + $0x18] sm:$0xff] %v2219
  %2234 = vst [vmem:[%s4 + $0x20] sm:$0xff] %v2220
  %2235 = vst [vmem:[%s4 + $0x28] sm:$0xff] %v2221
  %2236 = vst [vmem:[%s4 + $0x30] sm:$0xff] %v2222
  %2237 = vst [vmem:[%s4 + $0x38] sm:$0xff] %v2223
  %2238 = vst [vmem:[%s4 + $0x40] sm:$0xff] %v2224
  %2239 = vst [vmem:[%s4 + $0x48] sm:$0xff] %v2225
  %2240 = vst [vmem:[%s4 + $0x50] sm:$0xff] %v2226
  %2241 = vst [vmem:[%s4 + $0x58] sm:$0xff] %v2227
  %2242 = vst [vmem:[%s4 + $0x60] sm:$0xff] %v2228
  %2243 = vst [vmem:[%s4 + $0x68] sm:$0xff] %v2229
  %v2244 = vld [vmem:[%s1 + $0x40] sm:$0xff]
  %v2245 = vld [vmem:[%s1 + $0x48] sm:$0xff]
  %v2246 = vld [vmem:[%s1 + $0x50] sm:$0xff]
  %v2247 = vld [vmem:[%s1 + $0x58] sm:$0xff]
  %v2248 = vld [vmem:[%s1 + $0x60] sm:$0xff]
  %v2249 = vld [vmem:[%s1 + $0x68] sm:$0xff]
  %v2250 = vld [vmem:[%s1 + $0x70] sm:$0xff]
  %v2251 = vld [vmem:[%s1 + $0x78] sm:$0xff]
  %v2253 = vsel %vm1181, %v2244, 0
  %v2256 = vsel %vm1181, %v2245, 0
  %v2259 = vsel %vm1181, %v2246, 0
  %v2262 = vsel %vm1181, %v2247, 0
  %v2265 = vsel %vm1181, %v2248, 0
  %v2268 = vsel %vm1181, %v2249, 0
  %v2271 = vsel %vm1181, %v2250, 0
  %v2274 = vsel %vm1181, %v2251, 0
  %2276 = vmatprep.subr.mxu0 %v1657
  %2277 = vmatpush1.msra.mxu0 %v1656
  %2278 = vmatprep.subr.mxu0 %v1664
  %2279 = vmatpush1.msra.mxu0 %v1663
  %2280 = vmatprep.subr.mxu0 0.0
  %2281 = vmatpush1.msra.mxu0 0.0
  %2282 = vmatprep.subr.mxu0 0.0
  %2283 = vmatpush1.msra.mxu0 0.0
  %2284 = vmatprep.subr.mxu0 0.0
  %2285 = vmatpush1.msra.mxu0 0.0
  %2286 = vmatprep.subr.mxu0 0.0
  %2287 = vmatpush1.msra.mxu0 0.0
  %2288 = vmatprep.subr.mxu0 0.0
  %2289 = vmatpush1.msra.mxu0 0.0
  %2290 = vmatprep.subr.mxu0 0.0
  %2291 = vmatpush1.msra.mxu0 0.0
  %2292 = vmatprep.subr.mxu0 0.0
  %2293 = vmatpush1.msra.mxu0 0.0
  %2294 = vmatprep.subr.mxu0 0.0
  %2295 = vmatpush1.msra.mxu0 0.0
  %2296 = vmatprep.subr.mxu0 0.0
  %2297 = vmatpush1.msra.mxu0 0.0
  %2298 = vmatprep.subr.mxu0 0.0
  %2299 = vmatpush1.msra.mxu0 0.0
  %2300 = vmatprep.subr.mxu0 0.0
  %2301 = vmatpush1.msra.mxu0 0.0
  %2302 = vmatprep.subr.mxu0 0.0
  %2303 = vmatpush1.msra.mxu0 0.0
  %2304 = vmatprep.subr.mxu0 0.0
  %2305 = vmatpush1.msra.mxu0 0.0
  %2306 = vmatprep.subr.mxu0 0.0
  %2307 = vmatpush1.msra.mxu0 0.0
  %2308 = vmatprep.subr.mxu0 0.0
  %2309 = vmatpush1.msra.mxu0 0.0
  %2310 = vmatprep.subr.mxu0 0.0
  %2311 = vmatpush1.msra.mxu0 0.0
  %2312 = vmatprep.subr.mxu0 0.0
  %2313 = vmatpush1.msra.mxu0 0.0
  %2314 = vmatprep.subr.mxu0 0.0
  %2315 = vmatpush1.msra.mxu0 0.0
  %2316 = vmatprep.subr.mxu0 0.0
  %2317 = vmatpush1.msra.mxu0 0.0
  %2318 = vmatprep.subr.mxu0 0.0
  %2319 = vmatpush1.msra.mxu0 0.0
  %2320 = vmatprep.subr.mxu0 0.0
  %2321 = vmatpush1.msra.mxu0 0.0
  %2322 = vmatprep.subr.mxu0 0.0
  %2323 = vmatpush1.msra.mxu0 0.0
  %2324 = vmatprep.subr.mxu0 0.0
  %2325 = vmatpush1.msra.mxu0 0.0
  %2326 = vmatprep.subr.mxu0 0.0
  %2327 = vmatpush1.msra.mxu0 0.0
  %2328 = vmatprep.subr.mxu0 0.0
  %2329 = vmatpush1.msra.mxu0 0.0
  %2330 = vmatprep.subr.mxu0 0.0
  %2331 = vmatpush1.msra.mxu0 0.0
  %2332 = vmatprep.subr.mxu0 0.0
  %2333 = vmatpush1.msra.mxu0 0.0
  %2334 = vmatprep.subr.mxu0 0.0
  %2335 = vmatpush1.msra.mxu0 0.0
  %2336 = vmatprep.subr.mxu0 0.0
  %2337 = vmatpush1.msra.mxu0 0.0
  %2338 = vmatprep.subr.mxu0 0.0
  %2339 = vmatpush1.msra.mxu0 0.0
  %2340 = vmatprep.mubr.f32.mxu0 0.0
  %2341 = vmatmul.mubr.f32.gmra.mrb[0].mxu0 %v2253
  %v2342 = vpop.f32.mrb[0].mxu0
  %v2343 = vadd.f32 0.0, %v2342
  %v2344 = vpop.f32.mrb[0].mxu0
  %v2345 = vadd.f32 0.0, %v2344
  %2346 = vmatprep.mubr.f32.mxu0 0.0
  %2347 = vmatmul.mubr.f32.gmra.mrb[0].mxu0 %v2256
  %v2348 = vpop.f32.mrb[0].mxu0
  %v2349 = vadd.f32 0.0, %v2348
  %v2350 = vpop.f32.mrb[0].mxu0
  %v2351 = vadd.f32 0.0, %v2350
  %2352 = vmatprep.mubr.f32.mxu0 0.0
  %2353 = vmatmul.mubr.f32.gmra.mrb[0].mxu0 %v2259
  %v2354 = vpop.f32.mrb[0].mxu0
  %v2355 = vadd.f32 0.0, %v2354
  %v2356 = vpop.f32.mrb[0].mxu0
  %v2357 = vadd.f32 0.0, %v2356
  %2358 = vmatprep.mubr.f32.mxu0 0.0
  %2359 = vmatmul.mubr.f32.gmra.mrb[0].mxu0 %v2262
  %v2360 = vpop.f32.mrb[0].mxu0
  %v2361 = vadd.f32 0.0, %v2360
  %v2362 = vpop.f32.mrb[0].mxu0
  %v2363 = vadd.f32 0.0, %v2362
  %2364 = vmatprep.mubr.f32.mxu0 0.0
  %2365 = vmatmul.mubr.f32.gmra.mrb[0].mxu0 %v2265
  %v2366 = vpop.f32.mrb[0].mxu0
  %v2367 = vadd.f32 0.0, %v2366
  %v2368 = vpop.f32.mrb[0].mxu0
  %v2369 = vadd.f32 0.0, %v2368
  %2370 = vmatprep.mubr.f32.mxu0 0.0
  %2371 = vmatmul.mubr.f32.gmra.mrb[0].mxu0 %v2268
  %v2372 = vpop.f32.mrb[0].mxu0
  %v2373 = vadd.f32 0.0, %v2372
  %v2374 = vpop.f32.mrb[0].mxu0
  %v2375 = vadd.f32 0.0, %v2374
  %2376 = vmatprep.mubr.f32.mxu0 0.0
  %2377 = vmatmul.mubr.f32.gmra.mrb[0].mxu0 %v2271
  %v2378 = vpop.f32.mrb[0].mxu0
  %v2379 = vadd.f32 0.0, %v2378
  %v2380 = vpop.f32.mrb[0].mxu0
  %v2381 = vadd.f32 0.0, %v2380
  %2382 = vmatprep.mubr.f32.mxu0 0.0
  %2383 = vmatmul.mubr.f32.gmra.mrb[0].mxu0 %v2274
  %v2384 = vpop.f32.mrb[0].mxu0
  %v2385 = vadd.f32 0.0, %v2384
  %v2386 = vpop.f32.mrb[0].mxu0
  %v2387 = vadd.f32 0.0, %v2386
  %2388 = vdwg.mxu0
  %2389 = vmatprep.subr.mxu0 %v1659
  %2390 = vmatpush1.msra.mxu0 %v1658
  %2391 = vmatprep.subr.mxu0 %v1666
  %2392 = vmatpush1.msra.mxu0 %v1665
  %2393 = vmatprep.subr.mxu0 0.0
  %2394 = vmatpush1.msra.mxu0 0.0
  %2395 = vmatprep.subr.mxu0 0.0
  %2396 = vmatpush1.msra.mxu0 0.0
  %2397 = vmatprep.subr.mxu0 0.0
  %2398 = vmatpush1.msra.mxu0 0.0
  %2399 = vmatprep.subr.mxu0 0.0
  %2400 = vmatpush1.msra.mxu0 0.0
  %2401 = vmatprep.subr.mxu0 0.0
  %2402 = vmatpush1.msra.mxu0 0.0
  %2403 = vmatprep.subr.mxu0 0.0
  %2404 = vmatpush1.msra.mxu0 0.0
  %2405 = vmatprep.subr.mxu0 0.0
  %2406 = vmatpush1.msra.mxu0 0.0
  %2407 = vmatprep.subr.mxu0 0.0
  %2408 = vmatpush1.msra.mxu0 0.0
  %2409 = vmatprep.subr.mxu0 0.0
  %2410 = vmatpush1.msra.mxu0 0.0
  %2411 = vmatprep.subr.mxu0 0.0
  %2412 = vmatpush1.msra.mxu0 0.0
  %2413 = vmatprep.subr.mxu0 0.0
  %2414 = vmatpush1.msra.mxu0 0.0
  %2415 = vmatprep.subr.mxu0 0.0
  %2416 = vmatpush1.msra.mxu0 0.0
  %2417 = vmatprep.subr.mxu0 0.0
  %2418 = vmatpush1.msra.mxu0 0.0
  %2419 = vmatprep.subr.mxu0 0.0
  %2420 = vmatpush1.msra.mxu0 0.0
  %2421 = vmatprep.subr.mxu0 0.0
  %2422 = vmatpush1.msra.mxu0 0.0
  %2423 = vmatprep.subr.mxu0 0.0
  %2424 = vmatpush1.msra.mxu0 0.0
  %2425 = vmatprep.subr.mxu0 0.0
  %2426 = vmatpush1.msra.mxu0 0.0
  %2427 = vmatprep.subr.mxu0 0.0
  %2428 = vmatpush1.msra.mxu0 0.0
  %2429 = vmatprep.subr.mxu0 0.0
  %2430 = vmatpush1.msra.mxu0 0.0
  %2431 = vmatprep.subr.mxu0 0.0
  %2432 = vmatpush1.msra.mxu0 0.0
  %2433 = vmatprep.subr.mxu0 0.0
  %2434 = vmatpush1.msra.mxu0 0.0
  %2435 = vmatprep.subr.mxu0 0.0
  %2436 = vmatpush1.msra.mxu0 0.0
  %2437 = vmatprep.subr.mxu0 0.0
  %2438 = vmatpush1.msra.mxu0 0.0
  %2439 = vmatprep.subr.mxu0 0.0
  %2440 = vmatpush1.msra.mxu0 0.0
  %2441 = vmatprep.subr.mxu0 0.0
  %2442 = vmatpush1.msra.mxu0 0.0
  %2443 = vmatprep.subr.mxu0 0.0
  %2444 = vmatpush1.msra.mxu0 0.0
  %2445 = vmatprep.subr.mxu0 0.0
  %2446 = vmatpush1.msra.mxu0 0.0
  %2447 = vmatprep.subr.mxu0 0.0
  %2448 = vmatpush1.msra.mxu0 0.0
  %2449 = vmatprep.subr.mxu0 0.0
  %2450 = vmatpush1.msra.mxu0 0.0
  %2451 = vmatprep.subr.mxu0 0.0
  %2452 = vmatpush1.msra.mxu0 0.0
  %2453 = vmatprep.mubr.f32.mxu0 0.0
  %2454 = vmatmul.mubr.f32.gmra.mrb[0].mxu0 %v2253
  %v2455 = vpop.f32.mrb[0].mxu0
  %v2456 = vadd.f32 0.0, %v2455
  %v2457 = vpop.f32.mrb[0].mxu0
  %v2458 = vadd.f32 0.0, %v2457
  %2459 = vmatprep.mubr.f32.mxu0 0.0
  %2460 = vmatmul.mubr.f32.gmra.mrb[0].mxu0 %v2256
  %v2461 = vpop.f32.mrb[0].mxu0
  %v2462 = vadd.f32 0.0, %v2461
  %v2463 = vpop.f32.mrb[0].mxu0
  %v2464 = vadd.f32 0.0, %v2463
  %2465 = vmatprep.mubr.f32.mxu0 0.0
  %2466 = vmatmul.mubr.f32.gmra.mrb[0].mxu0 %v2259
  %v2467 = vpop.f32.mrb[0].mxu0
  %v2468 = vadd.f32 0.0, %v2467
  %v2469 = vpop.f32.mrb[0].mxu0
  %v2470 = vadd.f32 0.0, %v2469
  %2471 = vmatprep.mubr.f32.mxu0 0.0
  %2472 = vmatmul.mubr.f32.gmra.mrb[0].mxu0 %v2262
  %v2473 = vpop.f32.mrb[0].mxu0
  %v2474 = vadd.f32 0.0, %v2473
  %v2475 = vpop.f32.mrb[0].mxu0
  %v2476 = vadd.f32 0.0, %v2475
  %2477 = vmatprep.mubr.f32.mxu0 0.0
  %2478 = vmatmul.mubr.f32.gmra.mrb[0].mxu0 %v2265
  %v2479 = vpop.f32.mrb[0].mxu0
  %v2480 = vadd.f32 0.0, %v2479
  %v2481 = vpop.f32.mrb[0].mxu0
  %v2482 = vadd.f32 0.0, %v2481
  %2483 = vmatprep.mubr.f32.mxu0 0.0
  %2484 = vmatmul.mubr.f32.gmra.mrb[0].mxu0 %v2268
  %v2485 = vpop.f32.mrb[0].mxu0
  %v2486 = vadd.f32 0.0, %v2485
  %v2487 = vpop.f32.mrb[0].mxu0
  %v2488 = vadd.f32 0.0, %v2487
  %2489 = vmatprep.mubr.f32.mxu0 0.0
  %2490 = vmatmul.mubr.f32.gmra.mrb[0].mxu0 %v2271
  %v2491 = vpop.f32.mrb[0].mxu0
  %v2492 = vadd.f32 0.0, %v2491
  %v2493 = vpop.f32.mrb[0].mxu0
  %v2494 = vadd.f32 0.0, %v2493
  %2495 = vmatprep.mubr.f32.mxu0 0.0
  %2496 = vmatmul.mubr.f32.gmra.mrb[0].mxu0 %v2274
  %v2497 = vpop.f32.mrb[0].mxu0
  %v2498 = vadd.f32 0.0, %v2497
  %v2499 = vpop.f32.mrb[0].mxu0
  %v2500 = vadd.f32 0.0, %v2499
  %2501 = vdwg.mxu0
  %2502 = vmatprep.subr.mxu0 %v1661
  %2503 = vmatpush1.msra.mxu0 %v1660
  %2504 = vmatprep.subr.mxu0 %v1668
  %2505 = vmatpush1.msra.mxu0 %v1667
  %2506 = vmatprep.subr.mxu0 0.0
  %2507 = vmatpush1.msra.mxu0 0.0
  %2508 = vmatprep.subr.mxu0 0.0
  %2509 = vmatpush1.msra.mxu0 0.0
  %2510 = vmatprep.subr.mxu0 0.0
  %2511 = vmatpush1.msra.mxu0 0.0
  %2512 = vmatprep.subr.mxu0 0.0
  %2513 = vmatpush1.msra.mxu0 0.0
  %2514 = vmatprep.subr.mxu0 0.0
  %2515 = vmatpush1.msra.mxu0 0.0
  %2516 = vmatprep.subr.mxu0 0.0
  %2517 = vmatpush1.msra.mxu0 0.0
  %2518 = vmatprep.subr.mxu0 0.0
  %2519 = vmatpush1.msra.mxu0 0.0
  %2520 = vmatprep.subr.mxu0 0.0
  %2521 = vmatpush1.msra.mxu0 0.0
  %2522 = vmatprep.subr.mxu0 0.0
  %2523 = vmatpush1.msra.mxu0 0.0
  %2524 = vmatprep.subr.mxu0 0.0
  %2525 = vmatpush1.msra.mxu0 0.0
  %2526 = vmatprep.subr.mxu0 0.0
  %2527 = vmatpush1.msra.mxu0 0.0
  %2528 = vmatprep.subr.mxu0 0.0
  %2529 = vmatpush1.msra.mxu0 0.0
  %2530 = vmatprep.subr.mxu0 0.0
  %2531 = vmatpush1.msra.mxu0 0.0
  %2532 = vmatprep.subr.mxu0 0.0
  %2533 = vmatpush1.msra.mxu0 0.0
  %2534 = vmatprep.subr.mxu0 0.0
  %2535 = vmatpush1.msra.mxu0 0.0
  %2536 = vmatprep.subr.mxu0 0.0
  %2537 = vmatpush1.msra.mxu0 0.0
  %2538 = vmatprep.subr.mxu0 0.0
  %2539 = vmatpush1.msra.mxu0 0.0
  %2540 = vmatprep.subr.mxu0 0.0
  %2541 = vmatpush1.msra.mxu0 0.0
  %2542 = vmatprep.subr.mxu0 0.0
  %2543 = vmatpush1.msra.mxu0 0.0
  %2544 = vmatprep.subr.mxu0 0.0
  %2545 = vmatpush1.msra.mxu0 0.0
  %2546 = vmatprep.subr.mxu0 0.0
  %2547 = vmatpush1.msra.mxu0 0.0
  %2548 = vmatprep.subr.mxu0 0.0
  %2549 = vmatpush1.msra.mxu0 0.0
  %2550 = vmatprep.subr.mxu0 0.0
  %2551 = vmatpush1.msra.mxu0 0.0
  %2552 = vmatprep.subr.mxu0 0.0
  %2553 = vmatpush1.msra.mxu0 0.0
  %2554 = vmatprep.subr.mxu0 0.0
  %2555 = vmatpush1.msra.mxu0 0.0
  %2556 = vmatprep.subr.mxu0 0.0
  %2557 = vmatpush1.msra.mxu0 0.0
  %2558 = vmatprep.subr.mxu0 0.0
  %2559 = vmatpush1.msra.mxu0 0.0
  %2560 = vmatprep.subr.mxu0 0.0
  %2561 = vmatpush1.msra.mxu0 0.0
  %2562 = vmatprep.subr.mxu0 0.0
  %2563 = vmatpush1.msra.mxu0 0.0
  %2564 = vmatprep.subr.mxu0 0.0
  %2565 = vmatpush1.msra.mxu0 0.0
  %2566 = vmatprep.mubr.f32.mxu0 0.0
  %2567 = vmatmul.mubr.f32.gmra.mrb[0].mxu0 %v2253
  %v2568 = vpop.f32.mrb[0].mxu0
  %v2569 = vadd.f32 0.0, %v2568
  %v2570 = vpop.f32.mrb[0].mxu0
  %v2571 = vadd.f32 0.0, %v2570
  %2572 = vmatprep.mubr.f32.mxu0 0.0
  %2573 = vmatmul.mubr.f32.gmra.mrb[0].mxu0 %v2256
  %v2574 = vpop.f32.mrb[0].mxu0
  %v2575 = vadd.f32 0.0, %v2574
  %v2576 = vpop.f32.mrb[0].mxu0
  %v2577 = vadd.f32 0.0, %v2576
  %2578 = vmatprep.mubr.f32.mxu0 0.0
  %2579 = vmatmul.mubr.f32.gmra.mrb[0].mxu0 %v2259
  %v2580 = vpop.f32.mrb[0].mxu0
  %v2581 = vadd.f32 0.0, %v2580
  %v2582 = vpop.f32.mrb[0].mxu0
  %v2583 = vadd.f32 0.0, %v2582
  %2584 = vmatprep.mubr.f32.mxu0 0.0
  %2585 = vmatmul.mubr.f32.gmra.mrb[0].mxu0 %v2262
  %v2586 = vpop.f32.mrb[0].mxu0
  %v2587 = vadd.f32 0.0, %v2586
  %v2588 = vpop.f32.mrb[0].mxu0
  %v2589 = vadd.f32 0.0, %v2588
  %2590 = vmatprep.mubr.f32.mxu0 0.0
  %2591 = vmatmul.mubr.f32.gmra.mrb[0].mxu0 %v2265
  %v2592 = vpop.f32.mrb[0].mxu0
  %v2593 = vadd.f32 0.0, %v2592
  %v2594 = vpop.f32.mrb[0].mxu0
  %v2595 = vadd.f32 0.0, %v2594
  %2596 = vmatprep.mubr.f32.mxu0 0.0
  %2597 = vmatmul.mubr.f32.gmra.mrb[0].mxu0 %v2268
  %v2598 = vpop.f32.mrb[0].mxu0
  %v2599 = vadd.f32 0.0, %v2598
  %v2600 = vpop.f32.mrb[0].mxu0
  %v2601 = vadd.f32 0.0, %v2600
  %2602 = vmatprep.mubr.f32.mxu0 0.0
  %2603 = vmatmul.mubr.f32.gmra.mrb[0].mxu0 %v2271
  %v2604 = vpop.f32.mrb[0].mxu0
  %v2605 = vadd.f32 0.0, %v2604
  %v2606 = vpop.f32.mrb[0].mxu0
  %v2607 = vadd.f32 0.0, %v2606
  %2608 = vmatprep.mubr.f32.mxu0 0.0
  %2609 = vmatmul.mubr.f32.gmra.mrb[0].mxu0 %v2274
  %v2610 = vpop.f32.mrb[0].mxu0
  %v2611 = vadd.f32 0.0, %v2610
  %v2612 = vpop.f32.mrb[0].mxu0
  %v2613 = vadd.f32 0.0, %v2612
  %2614 = vdwg.mxu0
  %2615 = vmatprep.subr.mxu0 0.0
  %2616 = vmatpush1.msra.mxu0 %v1662
  %2617 = vmatprep.subr.mxu0 0.0
  %2618 = vmatpush1.msra.mxu0 %v1669
  %2619 = vmatprep.subr.mxu0 0.0
  %2620 = vmatpush1.msra.mxu0 0.0
  %2621 = vmatprep.subr.mxu0 0.0
  %2622 = vmatpush1.msra.mxu0 0.0
  %2623 = vmatprep.subr.mxu0 0.0
  %2624 = vmatpush1.msra.mxu0 0.0
  %2625 = vmatprep.subr.mxu0 0.0
  %2626 = vmatpush1.msra.mxu0 0.0
  %2627 = vmatprep.subr.mxu0 0.0
  %2628 = vmatpush1.msra.mxu0 0.0
  %2629 = vmatprep.subr.mxu0 0.0
  %2630 = vmatpush1.msra.mxu0 0.0
  %2631 = vmatprep.subr.mxu0 0.0
  %2632 = vmatpush1.msra.mxu0 0.0
  %2633 = vmatprep.subr.mxu0 0.0
  %2634 = vmatpush1.msra.mxu0 0.0
  %2635 = vmatprep.subr.mxu0 0.0
  %2636 = vmatpush1.msra.mxu0 0.0
  %2637 = vmatprep.subr.mxu0 0.0
  %2638 = vmatpush1.msra.mxu0 0.0
  %2639 = vmatprep.subr.mxu0 0.0
  %2640 = vmatpush1.msra.mxu0 0.0
  %2641 = vmatprep.subr.mxu0 0.0
  %2642 = vmatpush1.msra.mxu0 0.0
  %2643 = vmatprep.subr.mxu0 0.0
  %2644 = vmatpush1.msra.mxu0 0.0
  %2645 = vmatprep.subr.mxu0 0.0
  %2646 = vmatpush1.msra.mxu0 0.0
  %2647 = vmatprep.subr.mxu0 0.0
  %2648 = vmatpush1.msra.mxu0 0.0
  %2649 = vmatprep.subr.mxu0 0.0
  %2650 = vmatpush1.msra.mxu0 0.0
  %2651 = vmatprep.subr.mxu0 0.0
  %2652 = vmatpush1.msra.mxu0 0.0
  %2653 = vmatprep.subr.mxu0 0.0
  %2654 = vmatpush1.msra.mxu0 0.0
  %2655 = vmatprep.subr.mxu0 0.0
  %2656 = vmatpush1.msra.mxu0 0.0
  %2657 = vmatprep.subr.mxu0 0.0
  %2658 = vmatpush1.msra.mxu0 0.0
  %2659 = vmatprep.subr.mxu0 0.0
  %2660 = vmatpush1.msra.mxu0 0.0
  %2661 = vmatprep.subr.mxu0 0.0
  %2662 = vmatpush1.msra.mxu0 0.0
  %2663 = vmatprep.subr.mxu0 0.0
  %2664 = vmatpush1.msra.mxu0 0.0
  %2665 = vmatprep.subr.mxu0 0.0
  %2666 = vmatpush1.msra.mxu0 0.0
  %2667 = vmatprep.subr.mxu0 0.0
  %2668 = vmatpush1.msra.mxu0 0.0
  %2669 = vmatprep.subr.mxu0 0.0
  %2670 = vmatpush1.msra.mxu0 0.0
  %2671 = vmatprep.subr.mxu0 0.0
  %2672 = vmatpush1.msra.mxu0 0.0
  %2673 = vmatprep.subr.mxu0 0.0
  %2674 = vmatpush1.msra.mxu0 0.0
  %2675 = vmatprep.subr.mxu0 0.0
  %2676 = vmatpush1.msra.mxu0 0.0
  %2677 = vmatprep.subr.mxu0 0.0
  %2678 = vmatpush1.msra.mxu0 0.0
  %2679 = vmatprep.mubr.f32.mxu0 0.0
  %2680 = vmatmul.mubr.f32.gmra.mrb[0].mxu0 %v2253
  %v2681 = vpop.f32.mrb[0].mxu0
  %v2682 = vadd.f32 0.0, %v2681
  %v2683 = vpop.f32.mrb[0].mxu0
  %2684 = vmatprep.mubr.f32.mxu0 0.0
  %2685 = vmatmul.mubr.f32.gmra.mrb[0].mxu0 %v2256
  %v2686 = vpop.f32.mrb[0].mxu0
  %v2687 = vadd.f32 0.0, %v2686
  %v2688 = vpop.f32.mrb[0].mxu0
  %2689 = vmatprep.mubr.f32.mxu0 0.0
  %2690 = vmatmul.mubr.f32.gmra.mrb[0].mxu0 %v2259
  %v2691 = vpop.f32.mrb[0].mxu0
  %v2692 = vadd.f32 0.0, %v2691
  %v2693 = vpop.f32.mrb[0].mxu0
  %2694 = vmatprep.mubr.f32.mxu0 0.0
  %2695 = vmatmul.mubr.f32.gmra.mrb[0].mxu0 %v2262
  %v2696 = vpop.f32.mrb[0].mxu0
  %v2697 = vadd.f32 0.0, %v2696
  %v2698 = vpop.f32.mrb[0].mxu0
  %2699 = vmatprep.mubr.f32.mxu0 0.0
  %2700 = vmatmul.mubr.f32.gmra.mrb[0].mxu0 %v2265
  %v2701 = vpop.f32.mrb[0].mxu0
  %v2702 = vadd.f32 0.0, %v2701
  %v2703 = vpop.f32.mrb[0].mxu0
  %2704 = vmatprep.mubr.f32.mxu0 0.0
  %2705 = vmatmul.mubr.f32.gmra.mrb[0].mxu0 %v2268
  %v2706 = vpop.f32.mrb[0].mxu0
  %v2707 = vadd.f32 0.0, %v2706
  %v2708 = vpop.f32.mrb[0].mxu0
  %2709 = vmatprep.mubr.f32.mxu0 0.0
  %2710 = vmatmul.mubr.f32.gmra.mrb[0].mxu0 %v2271
  %v2711 = vpop.f32.mrb[0].mxu0
  %v2712 = vadd.f32 0.0, %v2711
  %v2713 = vpop.f32.mrb[0].mxu0
  %2714 = vmatprep.mubr.f32.mxu0 0.0
  %2715 = vmatmul.mubr.f32.gmra.mrb[0].mxu0 %v2274
  %v2716 = vpop.f32.mrb[0].mxu0
  %v2717 = vadd.f32 0.0, %v2716
  %v2718 = vpop.f32.mrb[0].mxu0
  %2719 = vdwg.mxu0
  %v2720 = vmul.f32 %v2343, %v1220
  %v2721 = vmul.f32 %v2345, %v1222
  %v2722 = vmul.f32 %v2456, %v1263
  %v2723 = vmul.f32 %v2458, %v1265
  %v2724 = vmul.f32 %v2569, %v1306
  %v2725 = vmul.f32 %v2571, %v1308
  %v2726 = vmul.f32 %v2682, %v1349
  %v2727 = vmul.f32 %v2349, %v1224
  %v2728 = vmul.f32 %v2351, %v1226
  %v2729 = vmul.f32 %v2462, %v1267
  %v2730 = vmul.f32 %v2464, %v1269
  %v2731 = vmul.f32 %v2575, %v1310
  %v2732 = vmul.f32 %v2577, %v1312
  %v2733 = vmul.f32 %v2687, %v1353
  %v2734 = vmul.f32 %v2355, %v1351
  %v2735 = vmul.f32 %v2357, %v1392
  %v2736 = vmul.f32 %v2468, %v1394
  %v2737 = vmul.f32 %v2470, %v1435
  %v2738 = vmul.f32 %v2581, %v1437
  %v2739 = vmul.f32 %v2583, %v1478
  %v2740 = vmul.f32 %v2692, %v1480
  %v2741 = vmul.f32 %v2361, %v1355
  %v2742 = vmul.f32 %v2363, %v1396
  %v2743 = vmul.f32 %v2474, %v1398
  %v2744 = vmul.f32 %v2476, %v1439
  %v2745 = vmul.f32 %v2587, %v1441
  %v2746 = vmul.f32 %v2589, %v1482
  %v2747 = vmul.f32 %v2697, %v1484
  %v2748 = vadd.f32 %v2720, %v2734
  %v2749 = vadd.f32 %v2721, %v2735
  %v2750 = vadd.f32 %v2722, %v2736
  %v2751 = vadd.f32 %v2723, %v2737
  %v2752 = vadd.f32 %v2724, %v2738
  %v2753 = vadd.f32 %v2725, %v2739
  %v2754 = vadd.f32 %v2726, %v2740
  %v2755 = vadd.f32 %v2727, %v2741
  %v2756 = vadd.f32 %v2728, %v2742
  %v2757 = vadd.f32 %v2729, %v2743
  %v2758 = vadd.f32 %v2730, %v2744
  %v2759 = vadd.f32 %v2731, %v2745
  %v2760 = vadd.f32 %v2732, %v2746
  %v2761 = vadd.f32 %v2733, %v2747
  %v2762 = vmul.f32 %v2367, %v1521
  %v2763 = vmul.f32 %v2369, %v1523
  %v2764 = vmul.f32 %v2480, %v1564
  %v2765 = vmul.f32 %v2482, %v1566
  %v2766 = vmul.f32 %v2593, %v1607
  %v2767 = vmul.f32 %v2595, %v1609
  %v2768 = vmul.f32 %v2702, %v1650
  %v2769 = vmul.f32 %v2373, %v1525
  %v2770 = vmul.f32 %v2375, %v1527
  %v2771 = vmul.f32 %v2486, %v1568
  %v2772 = vmul.f32 %v2488, %v1570
  %v2773 = vmul.f32 %v2599, %v1611
  %v2774 = vmul.f32 %v2601, %v1613
  %v2775 = vmul.f32 %v2707, %v1653
  %v2776 = vadd.f32 %v2748, %v2762
  %v2777 = vadd.f32 %v2749, %v2763
  %v2778 = vadd.f32 %v2750, %v2764
  %v2779 = vadd.f32 %v2751, %v2765
  %v2780 = vadd.f32 %v2752, %v2766
  %v2781 = vadd.f32 %v2753, %v2767
  %v2782 = vadd.f32 %v2754, %v2768
  %v2783 = vadd.f32 %v2755, %v2769
  %v2784 = vadd.f32 %v2756, %v2770
  %v2785 = vadd.f32 %v2757, %v2771
  %v2786 = vadd.f32 %v2758, %v2772
  %v2787 = vadd.f32 %v2759, %v2773
  %v2788 = vadd.f32 %v2760, %v2774
  %v2789 = vadd.f32 %v2761, %v2775
  %v2790 = vadd.f32 %v2776, %v2379
  %v2791 = vadd.f32 %v2777, %v2381
  %v2792 = vadd.f32 %v2778, %v2492
  %v2793 = vadd.f32 %v2779, %v2494
  %v2794 = vadd.f32 %v2780, %v2605
  %v2795 = vadd.f32 %v2781, %v2607
  %v2796 = vadd.f32 %v2782, %v2712
  %v2797 = vadd.f32 %v2783, %v2385
  %v2798 = vadd.f32 %v2784, %v2387
  %v2799 = vadd.f32 %v2785, %v2498
  %v2800 = vadd.f32 %v2786, %v2500
  %v2801 = vadd.f32 %v2787, %v2611
  %v2802 = vadd.f32 %v2788, %v2613
  %v2803 = vadd.f32 %v2789, %v2717
  %s2804 = scalar_lea.vmem %s4, 112
  %2805 = vst [vmem:[%s2804] sm:$0xff] %v2790
  %2806 = vst [vmem:[%s2804 + $0x8] sm:$0xff] %v2791
  %2807 = vst [vmem:[%s2804 + $0x10] sm:$0xff] %v2792
  %2808 = vst [vmem:[%s2804 + $0x18] sm:$0xff] %v2793
  %2809 = vst [vmem:[%s2804 + $0x20] sm:$0xff] %v2794
  %2810 = vst [vmem:[%s2804 + $0x28] sm:$0xff] %v2795
  %2811 = vst [vmem:[%s2804 + $0x30] sm:$0xff] %v2796
  %2812 = vst [vmem:[%s2804 + $0x38] sm:$0xff] %v2797
  %2813 = vst [vmem:[%s2804 + $0x40] sm:$0xff] %v2798
  %2814 = vst [vmem:[%s2804 + $0x48] sm:$0xff] %v2799
  %2815 = vst [vmem:[%s2804 + $0x50] sm:$0xff] %v2800
  %2816 = vst [vmem:[%s2804 + $0x58] sm:$0xff] %v2801
  %2817 = vst [vmem:[%s2804 + $0x60] sm:$0xff] %v2802
  %2818 = vst [vmem:[%s2804 + $0x68] sm:$0xff] %v2803
  %v2819 = vld [vmem:[%s1 + $0x80] sm:$0xff]
  %v2820 = vld [vmem:[%s1 + $0x88] sm:$0xff]
  %v2821 = vld [vmem:[%s1 + $0x90] sm:$0xff]
  %v2822 = vld [vmem:[%s1 + $0x98] sm:$0xff]
  %v2823 = vld [vmem:[%s1 + $0xa0] sm:$0xff]
  %v2824 = vld [vmem:[%s1 + $0xa8] sm:$0xff]
  %v2825 = vld [vmem:[%s1 + $0xb0] sm:$0xff]
  %v2826 = vld [vmem:[%s1 + $0xb8] sm:$0xff]
  %v2828 = vsel %vm1181, %v2819, 0
  %v2831 = vsel %vm1181, %v2820, 0
  %v2834 = vsel %vm1181, %v2821, 0
  %v2837 = vsel %vm1181, %v2822, 0
  %v2840 = vsel %vm1181, %v2823, 0
  %v2843 = vsel %vm1181, %v2824, 0
  %v2846 = vsel %vm1181, %v2825, 0
  %v2849 = vsel %vm1181, %v2826, 0
  %2851 = vmatprep.subr.mxu0 %v1657
  %2852 = vmatpush1.msra.mxu0 %v1656
  %2853 = vmatprep.subr.mxu0 %v1664
  %2854 = vmatpush1.msra.mxu0 %v1663
  %2855 = vmatprep.subr.mxu0 0.0
  %2856 = vmatpush1.msra.mxu0 0.0
  %2857 = vmatprep.subr.mxu0 0.0
  %2858 = vmatpush1.msra.mxu0 0.0
  %2859 = vmatprep.subr.mxu0 0.0
  %2860 = vmatpush1.msra.mxu0 0.0
  %2861 = vmatprep.subr.mxu0 0.0
  %2862 = vmatpush1.msra.mxu0 0.0
  %2863 = vmatprep.subr.mxu0 0.0
  %2864 = vmatpush1.msra.mxu0 0.0
  %2865 = vmatprep.subr.mxu0 0.0
  %2866 = vmatpush1.msra.mxu0 0.0
  %2867 = vmatprep.subr.mxu0 0.0
  %2868 = vmatpush1.msra.mxu0 0.0
  %2869 = vmatprep.subr.mxu0 0.0
  %2870 = vmatpush1.msra.mxu0 0.0
  %2871 = vmatprep.subr.mxu0 0.0
  %2872 = vmatpush1.msra.mxu0 0.0
  %2873 = vmatprep.subr.mxu0 0.0
  %2874 = vmatpush1.msra.mxu0 0.0
  %2875 = vmatprep.subr.mxu0 0.0
  %2876 = vmatpush1.msra.mxu0 0.0
  %2877 = vmatprep.subr.mxu0 0.0
  %2878 = vmatpush1.msra.mxu0 0.0
  %2879 = vmatprep.subr.mxu0 0.0
  %2880 = vmatpush1.msra.mxu0 0.0
  %2881 = vmatprep.subr.mxu0 0.0
  %2882 = vmatpush1.msra.mxu0 0.0
  %2883 = vmatprep.subr.mxu0 0.0
  %2884 = vmatpush1.msra.mxu0 0.0
  %2885 = vmatprep.subr.mxu0 0.0
  %2886 = vmatpush1.msra.mxu0 0.0
  %2887 = vmatprep.subr.mxu0 0.0
  %2888 = vmatpush1.msra.mxu0 0.0
  %2889 = vmatprep.subr.mxu0 0.0
  %2890 = vmatpush1.msra.mxu0 0.0
  %2891 = vmatprep.subr.mxu0 0.0
  %2892 = vmatpush1.msra.mxu0 0.0
  %2893 = vmatprep.subr.mxu0 0.0
  %2894 = vmatpush1.msra.mxu0 0.0
  %2895 = vmatprep.subr.mxu0 0.0
  %2896 = vmatpush1.msra.mxu0 0.0
  %2897 = vmatprep.subr.mxu0 0.0
  %2898 = vmatpush1.msra.mxu0 0.0
  %2899 = vmatprep.subr.mxu0 0.0
  %2900 = vmatpush1.msra.mxu0 0.0
  %2901 = vmatprep.subr.mxu0 0.0
  %2902 = vmatpush1.msra.mxu0 0.0
  %2903 = vmatprep.subr.mxu0 0.0
  %2904 = vmatpush1.msra.mxu0 0.0
  %2905 = vmatprep.subr.mxu0 0.0
  %2906 = vmatpush1.msra.mxu0 0.0
  %2907 = vmatprep.subr.mxu0 0.0
  %2908 = vmatpush1.msra.mxu0 0.0
  %2909 = vmatprep.subr.mxu0 0.0
  %2910 = vmatpush1.msra.mxu0 0.0
  %2911 = vmatprep.subr.mxu0 0.0
  %2912 = vmatpush1.msra.mxu0 0.0
  %2913 = vmatprep.subr.mxu0 0.0
  %2914 = vmatpush1.msra.mxu0 0.0
  %2915 = vmatprep.mubr.f32.mxu0 0.0
  %2916 = vmatmul.mubr.f32.gmra.mrb[0].mxu0 %v2828
  %v2917 = vpop.f32.mrb[0].mxu0
  %v2918 = vadd.f32 0.0, %v2917
  %v2919 = vpop.f32.mrb[0].mxu0
  %v2920 = vadd.f32 0.0, %v2919
  %2921 = vmatprep.mubr.f32.mxu0 0.0
  %2922 = vmatmul.mubr.f32.gmra.mrb[0].mxu0 %v2831
  %v2923 = vpop.f32.mrb[0].mxu0
  %v2924 = vadd.f32 0.0, %v2923
  %v2925 = vpop.f32.mrb[0].mxu0
  %v2926 = vadd.f32 0.0, %v2925
  %2927 = vmatprep.mubr.f32.mxu0 0.0
  %2928 = vmatmul.mubr.f32.gmra.mrb[0].mxu0 %v2834
  %v2929 = vpop.f32.mrb[0].mxu0
  %v2930 = vadd.f32 0.0, %v2929
  %v2931 = vpop.f32.mrb[0].mxu0
  %v2932 = vadd.f32 0.0, %v2931
  %2933 = vmatprep.mubr.f32.mxu0 0.0
  %2934 = vmatmul.mubr.f32.gmra.mrb[0].mxu0 %v2837
  %v2935 = vpop.f32.mrb[0].mxu0
  %v2936 = vadd.f32 0.0, %v2935
  %v2937 = vpop.f32.mrb[0].mxu0
  %v2938 = vadd.f32 0.0, %v2937
  %2939 = vmatprep.mubr.f32.mxu0 0.0
  %2940 = vmatmul.mubr.f32.gmra.mrb[0].mxu0 %v2840
  %v2941 = vpop.f32.mrb[0].mxu0
  %v2942 = vadd.f32 0.0, %v2941
  %v2943 = vpop.f32.mrb[0].mxu0
  %v2944 = vadd.f32 0.0, %v2943
  %2945 = vmatprep.mubr.f32.mxu0 0.0
  %2946 = vmatmul.mubr.f32.gmra.mrb[0].mxu0 %v2843
  %v2947 = vpop.f32.mrb[0].mxu0
  %v2948 = vadd.f32 0.0, %v2947
  %v2949 = vpop.f32.mrb[0].mxu0
  %v2950 = vadd.f32 0.0, %v2949
  %2951 = vmatprep.mubr.f32.mxu0 0.0
  %2952 = vmatmul.mubr.f32.gmra.mrb[0].mxu0 %v2846
  %v2953 = vpop.f32.mrb[0].mxu0
  %v2954 = vadd.f32 0.0, %v2953
  %v2955 = vpop.f32.mrb[0].mxu0
  %v2956 = vadd.f32 0.0, %v2955
  %2957 = vmatprep.mubr.f32.mxu0 0.0
  %2958 = vmatmul.mubr.f32.gmra.mrb[0].mxu0 %v2849
  %v2959 = vpop.f32.mrb[0].mxu0
  %v2960 = vadd.f32 0.0, %v2959
  %v2961 = vpop.f32.mrb[0].mxu0
  %v2962 = vadd.f32 0.0, %v2961
  %2963 = vdwg.mxu0
  %2964 = vmatprep.subr.mxu0 %v1659
  %2965 = vmatpush1.msra.mxu0 %v1658
  %2966 = vmatprep.subr.mxu0 %v1666
  %2967 = vmatpush1.msra.mxu0 %v1665
  %2968 = vmatprep.subr.mxu0 0.0
  %2969 = vmatpush1.msra.mxu0 0.0
  %2970 = vmatprep.subr.mxu0 0.0
  %2971 = vmatpush1.msra.mxu0 0.0
  %2972 = vmatprep.subr.mxu0 0.0
  %2973 = vmatpush1.msra.mxu0 0.0
  %2974 = vmatprep.subr.mxu0 0.0
  %2975 = vmatpush1.msra.mxu0 0.0
  %2976 = vmatprep.subr.mxu0 0.0
  %2977 = vmatpush1.msra.mxu0 0.0
  %2978 = vmatprep.subr.mxu0 0.0
  %2979 = vmatpush1.msra.mxu0 0.0
  %2980 = vmatprep.subr.mxu0 0.0
  %2981 = vmatpush1.msra.mxu0 0.0
  %2982 = vmatprep.subr.mxu0 0.0
  %2983 = vmatpush1.msra.mxu0 0.0
  %2984 = vmatprep.subr.mxu0 0.0
  %2985 = vmatpush1.msra.mxu0 0.0
  %2986 = vmatprep.subr.mxu0 0.0
  %2987 = vmatpush1.msra.mxu0 0.0
  %2988 = vmatprep.subr.mxu0 0.0
  %2989 = vmatpush1.msra.mxu0 0.0
  %2990 = vmatprep.subr.mxu0 0.0
  %2991 = vmatpush1.msra.mxu0 0.0
  %2992 = vmatprep.subr.mxu0 0.0
  %2993 = vmatpush1.msra.mxu0 0.0
  %2994 = vmatprep.subr.mxu0 0.0
  %2995 = vmatpush1.msra.mxu0 0.0
  %2996 = vmatprep.subr.mxu0 0.0
  %2997 = vmatpush1.msra.mxu0 0.0
  %2998 = vmatprep.subr.mxu0 0.0
  %2999 = vmatpush1.msra.mxu0 0.0
  %3000 = vmatprep.subr.mxu0 0.0
  %3001 = vmatpush1.msra.mxu0 0.0
  %3002 = vmatprep.subr.mxu0 0.0
  %3003 = vmatpush1.msra.mxu0 0.0
  %3004 = vmatprep.subr.mxu0 0.0
  %3005 = vmatpush1.msra.mxu0 0.0
  %3006 = vmatprep.subr.mxu0 0.0
  %3007 = vmatpush1.msra.mxu0 0.0
  %3008 = vmatprep.subr.mxu0 0.0
  %3009 = vmatpush1.msra.mxu0 0.0
  %3010 = vmatprep.subr.mxu0 0.0
  %3011 = vmatpush1.msra.mxu0 0.0
  %3012 = vmatprep.subr.mxu0 0.0
  %3013 = vmatpush1.msra.mxu0 0.0
  %3014 = vmatprep.subr.mxu0 0.0
  %3015 = vmatpush1.msra.mxu0 0.0
  %3016 = vmatprep.subr.mxu0 0.0
  %3017 = vmatpush1.msra.mxu0 0.0
  %3018 = vmatprep.subr.mxu0 0.0
  %3019 = vmatpush1.msra.mxu0 0.0
  %3020 = vmatprep.subr.mxu0 0.0
  %3021 = vmatpush1.msra.mxu0 0.0
  %3022 = vmatprep.subr.mxu0 0.0
  %3023 = vmatpush1.msra.mxu0 0.0
  %3024 = vmatprep.subr.mxu0 0.0
  %3025 = vmatpush1.msra.mxu0 0.0
  %3026 = vmatprep.subr.mxu0 0.0
  %3027 = vmatpush1.msra.mxu0 0.0
  %3028 = vmatprep.mubr.f32.mxu0 0.0
  %3029 = vmatmul.mubr.f32.gmra.mrb[0].mxu0 %v2828
  %v3030 = vpop.f32.mrb[0].mxu0
  %v3031 = vadd.f32 0.0, %v3030
  %v3032 = vpop.f32.mrb[0].mxu0
  %v3033 = vadd.f32 0.0, %v3032
  %3034 = vmatprep.mubr.f32.mxu0 0.0
  %3035 = vmatmul.mubr.f32.gmra.mrb[0].mxu0 %v2831
  %v3036 = vpop.f32.mrb[0].mxu0
  %v3037 = vadd.f32 0.0, %v3036
  %v3038 = vpop.f32.mrb[0].mxu0
  %v3039 = vadd.f32 0.0, %v3038
  %3040 = vmatprep.mubr.f32.mxu0 0.0
  %3041 = vmatmul.mubr.f32.gmra.mrb[0].mxu0 %v2834
  %v3042 = vpop.f32.mrb[0].mxu0
  %v3043 = vadd.f32 0.0, %v3042
  %v3044 = vpop.f32.mrb[0].mxu0
  %v3045 = vadd.f32 0.0, %v3044
  %3046 = vmatprep.mubr.f32.mxu0 0.0
  %3047 = vmatmul.mubr.f32.gmra.mrb[0].mxu0 %v2837
  %v3048 = vpop.f32.mrb[0].mxu0
  %v3049 = vadd.f32 0.0, %v3048
  %v3050 = vpop.f32.mrb[0].mxu0
  %v3051 = vadd.f32 0.0, %v3050
  %3052 = vmatprep.mubr.f32.mxu0 0.0
  %3053 = vmatmul.mubr.f32.gmra.mrb[0].mxu0 %v2840
  %v3054 = vpop.f32.mrb[0].mxu0
  %v3055 = vadd.f32 0.0, %v3054
  %v3056 = vpop.f32.mrb[0].mxu0
  %v3057 = vadd.f32 0.0, %v3056
  %3058 = vmatprep.mubr.f32.mxu0 0.0
  %3059 = vmatmul.mubr.f32.gmra.mrb[0].mxu0 %v2843
  %v3060 = vpop.f32.mrb[0].mxu0
  %v3061 = vadd.f32 0.0, %v3060
  %v3062 = vpop.f32.mrb[0].mxu0
  %v3063 = vadd.f32 0.0, %v3062
  %3064 = vmatprep.mubr.f32.mxu0 0.0
  %3065 = vmatmul.mubr.f32.gmra.mrb[0].mxu0 %v2846
  %v3066 = vpop.f32.mrb[0].mxu0
  %v3067 = vadd.f32 0.0, %v3066
  %v3068 = vpop.f32.mrb[0].mxu0
  %v3069 = vadd.f32 0.0, %v3068
  %3070 = vmatprep.mubr.f32.mxu0 0.0
  %3071 = vmatmul.mubr.f32.gmra.mrb[0].mxu0 %v2849
  %v3072 = vpop.f32.mrb[0].mxu0
  %v3073 = vadd.f32 0.0, %v3072
  %v3074 = vpop.f32.mrb[0].mxu0
  %v3075 = vadd.f32 0.0, %v3074
  %3076 = vdwg.mxu0
  %3077 = vmatprep.subr.mxu0 %v1661
  %3078 = vmatpush1.msra.mxu0 %v1660
  %3079 = vmatprep.subr.mxu0 %v1668
  %3080 = vmatpush1.msra.mxu0 %v1667
  %3081 = vmatprep.subr.mxu0 0.0
  %3082 = vmatpush1.msra.mxu0 0.0
  %3083 = vmatprep.subr.mxu0 0.0
  %3084 = vmatpush1.msra.mxu0 0.0
  %3085 = vmatprep.subr.mxu0 0.0
  %3086 = vmatpush1.msra.mxu0 0.0
  %3087 = vmatprep.subr.mxu0 0.0
  %3088 = vmatpush1.msra.mxu0 0.0
  %3089 = vmatprep.subr.mxu0 0.0
  %3090 = vmatpush1.msra.mxu0 0.0
  %3091 = vmatprep.subr.mxu0 0.0
  %3092 = vmatpush1.msra.mxu0 0.0
  %3093 = vmatprep.subr.mxu0 0.0
  %3094 = vmatpush1.msra.mxu0 0.0
  %3095 = vmatprep.subr.mxu0 0.0
  %3096 = vmatpush1.msra.mxu0 0.0
  %3097 = vmatprep.subr.mxu0 0.0
  %3098 = vmatpush1.msra.mxu0 0.0
  %3099 = vmatprep.subr.mxu0 0.0
  %3100 = vmatpush1.msra.mxu0 0.0
  %3101 = vmatprep.subr.mxu0 0.0
  %3102 = vmatpush1.msra.mxu0 0.0
  %3103 = vmatprep.subr.mxu0 0.0
  %3104 = vmatpush1.msra.mxu0 0.0
  %3105 = vmatprep.subr.mxu0 0.0
  %3106 = vmatpush1.msra.mxu0 0.0
  %3107 = vmatprep.subr.mxu0 0.0
  %3108 = vmatpush1.msra.mxu0 0.0
  %3109 = vmatprep.subr.mxu0 0.0
  %3110 = vmatpush1.msra.mxu0 0.0
  %3111 = vmatprep.subr.mxu0 0.0
  %3112 = vmatpush1.msra.mxu0 0.0
  %3113 = vmatprep.subr.mxu0 0.0
  %3114 = vmatpush1.msra.mxu0 0.0
  %3115 = vmatprep.subr.mxu0 0.0
  %3116 = vmatpush1.msra.mxu0 0.0
  %3117 = vmatprep.subr.mxu0 0.0
  %3118 = vmatpush1.msra.mxu0 0.0
  %3119 = vmatprep.subr.mxu0 0.0
  %3120 = vmatpush1.msra.mxu0 0.0
  %3121 = vmatprep.subr.mxu0 0.0
  %3122 = vmatpush1.msra.mxu0 0.0
  %3123 = vmatprep.subr.mxu0 0.0
  %3124 = vmatpush1.msra.mxu0 0.0
  %3125 = vmatprep.subr.mxu0 0.0
  %3126 = vmatpush1.msra.mxu0 0.0
  %3127 = vmatprep.subr.mxu0 0.0
  %3128 = vmatpush1.msra.mxu0 0.0
  %3129 = vmatprep.subr.mxu0 0.0
  %3130 = vmatpush1.msra.mxu0 0.0
  %3131 = vmatprep.subr.mxu0 0.0
  %3132 = vmatpush1.msra.mxu0 0.0
  %3133 = vmatprep.subr.mxu0 0.0
  %3134 = vmatpush1.msra.mxu0 0.0
  %3135 = vmatprep.subr.mxu0 0.0
  %3136 = vmatpush1.msra.mxu0 0.0
  %3137 = vmatprep.subr.mxu0 0.0
  %3138 = vmatpush1.msra.mxu0 0.0
  %3139 = vmatprep.subr.mxu0 0.0
  %3140 = vmatpush1.msra.mxu0 0.0
  %3141 = vmatprep.mubr.f32.mxu0 0.0
  %3142 = vmatmul.mubr.f32.gmra.mrb[0].mxu0 %v2828
  %v3143 = vpop.f32.mrb[0].mxu0
  %v3144 = vadd.f32 0.0, %v3143
  %v3145 = vpop.f32.mrb[0].mxu0
  %v3146 = vadd.f32 0.0, %v3145
  %3147 = vmatprep.mubr.f32.mxu0 0.0
  %3148 = vmatmul.mubr.f32.gmra.mrb[0].mxu0 %v2831
  %v3149 = vpop.f32.mrb[0].mxu0
  %v3150 = vadd.f32 0.0, %v3149
  %v3151 = vpop.f32.mrb[0].mxu0
  %v3152 = vadd.f32 0.0, %v3151
  %3153 = vmatprep.mubr.f32.mxu0 0.0
  %3154 = vmatmul.mubr.f32.gmra.mrb[0].mxu0 %v2834
  %v3155 = vpop.f32.mrb[0].mxu0
  %v3156 = vadd.f32 0.0, %v3155
  %v3157 = vpop.f32.mrb[0].mxu0
  %v3158 = vadd.f32 0.0, %v3157
  %3159 = vmatprep.mubr.f32.mxu0 0.0
  %3160 = vmatmul.mubr.f32.gmra.mrb[0].mxu0 %v2837
  %v3161 = vpop.f32.mrb[0].mxu0
  %v3162 = vadd.f32 0.0, %v3161
  %v3163 = vpop.f32.mrb[0].mxu0
  %v3164 = vadd.f32 0.0, %v3163
  %3165 = vmatprep.mubr.f32.mxu0 0.0
  %3166 = vmatmul.mubr.f32.gmra.mrb[0].mxu0 %v2840
  %v3167 = vpop.f32.mrb[0].mxu0
  %v3168 = vadd.f32 0.0, %v3167
  %v3169 = vpop.f32.mrb[0].mxu0
  %v3170 = vadd.f32 0.0, %v3169
  %3171 = vmatprep.mubr.f32.mxu0 0.0
  %3172 = vmatmul.mubr.f32.gmra.mrb[0].mxu0 %v2843
  %v3173 = vpop.f32.mrb[0].mxu0
  %v3174 = vadd.f32 0.0, %v3173
  %v3175 = vpop.f32.mrb[0].mxu0
  %v3176 = vadd.f32 0.0, %v3175
  %3177 = vmatprep.mubr.f32.mxu0 0.0
  %3178 = vmatmul.mubr.f32.gmra.mrb[0].mxu0 %v2846
  %v3179 = vpop.f32.mrb[0].mxu0
  %v3180 = vadd.f32 0.0, %v3179
  %v3181 = vpop.f32.mrb[0].mxu0
  %v3182 = vadd.f32 0.0, %v3181
  %3183 = vmatprep.mubr.f32.mxu0 0.0
  %3184 = vmatmul.mubr.f32.gmra.mrb[0].mxu0 %v2849
  %v3185 = vpop.f32.mrb[0].mxu0
  %v3186 = vadd.f32 0.0, %v3185
  %v3187 = vpop.f32.mrb[0].mxu0
  %v3188 = vadd.f32 0.0, %v3187
  %3189 = vdwg.mxu0
  %3190 = vmatprep.subr.mxu0 0.0
  %3191 = vmatpush1.msra.mxu0 %v1662
  %3192 = vmatprep.subr.mxu0 0.0
  %3193 = vmatpush1.msra.mxu0 %v1669
  %3194 = vmatprep.subr.mxu0 0.0
  %3195 = vmatpush1.msra.mxu0 0.0
  %3196 = vmatprep.subr.mxu0 0.0
  %3197 = vmatpush1.msra.mxu0 0.0
  %3198 = vmatprep.subr.mxu0 0.0
  %3199 = vmatpush1.msra.mxu0 0.0
  %3200 = vmatprep.subr.mxu0 0.0
  %3201 = vmatpush1.msra.mxu0 0.0
  %3202 = vmatprep.subr.mxu0 0.0
  %3203 = vmatpush1.msra.mxu0 0.0
  %3204 = vmatprep.subr.mxu0 0.0
  %3205 = vmatpush1.msra.mxu0 0.0
  %3206 = vmatprep.subr.mxu0 0.0
  %3207 = vmatpush1.msra.mxu0 0.0
  %3208 = vmatprep.subr.mxu0 0.0
  %3209 = vmatpush1.msra.mxu0 0.0
  %3210 = vmatprep.subr.mxu0 0.0
  %3211 = vmatpush1.msra.mxu0 0.0
  %3212 = vmatprep.subr.mxu0 0.0
  %3213 = vmatpush1.msra.mxu0 0.0
  %3214 = vmatprep.subr.mxu0 0.0
  %3215 = vmatpush1.msra.mxu0 0.0
  %3216 = vmatprep.subr.mxu0 0.0
  %3217 = vmatpush1.msra.mxu0 0.0
  %3218 = vmatprep.subr.mxu0 0.0
  %3219 = vmatpush1.msra.mxu0 0.0
  %3220 = vmatprep.subr.mxu0 0.0
  %3221 = vmatpush1.msra.mxu0 0.0
  %3222 = vmatprep.subr.mxu0 0.0
  %3223 = vmatpush1.msra.mxu0 0.0
  %3224 = vmatprep.subr.mxu0 0.0
  %3225 = vmatpush1.msra.mxu0 0.0
  %3226 = vmatprep.subr.mxu0 0.0
  %3227 = vmatpush1.msra.mxu0 0.0
  %3228 = vmatprep.subr.mxu0 0.0
  %3229 = vmatpush1.msra.mxu0 0.0
  %3230 = vmatprep.subr.mxu0 0.0
  %3231 = vmatpush1.msra.mxu0 0.0
  %3232 = vmatprep.subr.mxu0 0.0
  %3233 = vmatpush1.msra.mxu0 0.0
  %3234 = vmatprep.subr.mxu0 0.0
  %3235 = vmatpush1.msra.mxu0 0.0
  %3236 = vmatprep.subr.mxu0 0.0
  %3237 = vmatpush1.msra.mxu0 0.0
  %3238 = vmatprep.subr.mxu0 0.0
  %3239 = vmatpush1.msra.mxu0 0.0
  %3240 = vmatprep.subr.mxu0 0.0
  %3241 = vmatpush1.msra.mxu0 0.0
  %3242 = vmatprep.subr.mxu0 0.0
  %3243 = vmatpush1.msra.mxu0 0.0
  %3244 = vmatprep.subr.mxu0 0.0
  %3245 = vmatpush1.msra.mxu0 0.0
  %3246 = vmatprep.subr.mxu0 0.0
  %3247 = vmatpush1.msra.mxu0 0.0
  %3248 = vmatprep.subr.mxu0 0.0
  %3249 = vmatpush1.msra.mxu0 0.0
  %3250 = vmatprep.subr.mxu0 0.0
  %3251 = vmatpush1.msra.mxu0 0.0
  %3252 = vmatprep.subr.mxu0 0.0
  %3253 = vmatpush1.msra.mxu0 0.0
  %3254 = vmatprep.mubr.f32.mxu0 0.0
  %3255 = vmatmul.mubr.f32.gmra.mrb[0].mxu0 %v2828
  %v3256 = vpop.f32.mrb[0].mxu0
  %v3257 = vadd.f32 0.0, %v3256
  %v3258 = vpop.f32.mrb[0].mxu0
  %3259 = vmatprep.mubr.f32.mxu0 0.0
  %3260 = vmatmul.mubr.f32.gmra.mrb[0].mxu0 %v2831
  %v3261 = vpop.f32.mrb[0].mxu0
  %v3262 = vadd.f32 0.0, %v3261
  %v3263 = vpop.f32.mrb[0].mxu0
  %3264 = vmatprep.mubr.f32.mxu0 0.0
  %3265 = vmatmul.mubr.f32.gmra.mrb[0].mxu0 %v2834
  %v3266 = vpop.f32.mrb[0].mxu0
  %v3267 = vadd.f32 0.0, %v3266
  %v3268 = vpop.f32.mrb[0].mxu0
  %3269 = vmatprep.mubr.f32.mxu0 0.0
  %3270 = vmatmul.mubr.f32.gmra.mrb[0].mxu0 %v2837
  %v3271 = vpop.f32.mrb[0].mxu0
  %v3272 = vadd.f32 0.0, %v3271
  %v3273 = vpop.f32.mrb[0].mxu0
  %3274 = vmatprep.mubr.f32.mxu0 0.0
  %3275 = vmatmul.mubr.f32.gmra.mrb[0].mxu0 %v2840
  %v3276 = vpop.f32.mrb[0].mxu0
  %v3277 = vadd.f32 0.0, %v3276
  %v3278 = vpop.f32.mrb[0].mxu0
  %3279 = vmatprep.mubr.f32.mxu0 0.0
  %3280 = vmatmul.mubr.f32.gmra.mrb[0].mxu0 %v2843
  %v3281 = vpop.f32.mrb[0].mxu0
  %v3282 = vadd.f32 0.0, %v3281
  %v3283 = vpop.f32.mrb[0].mxu0
  %3284 = vmatprep.mubr.f32.mxu0 0.0
  %3285 = vmatmul.mubr.f32.gmra.mrb[0].mxu0 %v2846
  %v3286 = vpop.f32.mrb[0].mxu0
  %v3287 = vadd.f32 0.0, %v3286
  %v3288 = vpop.f32.mrb[0].mxu0
  %3289 = vmatprep.mubr.f32.mxu0 0.0
  %3290 = vmatmul.mubr.f32.gmra.mrb[0].mxu0 %v2849
  %v3291 = vpop.f32.mrb[0].mxu0
  %v3292 = vadd.f32 0.0, %v3291
  %v3293 = vpop.f32.mrb[0].mxu0
  %3294 = vdwg.mxu0
  %v3295 = vmul.f32 %v2918, %v1220
  %v3296 = vmul.f32 %v2920, %v1222
  %v3297 = vmul.f32 %v3031, %v1263
  %v3298 = vmul.f32 %v3033, %v1265
  %v3299 = vmul.f32 %v3144, %v1306
  %v3300 = vmul.f32 %v3146, %v1308
  %v3301 = vmul.f32 %v3257, %v1349
  %v3302 = vmul.f32 %v2924, %v1224
  %v3303 = vmul.f32 %v2926, %v1226
  %v3304 = vmul.f32 %v3037, %v1267
  %v3305 = vmul.f32 %v3039, %v1269
  %v3306 = vmul.f32 %v3150, %v1310
  %v3307 = vmul.f32 %v3152, %v1312
  %v3308 = vmul.f32 %v3262, %v1353
  %v3309 = vmul.f32 %v2930, %v1351
  %v3310 = vmul.f32 %v2932, %v1392
  %v3311 = vmul.f32 %v3043, %v1394
  %v3312 = vmul.f32 %v3045, %v1435
  %v3313 = vmul.f32 %v3156, %v1437
  %v3314 = vmul.f32 %v3158, %v1478
  %v3315 = vmul.f32 %v3267, %v1480
  %v3316 = vmul.f32 %v2936, %v1355
  %v3317 = vmul.f32 %v2938, %v1396
  %v3318 = vmul.f32 %v3049, %v1398
  %v3319 = vmul.f32 %v3051, %v1439
  %v3320 = vmul.f32 %v3162, %v1441
  %v3321 = vmul.f32 %v3164, %v1482
  %v3322 = vmul.f32 %v3272, %v1484
  %v3323 = vadd.f32 %v3295, %v3309
  %v3324 = vadd.f32 %v3296, %v3310
  %v3325 = vadd.f32 %v3297, %v3311
  %v3326 = vadd.f32 %v3298, %v3312
  %v3327 = vadd.f32 %v3299, %v3313
  %v3328 = vadd.f32 %v3300, %v3314
  %v3329 = vadd.f32 %v3301, %v3315
  %v3330 = vadd.f32 %v3302, %v3316
  %v3331 = vadd.f32 %v3303, %v3317
  %v3332 = vadd.f32 %v3304, %v3318
  %v3333 = vadd.f32 %v3305, %v3319
  %v3334 = vadd.f32 %v3306, %v3320
  %v3335 = vadd.f32 %v3307, %v3321
  %v3336 = vadd.f32 %v3308, %v3322
  %v3337 = vmul.f32 %v2942, %v1521
  %v3338 = vmul.f32 %v2944, %v1523
  %v3339 = vmul.f32 %v3055, %v1564
  %v3340 = vmul.f32 %v3057, %v1566
  %v3341 = vmul.f32 %v3168, %v1607
  %v3342 = vmul.f32 %v3170, %v1609
  %v3343 = vmul.f32 %v3277, %v1650
  %v3344 = vmul.f32 %v2948, %v1525
  %v3345 = vmul.f32 %v2950, %v1527
  %v3346 = vmul.f32 %v3061, %v1568
  %v3347 = vmul.f32 %v3063, %v1570
  %v3348 = vmul.f32 %v3174, %v1611
  %v3349 = vmul.f32 %v3176, %v1613
  %v3350 = vmul.f32 %v3282, %v1653
  %v3351 = vadd.f32 %v3323, %v3337
  %v3352 = vadd.f32 %v3324, %v3338
  %v3353 = vadd.f32 %v3325, %v3339
  %v3354 = vadd.f32 %v3326, %v3340
  %v3355 = vadd.f32 %v3327, %v3341
  %v3356 = vadd.f32 %v3328, %v3342
  %v3357 = vadd.f32 %v3329, %v3343
  %v3358 = vadd.f32 %v3330, %v3344
  %v3359 = vadd.f32 %v3331, %v3345
  %v3360 = vadd.f32 %v3332, %v3346
  %v3361 = vadd.f32 %v3333, %v3347
  %v3362 = vadd.f32 %v3334, %v3348
  %v3363 = vadd.f32 %v3335, %v3349
  %v3364 = vadd.f32 %v3336, %v3350
  %v3365 = vadd.f32 %v3351, %v2954
  %v3366 = vadd.f32 %v3352, %v2956
  %v3367 = vadd.f32 %v3353, %v3067
  %v3368 = vadd.f32 %v3354, %v3069
  %v3369 = vadd.f32 %v3355, %v3180
  %v3370 = vadd.f32 %v3356, %v3182
  %v3371 = vadd.f32 %v3357, %v3287
  %v3372 = vadd.f32 %v3358, %v2960
  %v3373 = vadd.f32 %v3359, %v2962
  %v3374 = vadd.f32 %v3360, %v3073
  %v3375 = vadd.f32 %v3361, %v3075
  %v3376 = vadd.f32 %v3362, %v3186
  %v3377 = vadd.f32 %v3363, %v3188
  %v3378 = vadd.f32 %v3364, %v3292
  %s3379 = scalar_lea.vmem %s4, 224
  %3380 = vst [vmem:[%s3379] sm:$0xff] %v3365
  %3381 = vst [vmem:[%s3379 + $0x8] sm:$0xff] %v3366
  %3382 = vst [vmem:[%s3379 + $0x10] sm:$0xff] %v3367
  %3383 = vst [vmem:[%s3379 + $0x18] sm:$0xff] %v3368
  %3384 = vst [vmem:[%s3379 + $0x20] sm:$0xff] %v3369
  %3385 = vst [vmem:[%s3379 + $0x28] sm:$0xff] %v3370
  %3386 = vst [vmem:[%s3379 + $0x30] sm:$0xff] %v3371
  %3387 = vst [vmem:[%s3379 + $0x38] sm:$0xff] %v3372
  %3388 = vst [vmem:[%s3379 + $0x40] sm:$0xff] %v3373
  %3389 = vst [vmem:[%s3379 + $0x48] sm:$0xff] %v3374
  %3390 = vst [vmem:[%s3379 + $0x50] sm:$0xff] %v3375
  %3391 = vst [vmem:[%s3379 + $0x58] sm:$0xff] %v3376
  %3392 = vst [vmem:[%s3379 + $0x60] sm:$0xff] %v3377
  %3393 = vst [vmem:[%s3379 + $0x68] sm:$0xff] %v3378
  // Predicated region
  $region18: #{null_refine_forward.1} parent=0 // pred_check
    _
  $region19: #{null_refine_forward.1} parent=0 // pred_check_branch
    %3395 = sbr.rel (0) target = $region21
  $region20: #{null_refine_forward.1} parent=0 // pred_region
    _
  $region21: #{null_refine_forward.1} parent=0 // pred_fallthru
    _
  // Predicated region
  $region22: #{null_refine_forward.1} parent=0 // pred_check
    _
  $region23: #{null_refine_forward.1} parent=0 // pred_check_branch
    %3397 = sbr.rel (0) target = $region25
  $region24: #{null_refine_forward.1} parent=0 // pred_region
    _
  $region25: #{null_refine_forward.1} parent=0 // pred_fallthru
    _

</llo_original>
